<compile_context>
chip_gen: v5e
topology: v5e:2x2
jax: 0.10.0
libtpu: 0.0.40
codegen_flags: <defaults>
</compile_context>

<pallas_src>
import functools

import jax
import jax.numpy as jnp
import numpy as np
from jax.experimental import pallas as pl
from jax.experimental.pallas import tpu as pltpu

LANE = 128
VMEM_LIMIT = 32 * 1024 * 1024


def _round_up(x, m):
    return (x + m - 1) // m * m


def _pad_to(a, shape):
    return jnp.pad(a, [(0, t - s) for s, t in zip(a.shape, shape)])


def _pool_matrix(ph, pw):
    """(ph*pw, 2ph*2pw) matrix P so that P @ conv_flat == 2x2-avg-pooled conv."""
    p = np.zeros((ph * pw, (2 * ph) * (2 * pw)), np.float32)
    for i in range(ph):
        for j in range(pw):
            for r in range(2):
                for s in range(2):
                    p[i * pw + j, (2 * i + r) * (2 * pw) + (2 * j + s)] = 0.25
    return p


# ---------------------------------------------------------------------------
# Pallas kernels
# ---------------------------------------------------------------------------
def conv_pool_kernel(x_ref, w_ref, b_ref, p_ref, o_ref):
    # x: (1, L, K) bf16 im2col patches of ONE image (L = 2PH*2PW conv positions,
    # K unpadded), w: (K, 128) bf16, b: (1, 128) f32, p: (PH*PW, L) bf16
    # pooling matrix.  o = relu(P @ relu(x @ w + b)) -- Conv2d + bias + ReLU +
    # AvgPool2d(2) + ReLU fused; the pre-pool activation never leaves VMEM.
    conv = jnp.dot(x_ref[0], w_ref[...], preferred_element_type=jnp.float32)
    conv = jnp.maximum(conv + b_ref[...], 0.0)                       # (L, 128)
    pooled = jnp.dot(p_ref[...], conv.astype(jnp.bfloat16),
                     preferred_element_type=jnp.float32)             # (PH*PW, 128)
    o_ref[0] = jnp.maximum(pooled, 0.0).astype(o_ref.dtype)


def head_kernel(x_ref, w3_ref, b3_ref, w4_ref, b4_ref, w5_ref, b5_ref, o_ref,
                *, n_valid):
    # Fused: conv3-as-dense + ReLU, fc1 + ReLU, fc2 + ReLU, exp-normalize.
    h = jnp.dot(x_ref[...], w3_ref[...], preferred_element_type=jnp.float32)
    h = jnp.maximum(h + b3_ref[...], 0.0)
    h = jnp.dot(h.astype(jnp.bfloat16), w4_ref[...],
                preferred_element_type=jnp.float32)
    h = jnp.maximum(h + b4_ref[...], 0.0)
    z = jnp.dot(h.astype(jnp.bfloat16), w5_ref[...],
                preferred_element_type=jnp.float32)
    z = jnp.maximum(z + b5_ref[...], 0.0)
    # exp1 (matches reference: no max subtraction); mask pad lanes so they do
    # not inflate the denominator (exp(0) = 1 per pad lane otherwise).
    lane = jax.lax.broadcasted_iota(jnp.int32, z.shape, 1)
    e = jnp.where(lane < n_valid, jnp.exp(z), 0.0)
    denom = jnp.sum(e, axis=1, keepdims=True)
    o_ref[...] = e * pl.reciprocal(denom, approx=True)


# ---------------------------------------------------------------------------
# Wrappers (small-shape glue in plain JAX, compute in Pallas)
# ---------------------------------------------------------------------------
def conv2d_pool_relu_nhwc(x, w, b, pad):
    """Conv2d(k=5, s=1, padding=pad) + ReLU + AvgPool2d(2) + ReLU.

    x: (N, H, W, Cin) real channels (NHWC).  w: (Cout, Cin, k, k) PyTorch layout.
    Returns (N, PH, PW, 128) bf16, channels-last, Cout zero-padded to 128 lanes.
    """
    N, H, W, Cin = x.shape
    Cout, Cin_w, k, _ = w.shape
    assert Cin == Cin_w
    if pad:
        x = jnp.pad(x, ((0, 0), (pad, pad), (pad, pad), (0, 0)))
        H, W = H + 2 * pad, W + 2 * pad
    Ho, Wo = H - k + 1, W - k + 1
    PH, PW = Ho // 2, Wo // 2
    L, K = (2 * PH) * (2 * PW), k * k * Cin

    # TODO(synk): the im2col gather below is still XLA glue; at large batch the
    # k*k-tap accumulation should move into the kernel grid (shifted-window
    # index_maps) to avoid the ~25x activation re-read through HBM.
    xb = x.astype(jnp.bfloat16)
    cols = [xb[:, di:di + 2 * PH, dj:dj + 2 * PW, :]
            for di in range(k) for dj in range(k)]
    patches = jnp.concatenate(cols, axis=-1).reshape(N, L, K)   # rows (i,j), cols (di,dj,cin)

    wmat = _pad_to(w.transpose(2, 3, 1, 0).reshape(K, Cout).astype(jnp.bfloat16),
                   (K, LANE))
    bp = _pad_to(b.astype(jnp.float32).reshape(1, Cout), (1, LANE))
    pmat = jnp.asarray(_pool_matrix(PH, PW), dtype=jnp.bfloat16)      # (PH*PW, L)

    cost = pl.CostEstimate(
        flops=2 * N * LANE * (L * K + PH * PW * L),
        transcendentals=0,
        bytes_accessed=2 * N * (L * K + PH * PW * LANE)
        + 2 * (K * LANE + PH * PW * L),
    )
    out = pl.pallas_call(
        conv_pool_kernel,
        out_shape=jax.ShapeDtypeStruct((N, PH * PW, LANE), jnp.bfloat16),
        grid=(N,),
        in_specs=[
            pl.BlockSpec((1, L, K), lambda n: (n, 0, 0)),     # per-image patches (K unpadded)
            pl.BlockSpec((K, LANE), lambda n: (0, 0)),        # weights stay resident
            pl.BlockSpec((1, LANE), lambda n: (0, 0)),
            pl.BlockSpec((PH * PW, L), lambda n: (0, 0)),     # pooling matrix resident
        ],
        out_specs=pl.BlockSpec((1, PH * PW, LANE), lambda n: (n, 0, 0)),
        compiler_params=pltpu.CompilerParams(
            dimension_semantics=("parallel",),                 # megacore on v7x
            vmem_limit_bytes=VMEM_LIMIT,
        ),
        cost_estimate=cost,
    )(patches, wmat, bp, pmat)
    return out.reshape(N, PH, PW, LANE)


def fused_head(feat, w3, b3, fw1, fb1, fw2, fb2, *, tm=256):
    """conv3-as-dense (400->120) + fc1 (120->84) + fc2 (84->10) + exp-normalize,
    one Pallas call tiled over rows; intermediates never leave VMEM."""
    N, K = feat.shape
    n_out = int(fw2.shape[1])
    TM = tm if N > tm else _round_up(N, 8)
    Mp = _round_up(N, TM)
    # conv3 weight rows ordered (di, dj, cin) to match the NHWC flatten of feat.
    w3mat = w3.transpose(2, 3, 1, 0).reshape(K, w3.shape[0])           # (400, 120)
    args = (
        _pad_to(feat.astype(jnp.bfloat16), (Mp, K)),                   # K unpadded
        _pad_to(w3mat.astype(jnp.bfloat16), (K, LANE)),
        _pad_to(b3.astype(jnp.float32).reshape(1, -1), (1, LANE)),
        _pad_to(fw1.astype(jnp.bfloat16), (LANE, LANE)),
        _pad_to(fb1.astype(jnp.float32).reshape(1, -1), (1, LANE)),
        _pad_to(fw2.astype(jnp.bfloat16), (LANE, LANE)),
        _pad_to(fb2.astype(jnp.float32).reshape(1, -1), (1, LANE)),
    )
    cost = pl.CostEstimate(
        flops=2 * Mp * LANE * (K + 2 * LANE),
        transcendentals=Mp * LANE,
        bytes_accessed=2 * Mp * K + 4 * Mp * LANE + 2 * (K + 2 * LANE) * LANE,
    )
    out = pl.pallas_call(
        functools.partial(head_kernel, n_valid=n_out),
        out_shape=jax.ShapeDtypeStruct((Mp, LANE), jnp.float32),
        grid=(Mp // TM,),
        in_specs=[
            pl.BlockSpec((TM, K), lambda i: (i, 0)),        # row-tiled, pipelined
            pl.BlockSpec((K, LANE), lambda i: (0, 0)),      # weights/biases resident
            pl.BlockSpec((1, LANE), lambda i: (0, 0)),
            pl.BlockSpec((LANE, LANE), lambda i: (0, 0)),
            pl.BlockSpec((1, LANE), lambda i: (0, 0)),
            pl.BlockSpec((LANE, LANE), lambda i: (0, 0)),
            pl.BlockSpec((1, LANE), lambda i: (0, 0)),
        ],
        out_specs=pl.BlockSpec((TM, LANE), lambda i: (i, 0)),
        compiler_params=pltpu.CompilerParams(
            dimension_semantics=("parallel",),
            vmem_limit_bytes=VMEM_LIMIT,
        ),
        cost_estimate=cost,
    )(*args)
    return out[:N, :n_out]


# ---------------------------------------------------------------------------
# LeNet parameters + forward
# ---------------------------------------------------------------------------
def init_lenet_params(key):
    def uinit(k, shape, fan_in):
        bound = 1.0 / np.sqrt(fan_in)
        return jax.random.uniform(k, shape, jnp.float32, -bound, bound)

    ks = jax.random.split(key, 10)
    return {
        # conv weights in PyTorch layout (Cout, Cin, kH, kW)
        "w1": uinit(ks[0], (6, 1, 5, 5), 1 * 25),     "b1": uinit(ks[1], (6,), 1 * 25),
        "w2": uinit(ks[2], (16, 6, 5, 5), 6 * 25),    "b2": uinit(ks[3], (16,), 6 * 25),
        "w3": uinit(ks[4], (120, 16, 5, 5), 16 * 25), "b3": uinit(ks[5], (120,), 16 * 25),
        # fc weights stored as (in, out) so the kernel computes x @ W + b
        "fw1": uinit(ks[6], (120, 84), 120), "fb1": uinit(ks[7], (84,), 120),
        "fw2": uinit(ks[8], (84, 10), 84),   "fb2": uinit(ks[9], (10,), 84),
    }


def lenet_forward(x, params):
    """x: (N, 1, 28, 28) float32 (PyTorch NCHW).  Returns (N, 10) float32."""
    N = x.shape[0]
    c2_in = params["w2"].shape[1]   # 6
    c3_in = params["w3"].shape[1]   # 16
    h = x.transpose(0, 2, 3, 1)                                           # NHWC
    h = conv2d_pool_relu_nhwc(h, params["w1"], params["b1"], pad=3)       # (N,15,15,128) bf16
    h = conv2d_pool_relu_nhwc(h[..., :c2_in], params["w2"], params["b2"],
                              pad=0)                                      # (N,5,5,128) bf16
    feat = h[..., :c3_in].reshape(N, 5 * 5 * c3_in)                       # (N,400) (p,q,c)
    # TODO(synk): at small batch conv2+pool2 could also fold into the head call
    # to drop one pallas_call and its surrounding slice/reshape glue.
    return fused_head(feat, params["w3"], params["b3"],
                      params["fw1"], params["fb1"],
                      params["fw2"], params["fb2"])                       # (N,10)


def lenet_reference(x, params):
    """Pure-JAX f32 (no Pallas) reference for numerical validation."""
    def conv(x, w, b, pad):
        y = jax.lax.conv_general_dilated(
            x, w, window_strides=(1, 1), padding=((pad, pad), (pad, pad)),
            dimension_numbers=("NCHW", "OIHW", "NCHW"))
        return jax.nn.relu(y + b.reshape(1, -1, 1, 1))

    def pool(x):
        N, C, H, W = x.shape
        Hp, Wp = H // 2, W // 2
        xt = x[:, :, :Hp * 2, :Wp * 2].reshape(N, C, Hp, 2, Wp, 2)
        return jax.nn.relu(xt.mean(axis=(3, 5)))

    h = pool(conv(x, params["w1"], params["b1"], 3))
    h = pool(conv(h, params["w2"], params["b2"], 0))
    h = conv(h, params["w3"], params["b3"], 0).reshape(x.shape[0], -1)
    h = jax.nn.relu(h @ params["fw1"] + params["fb1"])
    h = jax.nn.relu(h @ params["fw2"] + params["fb2"])
    e = jnp.exp(h)
    return e / jnp.sum(e, axis=1, keepdims=True)


if __name__ == "__main__":
    key = jax.random.PRNGKey(0)
    k_params, k_x = jax.random.split(key)
    params = init_lenet_params(k_params)

    # Input must be 28x28 so the conv-stack flatten matches Linear(120, ...).
    x = jax.random.normal(k_x, (2, 1, 28, 28), dtype=jnp.float32)

    fwd = jax.jit(lenet_forward)
    out = jax.block_until_ready(fwd(x, params))

    ref = lenet_reference(x, params)
    assert out.shape == (2, 10)
    assert bool(jnp.all(jnp.isfinite(out)))
    # Rows sum to ~1 (exp-normalization; approx reciprocal => loose tol).
    assert bool(jnp.allclose(jnp.sum(out, axis=1), 1.0, atol=5e-3))
    # bf16 MXU operands + approx reciprocal => tolerance 1e-2 vs f32 reference.
    assert bool(jnp.allclose(out, ref, atol=1e-2, rtol=1e-2))
    print("KERNEL_OK")
</pallas_src>

<mosaic_0001>
module attributes {stable_mosaic.version = 11 : i64} {
  func.func @conv_pool_kernel(%arg0: i32, %arg1: memref<1x900x25xbf16, #tpu.memory_space<vmem>>, %arg2: memref<25x128xbf16, #tpu.memory_space<vmem>>, %arg3: memref<1x128xf32, #tpu.memory_space<vmem>>, %arg4: memref<225x900xbf16, #tpu.memory_space<vmem>>, %arg5: memref<1x225x128xbf16, #tpu.memory_space<vmem>>) attributes {dimension_semantics = [#tpu.dimension_semantics<parallel>], iteration_bounds = array<i64: 2>, scalar_prefetch = 0 : i64, scratch_operands = 0 : i64, tpu.core_type = #tpu.core_type<tc>, window_params = [{transform_indices = @transform_0, window_bounds = array<i64: 1, 900, 25>}, {pipeline_mode = #tpu.pipeline_mode<synchronous>, transform_indices = @transform_1, window_bounds = array<i64: 25, 128>}, {pipeline_mode = #tpu.pipeline_mode<synchronous>, transform_indices = @transform_2, window_bounds = array<i64: 1, 128>}, {pipeline_mode = #tpu.pipeline_mode<synchronous>, transform_indices = @transform_3, window_bounds = array<i64: 225, 900>}, {transform_indices = @transform_4, window_bounds = array<i64: 1, 225, 128>}]} {
    %c0 = arith.constant 0 : index
    %c0_0 = arith.constant 0 : index
    %c0_1 = arith.constant 0 : index
    %0 = vector.load %arg1[%c0, %c0_0, %c0_1] : memref<1x900x25xbf16, #tpu.memory_space<vmem>>, vector<1x900x25xbf16>
    %1 = vector.shape_cast %0 : vector<1x900x25xbf16> to vector<900x25xbf16>
    %c0_2 = arith.constant 0 : index
    %c0_3 = arith.constant 0 : index
    %2 = vector.load %arg2[%c0_2, %c0_3] : memref<25x128xbf16, #tpu.memory_space<vmem>>, vector<25x128xbf16>
    %cst = arith.constant dense<0.000000e+00> : vector<900x128xf32>
    %3 = tpu.matmul %1, %2, %cst {dimension_numbers = #tpu.dot_dimension_numbers<[1], [0], [0], [1], [0, 0, 1, 1], [], []>} : vector<900x25xbf16>, vector<25x128xbf16>, vector<900x128xf32> -> vector<900x128xf32>
    %c0_4 = arith.constant 0 : index
    %c0_5 = arith.constant 0 : index
    %4 = vector.load %arg3[%c0_4, %c0_5] : memref<1x128xf32, #tpu.memory_space<vmem>>, vector<1x128xf32>
    %5 = vector.broadcast %4 : vector<1x128xf32> to vector<900x128xf32>
    %6 = arith.addf %3, %5 : vector<900x128xf32>
    %cst_6 = arith.constant 0.000000e+00 : f32
    %7 = vector.broadcast %cst_6 : f32 to vector<900x128xf32>
    %8 = arith.maximumf %6, %7 : vector<900x128xf32>
    %c0_7 = arith.constant 0 : index
    %c0_8 = arith.constant 0 : index
    %9 = vector.load %arg4[%c0_7, %c0_8] : memref<225x900xbf16, #tpu.memory_space<vmem>>, vector<225x900xbf16>
    %10 = arith.truncf %8 : vector<900x128xf32> to vector<900x128xbf16>
    %cst_9 = arith.constant dense<0.000000e+00> : vector<225x128xf32>
    %11 = tpu.matmul %9, %10, %cst_9 {dimension_numbers = #tpu.dot_dimension_numbers<[1], [0], [0], [1], [0, 0, 1, 1], [], []>} : vector<225x900xbf16>, vector<900x128xbf16>, vector<225x128xf32> -> vector<225x128xf32>
    %cst_10 = arith.constant 0.000000e+00 : f32
    %12 = vector.broadcast %cst_10 : f32 to vector<225x128xf32>
    %13 = arith.maximumf %11, %12 : vector<225x128xf32>
    %14 = arith.truncf %13 : vector<225x128xf32> to vector<225x128xbf16>
    %c0_11 = arith.constant 0 : index
    %c0_12 = arith.constant 0 : index
    %c0_13 = arith.constant 0 : index
    %15 = vector.load %arg5[%c0_11, %c0_12, %c0_13] : memref<1x225x128xbf16, #tpu.memory_space<vmem>>, vector<1x225x128xbf16>
    %16 = vector.shape_cast %15 : vector<1x225x128xbf16> to vector<225x128xbf16>
    %17 = vector.shape_cast %14 : vector<225x128xbf16> to vector<1x225x128xbf16>
    tpu.vector_store %arg5[%c0_11, %c0_12, %c0_13], %17 {strides = array<i32>} : memref<1x225x128xbf16, #tpu.memory_space<vmem>>, vector<1x225x128xbf16>,
    return
  }
  func.func @transform_0(%arg0: i32) -> (i32, i32, i32) {
    %c0_i32 = arith.constant 0 : i32
    %c0_i32_0 = arith.constant 0 : i32
    %c0_i32_1 = arith.constant 0 : i32
    return %arg0, %c0_i32, %c0_i32_0 : i32, i32, i32
  }
  func.func @transform_1(%arg0: i32) -> (i32, i32) {
    %c0_i32 = arith.constant 0 : i32
    %c0_i32_0 = arith.constant 0 : i32
    %c0_i32_1 = arith.constant 0 : i32
    return %c0_i32, %c0_i32_0 : i32, i32
  }
  func.func @transform_2(%arg0: i32) -> (i32, i32) {
    %c0_i32 = arith.constant 0 : i32
    %c0_i32_0 = arith.constant 0 : i32
    %c0_i32_1 = arith.constant 0 : i32
    return %c0_i32, %c0_i32_0 : i32, i32
  }
  func.func @transform_3(%arg0: i32) -> (i32, i32) {
    %c0_i32 = arith.constant 0 : i32
    %c0_i32_0 = arith.constant 0 : i32
    %c0_i32_1 = arith.constant 0 : i32
    return %c0_i32, %c0_i32_0 : i32, i32
  }
  func.func @transform_4(%arg0: i32) -> (i32, i32, i32) {
    %c0_i32 = arith.constant 0 : i32
    %c0_i32_0 = arith.constant 0 : i32
    %c0_i32_1 = arith.constant 0 : i32
    return %arg0, %c0_i32, %c0_i32_0 : i32, i32, i32
  }
}

module attributes {stable_mosaic.version = 11 : i64} {
  func.func @conv_pool_kernel(%arg0: i32, %arg1: memref<1x100x150xbf16, #tpu.memory_space<vmem>>, %arg2: memref<150x128xbf16, #tpu.memory_space<vmem>>, %arg3: memref<1x128xf32, #tpu.memory_space<vmem>>, %arg4: memref<25x100xbf16, #tpu.memory_space<vmem>>, %arg5: memref<1x25x128xbf16, #tpu.memory_space<vmem>>) attributes {dimension_semantics = [#tpu.dimension_semantics<parallel>], iteration_bounds = array<i64: 2>, scalar_prefetch = 0 : i64, scratch_operands = 0 : i64, tpu.core_type = #tpu.core_type<tc>, window_params = [{transform_indices = @transform_0, window_bounds = array<i64: 1, 100, 150>}, {pipeline_mode = #tpu.pipeline_mode<synchronous>, transform_indices = @transform_1, window_bounds = array<i64: 150, 128>}, {pipeline_mode = #tpu.pipeline_mode<synchronous>, transform_indices = @transform_2, window_bounds = array<i64: 1, 128>}, {pipeline_mode = #tpu.pipeline_mode<synchronous>, transform_indices = @transform_3, window_bounds = array<i64: 25, 100>}, {transform_indices = @transform_4, window_bounds = array<i64: 1, 25, 128>}]} {
    %c0 = arith.constant 0 : index
    %c0_0 = arith.constant 0 : index
    %c0_1 = arith.constant 0 : index
    %0 = vector.load %arg1[%c0, %c0_0, %c0_1] : memref<1x100x150xbf16, #tpu.memory_space<vmem>>, vector<1x100x150xbf16>
    %1 = vector.shape_cast %0 : vector<1x100x150xbf16> to vector<100x150xbf16>
    %c0_2 = arith.constant 0 : index
    %c0_3 = arith.constant 0 : index
    %2 = vector.load %arg2[%c0_2, %c0_3] : memref<150x128xbf16, #tpu.memory_space<vmem>>, vector<150x128xbf16>
    %cst = arith.constant dense<0.000000e+00> : vector<100x128xf32>
    %3 = tpu.matmul %1, %2, %cst {dimension_numbers = #tpu.dot_dimension_numbers<[1], [0], [0], [1], [0, 0, 1, 1], [], []>} : vector<100x150xbf16>, vector<150x128xbf16>, vector<100x128xf32> -> vector<100x128xf32>
    %c0_4 = arith.constant 0 : index
    %c0_5 = arith.constant 0 : index
    %4 = vector.load %arg3[%c0_4, %c0_5] : memref<1x128xf32, #tpu.memory_space<vmem>>, vector<1x128xf32>
    %5 = vector.broadcast %4 : vector<1x128xf32> to vector<100x128xf32>
    %6 = arith.addf %3, %5 : vector<100x128xf32>
    %cst_6 = arith.constant 0.000000e+00 : f32
    %7 = vector.broadcast %cst_6 : f32 to vector<100x128xf32>
    %8 = arith.maximumf %6, %7 : vector<100x128xf32>
    %c0_7 = arith.constant 0 : index
    %c0_8 = arith.constant 0 : index
    %9 = vector.load %arg4[%c0_7, %c0_8] : memref<25x100xbf16, #tpu.memory_space<vmem>>, vector<25x100xbf16>
    %10 = arith.truncf %8 : vector<100x128xf32> to vector<100x128xbf16>
    %cst_9 = arith.constant dense<0.000000e+00> : vector<25x128xf32>
    %11 = tpu.matmul %9, %10, %cst_9 {dimension_numbers = #tpu.dot_dimension_numbers<[1], [0], [0], [1], [0, 0, 1, 1], [], []>} : vector<25x100xbf16>, vector<100x128xbf16>, vector<25x128xf32> -> vector<25x128xf32>
    %cst_10 = arith.constant 0.000000e+00 : f32
    %12 = vector.broadcast %cst_10 : f32 to vector<25x128xf32>
    %13 = arith.maximumf %11, %12 : vector<25x128xf32>
    %14 = arith.truncf %13 : vector<25x128xf32> to vector<25x128xbf16>
    %c0_11 = arith.constant 0 : index
    %c0_12 = arith.constant 0 : index
    %c0_13 = arith.constant 0 : index
    %15 = vector.load %arg5[%c0_11, %c0_12, %c0_13] : memref<1x25x128xbf16, #tpu.memory_space<vmem>>, vector<1x25x128xbf16>
    %16 = vector.shape_cast %15 : vector<1x25x128xbf16> to vector<25x128xbf16>
    %17 = vector.shape_cast %14 : vector<25x128xbf16> to vector<1x25x128xbf16>
    tpu.vector_store %arg5[%c0_11, %c0_12, %c0_13], %17 {strides = array<i32>} : memref<1x25x128xbf16, #tpu.memory_space<vmem>>, vector<1x25x128xbf16>,
    return
  }
  func.func @transform_0(%arg0: i32) -> (i32, i32, i32) {
    %c0_i32 = arith.constant 0 : i32
    %c0_i32_0 = arith.constant 0 : i32
    %c0_i32_1 = arith.constant 0 : i32
    return %arg0, %c0_i32, %c0_i32_0 : i32, i32, i32
  }
  func.func @transform_1(%arg0: i32) -> (i32, i32) {
    %c0_i32 = arith.constant 0 : i32
    %c0_i32_0 = arith.constant 0 : i32
    %c0_i32_1 = arith.constant 0 : i32
    return %c0_i32, %c0_i32_0 : i32, i32
  }
  func.func @transform_2(%arg0: i32) -> (i32, i32) {
    %c0_i32 = arith.constant 0 : i32
    %c0_i32_0 = arith.constant 0 : i32
    %c0_i32_1 = arith.constant 0 : i32
    return %c0_i32, %c0_i32_0 : i32, i32
  }
  func.func @transform_3(%arg0: i32) -> (i32, i32) {
    %c0_i32 = arith.constant 0 : i32
    %c0_i32_0 = arith.constant 0 : i32
    %c0_i32_1 = arith.constant 0 : i32
    return %c0_i32, %c0_i32_0 : i32, i32
  }
  func.func @transform_4(%arg0: i32) -> (i32, i32, i32) {
    %c0_i32 = arith.constant 0 : i32
    %c0_i32_0 = arith.constant 0 : i32
    %c0_i32_1 = arith.constant 0 : i32
    return %arg0, %c0_i32, %c0_i32_0 : i32, i32, i32
  }
}

module attributes {stable_mosaic.version = 11 : i64} {
  func.func @head_kernel(%arg0: i32, %arg1: memref<8x400xbf16, #tpu.memory_space<vmem>>, %arg2: memref<400x128xbf16, #tpu.memory_space<vmem>>, %arg3: memref<1x128xf32, #tpu.memory_space<vmem>>, %arg4: memref<128x128xbf16, #tpu.memory_space<vmem>>, %arg5: memref<1x128xf32, #tpu.memory_space<vmem>>, %arg6: memref<128x128xbf16, #tpu.memory_space<vmem>>, %arg7: memref<1x128xf32, #tpu.memory_space<vmem>>, %arg8: memref<8x128xf32, #tpu.memory_space<vmem>>) attributes {dimension_semantics = [#tpu.dimension_semantics<parallel>], iteration_bounds = array<i64: 1>, scalar_prefetch = 0 : i64, scratch_operands = 0 : i64, tpu.core_type = #tpu.core_type<tc>, window_params = [{transform_indices = @transform_0, window_bounds = array<i64: 8, 400>}, {pipeline_mode = #tpu.pipeline_mode<synchronous>, transform_indices = @transform_1, window_bounds = array<i64: 400, 128>}, {pipeline_mode = #tpu.pipeline_mode<synchronous>, transform_indices = @transform_2, window_bounds = array<i64: 1, 128>}, {pipeline_mode = #tpu.pipeline_mode<synchronous>, transform_indices = @transform_3, window_bounds = array<i64: 128, 128>}, {pipeline_mode = #tpu.pipeline_mode<synchronous>, transform_indices = @transform_4, window_bounds = array<i64: 1, 128>}, {pipeline_mode = #tpu.pipeline_mode<synchronous>, transform_indices = @transform_5, window_bounds = array<i64: 128, 128>}, {pipeline_mode = #tpu.pipeline_mode<synchronous>, transform_indices = @transform_6, window_bounds = array<i64: 1, 128>}, {transform_indices = @transform_7, window_bounds = array<i64: 8, 128>}]} {
    %c0 = arith.constant 0 : index
    %c0_0 = arith.constant 0 : index
    %0 = vector.load %arg1[%c0, %c0_0] : memref<8x400xbf16, #tpu.memory_space<vmem>>, vector<8x400xbf16>
    %c0_1 = arith.constant 0 : index
    %c0_2 = arith.constant 0 : index
    %1 = vector.load %arg2[%c0_1, %c0_2] : memref<400x128xbf16, #tpu.memory_space<vmem>>, vector<400x128xbf16>
    %cst = arith.constant dense<0.000000e+00> : vector<8x128xf32>
    %2 = tpu.matmul %0, %1, %cst {dimension_numbers = #tpu.dot_dimension_numbers<[1], [0], [0], [1], [0, 0, 1, 1], [], []>} : vector<8x400xbf16>, vector<400x128xbf16>, vector<8x128xf32> -> vector<8x128xf32>
    %c0_3 = arith.constant 0 : index
    %c0_4 = arith.constant 0 : index
    %3 = vector.load %arg3[%c0_3, %c0_4] : memref<1x128xf32, #tpu.memory_space<vmem>>, vector<1x128xf32>
    %4 = vector.broadcast %3 : vector<1x128xf32> to vector<8x128xf32>
    %5 = arith.addf %2, %4 : vector<8x128xf32>
    %cst_5 = arith.constant 0.000000e+00 : f32
    %6 = vector.broadcast %cst_5 : f32 to vector<8x128xf32>
    %7 = arith.maximumf %5, %6 : vector<8x128xf32>
    %8 = arith.truncf %7 : vector<8x128xf32> to vector<8x128xbf16>
    %c0_6 = arith.constant 0 : index
    %c0_7 = arith.constant 0 : index
    %9 = vector.load %arg4[%c0_6, %c0_7] : memref<128x128xbf16, #tpu.memory_space<vmem>>, vector<128x128xbf16>
    %cst_8 = arith.constant dense<0.000000e+00> : vector<8x128xf32>
    %10 = tpu.matmul %8, %9, %cst_8 {dimension_numbers = #tpu.dot_dimension_numbers<[1], [0], [0], [1], [0, 0, 1, 1], [], []>} : vector<8x128xbf16>, vector<128x128xbf16>, vector<8x128xf32> -> vector<8x128xf32>
    %c0_9 = arith.constant 0 : index
    %c0_10 = arith.constant 0 : index
    %11 = vector.load %arg5[%c0_9, %c0_10] : memref<1x128xf32, #tpu.memory_space<vmem>>, vector<1x128xf32>
    %12 = vector.broadcast %11 : vector<1x128xf32> to vector<8x128xf32>
    %13 = arith.addf %10, %12 : vector<8x128xf32>
    %cst_11 = arith.constant 0.000000e+00 : f32
    %14 = vector.broadcast %cst_11 : f32 to vector<8x128xf32>
    %15 = arith.maximumf %13, %14 : vector<8x128xf32>
    %16 = arith.truncf %15 : vector<8x128xf32> to vector<8x128xbf16>
    %c0_12 = arith.constant 0 : index
    %c0_13 = arith.constant 0 : index
    %17 = vector.load %arg6[%c0_12, %c0_13] : memref<128x128xbf16, #tpu.memory_space<vmem>>, vector<128x128xbf16>
    %cst_14 = arith.constant dense<0.000000e+00> : vector<8x128xf32>
    %18 = tpu.matmul %16, %17, %cst_14 {dimension_numbers = #tpu.dot_dimension_numbers<[1], [0], [0], [1], [0, 0, 1, 1], [], []>} : vector<8x128xbf16>, vector<128x128xbf16>, vector<8x128xf32> -> vector<8x128xf32>
    %c0_15 = arith.constant 0 : index
    %c0_16 = arith.constant 0 : index
    %19 = vector.load %arg7[%c0_15, %c0_16] : memref<1x128xf32, #tpu.memory_space<vmem>>, vector<1x128xf32>
    %20 = vector.broadcast %19 : vector<1x128xf32> to vector<8x128xf32>
    %21 = arith.addf %18, %20 : vector<8x128xf32>
    %cst_17 = arith.constant 0.000000e+00 : f32
    %22 = vector.broadcast %cst_17 : f32 to vector<8x128xf32>
    %23 = arith.maximumf %21, %22 : vector<8x128xf32>
    %24 = tpu.iota {dimensions = array<i32: 1>} : vector<8x128xi32>
    %c10_i32 = arith.constant 10 : i32
    %25 = vector.broadcast %c10_i32 : i32 to vector<8x128xi32>
    %26 = arith.cmpi slt, %24, %25 : vector<8x128xi32>
    %27 = math.exp %23 : vector<8x128xf32>
    %cst_18 = arith.constant 0.000000e+00 : f32
    %28 = vector.broadcast %cst_18 : f32 to vector<8x128xf32>
    %29 = arith.select %26, %27, %28 : vector<8x128xi1>, vector<8x128xf32>
    %cst_19 = arith.constant dense<0.000000e+00> : vector<8xf32>
    %30 = vector.multi_reduction <add>, %29, %cst_19 [1] : vector<8x128xf32> to vector<8xf32>
    %31 = vector.shape_cast %30 : vector<8xf32> to vector<8x1xf32>
    %32 = tpu.reciprocal %31 {approx = true} : vector<8x1xf32> -> vector<8x1xf32>
    %33 = vector.broadcast %32 : vector<8x1xf32> to vector<8x128xf32>
    %34 = arith.mulf %29, %33 : vector<8x128xf32>
    %c0_20 = arith.constant 0 : index
    %c0_21 = arith.constant 0 : index
    %35 = vector.load %arg8[%c0_20, %c0_21] : memref<8x128xf32, #tpu.memory_space<vmem>>, vector<8x128xf32>
    tpu.vector_store %arg8[%c0_20, %c0_21], %34 {strides = array<i32>} : memref<8x128xf32, #tpu.memory_space<vmem>>, vector<8x128xf32>,
    return
  }
  func.func @transform_0(%arg0: i32) -> (i32, i32) {
    %c0_i32 = arith.constant 0 : i32
    %c0_i32_0 = arith.constant 0 : i32
    return %arg0, %c0_i32 : i32, i32
  }
  func.func @transform_1(%arg0: i32) -> (i32, i32) {
    %c0_i32 = arith.constant 0 : i32
    %c0_i32_0 = arith.constant 0 : i32
    %c0_i32_1 = arith.constant 0 : i32
    return %c0_i32, %c0_i32_0 : i32, i32
  }
  func.func @transform_2(%arg0: i32) -> (i32, i32) {
    %c0_i32 = arith.constant 0 : i32
    %c0_i32_0 = arith.constant 0 : i32
    %c0_i32_1 = arith.constant 0 : i32
    return %c0_i32, %c0_i32_0 : i32, i32
  }
  func.func @transform_3(%arg0: i32) -> (i32, i32) {
    %c0_i32 = arith.constant 0 : i32
    %c0_i32_0 = arith.constant 0 : i32
    %c0_i32_1 = arith.constant 0 : i32
    return %c0_i32, %c0_i32_0 : i32, i32
  }
  func.func @transform_4(%arg0: i32) -> (i32, i32) {
    %c0_i32 = arith.constant 0 : i32
    %c0_i32_0 = arith.constant 0 : i32
    %c0_i32_1 = arith.constant 0 : i32
    return %c0_i32, %c0_i32_0 : i32, i32
  }
  func.func @transform_5(%arg0: i32) -> (i32, i32) {
    %c0_i32 = arith.constant 0 : i32
    %c0_i32_0 = arith.constant 0 : i32
    %c0_i32_1 = arith.constant 0 : i32
    return %c0_i32, %c0_i32_0 : i32, i32
  }
  func.func @transform_6(%arg0: i32) -> (i32, i32) {
    %c0_i32 = arith.constant 0 : i32
    %c0_i32_0 = arith.constant 0 : i32
    %c0_i32_1 = arith.constant 0 : i32
    return %c0_i32, %c0_i32_0 : i32, i32
  }
  func.func @transform_7(%arg0: i32) -> (i32, i32) {
    %c0_i32 = arith.constant 0 : i32
    %c0_i32_0 = arith.constant 0 : i32
    return %arg0, %c0_i32 : i32, i32
  }
}

</mosaic_0001>

<llo_original>
// kernel: lenet_forward.3
$region0: #{lenet_forward.3}
  #allocation0 [shape = 'u32[]', space=smem, size = 0x4, offset = 0x4, fixed_abs, tag = 'smem constant byte address 0x4 - core index']
  #allocation1 [shape = 'u32[72,128]{1,0:T(1,128)}', space=vmem, size = 0x9000, scoped, tag = 'internal scratch']
  %s0 = inlined_call_operand.vmem [shape: bf16[2,900,25], index: 0, kind: input, shape index: {}]
  %s1 = inlined_call_operand.vmem [shape: bf16[25,128], index: 1, kind: input, shape index: {}]
  %s2 = inlined_call_operand.vmem [shape: f32[1,128], index: 2, kind: input, shape index: {}]
  %s3 = inlined_call_operand.vmem [shape: bf16[225,900], index: 3, kind: input, shape index: {}]
  %s4 = inlined_call_operand.vmem [shape: bf16[2,225,128], index: 4, kind: output, shape index: {}]
  %s5 = sld [smem:[#allocation0]]
  $region49: #{lenet_forward.3} parent=0
    _
  %s7 = ssub.s32 1, %s5
  %s8 = scalar_select 0, %s7, %s5
  loop: start=0, step=1, limit=4
  $region2: #{lenet_forward.3} parent=0 // loop_pre_header
    _
  $region3: #{lenet_forward.3} parent=0 // loop_header
    %s10 = sphi 0, %s14
    %p11 = scmp.ge.s32.totalorder %s10, 4
    %s20 = sphi 0, %s22
    %s23 = sphi 0, %s20
    %s24 = sphi 0, %s23
    %s40 = sphi 0, %s24
    %s44 = sphi 0, %s44
    %s46 = sphi 0, %s44
    %s47 = sphi 0, %s46
    %s61 = sphi 0, %s47
    %s65 = sphi 0, %s65
    %s67 = sphi 0, %s65
    %s68 = sphi 0, %s67
    %s82 = sphi 0, %s68
    %s86 = sphi 0, %s86
    %s88 = sphi 0, %s86
    %s89 = sphi 0, %s88
    %s103 = sphi 0, %s89
    %s109 = sphi 0, %s111
    %s112 = sphi 0, %s109
    %s113 = sphi 0, %s112
    %s129 = sphi 0, %s113
  $region4: #{lenet_forward.3} parent=0 // loop_header_branch
    %13 = sbr.rel (%p11) target = $region8
  $region5: #{lenet_forward.3} parent=0 // loop_body
    %s15 = ssub.s32 %s10, 1
    %s16 = ssub.s32 %s10, 2
    %s17 = sadd.s32 %s10, 1
    %s18 = ssub.s32 %s10, %s17
    %p19 = scmp.eq.s32.totalorder %s18, 0
    %s21 = sadd.s32 %s20, 1
    %s22 = scalar_select %p19, %s20, %s21
    %p25 = pneg %p19
    %p26 = scmp.eq.s32.totalorder %s10, 1
    %p27 = por %p25, %p26
    %p28 = scmp.ne.s32.totalorder %s20, %s23
    %p29 = scmp.eq.s32.totalorder %s10, 0
    %p30 = por %p28, %p29
    %p31 = scmp.ne.s32.totalorder %s20, %s23
    %p32 = scmp.eq.s32.totalorder %s15, 1
    %p33 = por %p31, %p32
    %p34 = scmp.ne.s32.totalorder %s23, %s24
    %p35 = scmp.eq.s32.totalorder %s15, 0
    %p36 = por %p34, %p35
    %p37 = scmp.ne.s32.totalorder %s23, %s24
    %p38 = scmp.eq.s32.totalorder %s16, 1
    %p39 = por %p37, %p38
    %p41 = scmp.ne.s32.totalorder %s24, %s40
    %p42 = scmp.eq.s32.totalorder %s16, 0
    %p43 = por %p41, %p42
    %s45 = sadd.s32 %s44, 1
    %p48 = scmp.eq.s32.totalorder %s10, 1
    %p49 = scmp.ne.s32.totalorder %s44, %s46
    %p50 = scmp.eq.s32.totalorder %s10, 0
    %p51 = por %p49, %p50
    %p52 = scmp.ne.s32.totalorder %s44, %s46
    %p53 = scmp.eq.s32.totalorder %s15, 1
    %p54 = por %p52, %p53
    %p55 = scmp.ne.s32.totalorder %s46, %s47
    %p56 = scmp.eq.s32.totalorder %s15, 0
    %p57 = por %p55, %p56
    %p58 = scmp.ne.s32.totalorder %s46, %s47
    %p59 = scmp.eq.s32.totalorder %s16, 1
    %p60 = por %p58, %p59
    %p62 = scmp.ne.s32.totalorder %s47, %s61
    %p63 = scmp.eq.s32.totalorder %s16, 0
    %p64 = por %p62, %p63
    %s66 = sadd.s32 %s65, 1
    %p69 = scmp.eq.s32.totalorder %s10, 1
    %p70 = scmp.ne.s32.totalorder %s65, %s67
    %p71 = scmp.eq.s32.totalorder %s10, 0
    %p72 = por %p70, %p71
    %p73 = scmp.ne.s32.totalorder %s65, %s67
    %p74 = scmp.eq.s32.totalorder %s15, 1
    %p75 = por %p73, %p74
    %p76 = scmp.ne.s32.totalorder %s67, %s68
    %p77 = scmp.eq.s32.totalorder %s15, 0
    %p78 = por %p76, %p77
    %p79 = scmp.ne.s32.totalorder %s67, %s68
    %p80 = scmp.eq.s32.totalorder %s16, 1
    %p81 = por %p79, %p80
    %p83 = scmp.ne.s32.totalorder %s68, %s82
    %p84 = scmp.eq.s32.totalorder %s16, 0
    %p85 = por %p83, %p84
    %s87 = sadd.s32 %s86, 1
    %p90 = scmp.eq.s32.totalorder %s10, 1
    %p91 = scmp.ne.s32.totalorder %s86, %s88
    %p92 = scmp.eq.s32.totalorder %s10, 0
    %p93 = por %p91, %p92
    %p94 = scmp.ne.s32.totalorder %s86, %s88
    %p95 = scmp.eq.s32.totalorder %s15, 1
    %p96 = por %p94, %p95
    %p97 = scmp.ne.s32.totalorder %s88, %s89
    %p98 = scmp.eq.s32.totalorder %s15, 0
    %p99 = por %p97, %p98
    %p100 = scmp.ne.s32.totalorder %s88, %s89
    %p101 = scmp.eq.s32.totalorder %s16, 1
    %p102 = por %p100, %p101
    %p104 = scmp.ne.s32.totalorder %s89, %s103
    %p105 = scmp.eq.s32.totalorder %s16, 0
    %p106 = por %p104, %p105
    %s107 = ssub.s32 %s10, %s17
    %p108 = scmp.eq.s32.totalorder %s107, 0
    %s110 = sadd.s32 %s109, 1
    %s111 = scalar_select %p108, %s109, %s110
    %p114 = pneg %p108
    %p115 = scmp.eq.s32.totalorder %s10, 1
    %p116 = por %p114, %p115
    %p117 = scmp.ne.s32.totalorder %s109, %s112
    %p118 = scmp.eq.s32.totalorder %s10, 0
    %p119 = por %p117, %p118
    %p120 = scmp.ne.s32.totalorder %s109, %s112
    %p121 = scmp.eq.s32.totalorder %s15, 1
    %p122 = por %p120, %p121
    %p123 = scmp.ne.s32.totalorder %s112, %s113
    %p124 = scmp.eq.s32.totalorder %s15, 0
    %p125 = por %p123, %p124
    %p126 = scmp.ne.s32.totalorder %s112, %s113
    %p127 = scmp.eq.s32.totalorder %s16, 1
    %p128 = por %p126, %p127
    %p130 = scmp.ne.s32.totalorder %s113, %s129
    %p131 = scmp.eq.s32.totalorder %s16, 0
    %p132 = por %p130, %p131
    %p133 = scmp.le.s32.totalorder 1, %s10
    %p134 = scmp.lt.s32.totalorder %s10, 3
    %p135 = pnand %p133, %p134
    %p136 = pneg %p135
    // Predicated region
    $region9: #{lenet_forward.3} parent=5 // pred_check
      _
    $region10: #{lenet_forward.3} parent=5 // pred_check_branch
      %138 = sbr.rel (%p135) target = $region12
    $region11: #{lenet_forward.3} parent=5 // pred_region
      %s139 = ssub.s32 %s10, 1
      // Predicated region
      $region13: #{lenet_forward.3} parent=11 // pred_check
        %p140 = pneg %p57
      $region14: #{lenet_forward.3} parent=11 // pred_check_branch
        %142 = sbr.rel (%p140) target = $region16
      $region15: #{lenet_forward.3} parent=11 // pred_region
        _
      $region16: #{lenet_forward.3} parent=11 // pred_fallthru
        _
      // Predicated region
      $region17: #{lenet_forward.3} parent=11 // pred_check
        %p143 = pneg %p78
      $region18: #{lenet_forward.3} parent=11 // pred_check_branch
        %145 = sbr.rel (%p143) target = $region20
      $region19: #{lenet_forward.3} parent=11 // pred_region
        _
      $region20: #{lenet_forward.3} parent=11 // pred_fallthru
        _
      // Predicated region
      $region21: #{lenet_forward.3} parent=11 // pred_check
        %p146 = pneg %p99
      $region22: #{lenet_forward.3} parent=11 // pred_check_branch
        %148 = sbr.rel (%p146) target = $region24
      $region23: #{lenet_forward.3} parent=11 // pred_region
        _
      $region24: #{lenet_forward.3} parent=11 // pred_fallthru
        _
    $region12: #{lenet_forward.3} parent=5 // pred_fallthru
      _
    %p149 = scmp.lt.s32.totalorder %s10, 2
    // Predicated region
    $region25: #{lenet_forward.3} parent=5 // pred_check
      %p150 = pneg %p149
    $region26: #{lenet_forward.3} parent=5 // pred_check_branch
      %152 = sbr.rel (%p150) target = $region28
    $region27: #{lenet_forward.3} parent=5 // pred_region
      // Predicated region
      $region29: #{lenet_forward.3} parent=27 // pred_check
        %p153 = pneg %p30
      $region30: #{lenet_forward.3} parent=27 // pred_check_branch
        %155 = sbr.rel (%p153) target = $region32
      $region31: #{lenet_forward.3} parent=27 // pred_region
        %p156 = scmp.lt.s32.totalorder %s10, 1
        %s157 = scalar_select %p156, %s10, 1
        %s158 = smul.addr %s157, 113
        %s159 = smul.addr %s158, 4
        %s160 = scalar_lea.vmem %s0, %s159
      $region32: #{lenet_forward.3} parent=27 // pred_fallthru
        _
    $region28: #{lenet_forward.3} parent=5 // pred_fallthru
      _
    %p161 = scmp.le.s32.totalorder 1, %s10
    %p162 = scmp.lt.s32.totalorder %s10, 3
    %p163 = pnand %p161, %p162
    %p164 = pneg %p163
    // Predicated region
    $region33: #{lenet_forward.3} parent=5 // pred_check
      _
    $region34: #{lenet_forward.3} parent=5 // pred_check_branch
      %166 = sbr.rel (%p163) target = $region36
    $region35: #{lenet_forward.3} parent=5 // pred_region
      %s167 = ssub.s32 %s10, 1
      %p168 = scmp.lt.s32.totalorder %s15, 1
      %s169 = scalar_select %p168, %s15, 1
      %s170 = smul.addr %s169, 113
      %s171 = smul.addr %s170, 4
      %s172 = scalar_lea.vmem %s0, %s171
      %p173 = pneg %p36
      %p174 = pneg %p33
      %p175 = pneg %p57
      %p176 = pneg %p54
      %p177 = pneg %p78
      %p178 = pneg %p75
      %p179 = pneg %p99
      %p180 = pneg %p96
      %p181 = pneg %p125
      %p182 = pneg %p122
      %p183 = scmp.lt.s32.totalorder %s15, 1
      %s184 = scalar_select %p183, %s15, 1
      %s185 = smul.addr %s184, 29
      %s186 = smul.addr %s185, 4
      %s187 = scalar_lea.vmem %s4, %s186
      %p188 = scmp.lt.s32.totalorder %s15, 1
      %s189 = scalar_select %p188, %s15, 1
      %s190 = smul.addr %s189, 113
      %s191 = smul.addr %s190, 4
      %s192 = scalar_lea.vmem %s0, %s191
      %p193 = scmp.lt.s32.totalorder %s15, 1
      %s194 = scalar_select %p193, %s15, 1
      %s195 = smul.addr %s194, 29
      %s196 = smul.addr %s195, 4
      %s197 = scalar_lea.vmem %s4, %s196
      %v199 = vld [vmem:[%s192] sm:$0xf]
      %v200 = vld [vmem:[%s192 + $0x4] sm:$0xf]
      %v201 = vld [vmem:[%s192 + $0x8] sm:$0xf]
      %v202 = vld [vmem:[%s192 + $0xc] sm:$0xf]
      %v203 = vld [vmem:[%s192 + $0x10] sm:$0xf]
      %v204 = vld [vmem:[%s192 + $0x14] sm:$0xf]
      %v205 = vld [vmem:[%s192 + $0x18] sm:$0xf]
      %v206 = vld [vmem:[%s192 + $0x1c] sm:$0xf]
      %v207 = vld [vmem:[%s192 + $0x20] sm:$0xf]
      %v208 = vld [vmem:[%s192 + $0x24] sm:$0xf]
      %v209 = vld [vmem:[%s192 + $0x28] sm:$0xf]
      %v210 = vld [vmem:[%s192 + $0x2c] sm:$0xf]
      %v211 = vld [vmem:[%s192 + $0x30] sm:$0xf]
      %v212 = vld [vmem:[%s192 + $0x34] sm:$0xf]
      %v213 = vld [vmem:[%s192 + $0x38] sm:$0xf]
      %v214 = vld [vmem:[%s192 + $0x3c] sm:$0xf]
      %v215 = vld [vmem:[%s192 + $0x40] sm:$0xf]
      %v216 = vld [vmem:[%s192 + $0x44] sm:$0xf]
      %v217 = vld [vmem:[%s192 + $0x48] sm:$0xf]
      %v218 = vld [vmem:[%s192 + $0x4c] sm:$0xf]
      %v219 = vld [vmem:[%s192 + $0x50] sm:$0xf]
      %v220 = vld [vmem:[%s192 + $0x54] sm:$0xf]
      %v221 = vld [vmem:[%s192 + $0x58] sm:$0xf]
      %v222 = vld [vmem:[%s192 + $0x5c] sm:$0xf]
      %v223 = vld [vmem:[%s192 + $0x60] sm:$0xf]
      %v224 = vld [vmem:[%s192 + $0x64] sm:$0xf]
      %v225 = vld [vmem:[%s192 + $0x68] sm:$0xf]
      %v226 = vld [vmem:[%s192 + $0x6c] sm:$0xf]
      %v227 = vld [vmem:[%s192 + $0x70] sm:$0xf]
      %v228 = vld [vmem:[%s192 + $0x74] sm:$0xf]
      %v229 = vld [vmem:[%s192 + $0x78] sm:$0xf]
      %v230 = vld [vmem:[%s192 + $0x7c] sm:$0xf]
      %v231 = vld [vmem:[%s192 + $0x80] sm:$0xf]
      %v232 = vld [vmem:[%s192 + $0x84] sm:$0xf]
      %v233 = vld [vmem:[%s192 + $0x88] sm:$0xf]
      %v234 = vld [vmem:[%s192 + $0x8c] sm:$0xf]
      %v235 = vld [vmem:[%s192 + $0x90] sm:$0xf]
      %v236 = vld [vmem:[%s192 + $0x94] sm:$0xf]
      %v237 = vld [vmem:[%s192 + $0x98] sm:$0xf]
      %v238 = vld [vmem:[%s192 + $0x9c] sm:$0xf]
      %v239 = vld [vmem:[%s192 + $0xa0] sm:$0xf]
      %v240 = vld [vmem:[%s192 + $0xa4] sm:$0xf]
      %v241 = vld [vmem:[%s192 + $0xa8] sm:$0xf]
      %v242 = vld [vmem:[%s192 + $0xac] sm:$0xf]
      %v243 = vld [vmem:[%s192 + $0xb0] sm:$0xf]
      %v244 = vld [vmem:[%s192 + $0xb4] sm:$0xf]
      %v245 = vld [vmem:[%s192 + $0xb8] sm:$0xf]
      %v246 = vld [vmem:[%s192 + $0xbc] sm:$0xf]
      %v247 = vld [vmem:[%s192 + $0xc0] sm:$0xf]
      %v248 = vld [vmem:[%s192 + $0xc4] sm:$0xf]
      %v249 = vld [vmem:[%s192 + $0xc8] sm:$0xf]
      %v250 = vld [vmem:[%s192 + $0xcc] sm:$0xf]
      %v251 = vld [vmem:[%s192 + $0xd0] sm:$0xf]
      %v252 = vld [vmem:[%s192 + $0xd4] sm:$0xf]
      %v253 = vld [vmem:[%s192 + $0xd8] sm:$0xf]
      %v254 = vld [vmem:[%s192 + $0xdc] sm:$0xf]
      %v255 = vld [vmem:[%s192 + $0xe0] sm:$0xf]
      %v256 = vld [vmem:[%s192 + $0xe4] sm:$0xf]
      %v257 = vld [vmem:[%s192 + $0xe8] sm:$0xf]
      %v258 = vld [vmem:[%s192 + $0xec] sm:$0xf]
      %v259 = vld [vmem:[%s192 + $0xf0] sm:$0xf]
      %v260 = vld [vmem:[%s192 + $0xf4] sm:$0xf]
      %v261 = vld [vmem:[%s192 + $0xf8] sm:$0xf]
      %v262 = vld [vmem:[%s192 + $0xfc] sm:$0xf]
      %v263 = vld [vmem:[%s192 + $0x100] sm:$0xf]
      %v264 = vld [vmem:[%s192 + $0x104] sm:$0xf]
      %v265 = vld [vmem:[%s192 + $0x108] sm:$0xf]
      %v266 = vld [vmem:[%s192 + $0x10c] sm:$0xf]
      %v267 = vld [vmem:[%s192 + $0x110] sm:$0xf]
      %v268 = vld [vmem:[%s192 + $0x114] sm:$0xf]
      %v269 = vld [vmem:[%s192 + $0x118] sm:$0xf]
      %v270 = vld [vmem:[%s192 + $0x11c] sm:$0xf]
      %v271 = vld [vmem:[%s192 + $0x120] sm:$0xf]
      %v272 = vld [vmem:[%s192 + $0x124] sm:$0xf]
      %v273 = vld [vmem:[%s192 + $0x128] sm:$0xf]
      %v274 = vld [vmem:[%s192 + $0x12c] sm:$0xf]
      %v275 = vld [vmem:[%s192 + $0x130] sm:$0xf]
      %v276 = vld [vmem:[%s192 + $0x134] sm:$0xf]
      %v277 = vld [vmem:[%s192 + $0x138] sm:$0xf]
      %v278 = vld [vmem:[%s192 + $0x13c] sm:$0xf]
      %v279 = vld [vmem:[%s192 + $0x140] sm:$0xf]
      %v280 = vld [vmem:[%s192 + $0x144] sm:$0xf]
      %v281 = vld [vmem:[%s192 + $0x148] sm:$0xf]
      %v282 = vld [vmem:[%s192 + $0x14c] sm:$0xf]
      %v283 = vld [vmem:[%s192 + $0x150] sm:$0xf]
      %v284 = vld [vmem:[%s192 + $0x154] sm:$0xf]
      %v285 = vld [vmem:[%s192 + $0x158] sm:$0xf]
      %v286 = vld [vmem:[%s192 + $0x15c] sm:$0xf]
      %v287 = vld [vmem:[%s192 + $0x160] sm:$0xf]
      %v288 = vld [vmem:[%s192 + $0x164] sm:$0xf]
      %v289 = vld [vmem:[%s192 + $0x168] sm:$0xf]
      %v290 = vld [vmem:[%s192 + $0x16c] sm:$0xf]
      %v291 = vld [vmem:[%s192 + $0x170] sm:$0xf]
      %v292 = vld [vmem:[%s192 + $0x174] sm:$0xf]
      %v293 = vld [vmem:[%s192 + $0x178] sm:$0xf]
      %v294 = vld [vmem:[%s192 + $0x17c] sm:$0xf]
      %v295 = vld [vmem:[%s192 + $0x180] sm:$0xf]
      %v296 = vld [vmem:[%s192 + $0x184] sm:$0xf]
      %v297 = vld [vmem:[%s192 + $0x188] sm:$0xf]
      %v298 = vld [vmem:[%s192 + $0x18c] sm:$0xf]
      %v299 = vld [vmem:[%s192 + $0x190] sm:$0xf]
      %v300 = vld [vmem:[%s192 + $0x194] sm:$0xf]
      %v301 = vld [vmem:[%s192 + $0x198] sm:$0xf]
      %v302 = vld [vmem:[%s192 + $0x19c] sm:$0xf]
      %v303 = vld [vmem:[%s192 + $0x1a0] sm:$0xf]
      %v304 = vld [vmem:[%s192 + $0x1a4] sm:$0xf]
      %v305 = vld [vmem:[%s192 + $0x1a8] sm:$0xf]
      %v306 = vld [vmem:[%s192 + $0x1ac] sm:$0xf]
      %v307 = vld [vmem:[%s192 + $0x1b0] sm:$0xf]
      %v308 = vld [vmem:[%s192 + $0x1b4] sm:$0xf]
      %v309 = vld [vmem:[%s192 + $0x1b8] sm:$0xf]
      %v310 = vld [vmem:[%s192 + $0x1bc] sm:$0xf]
      %v311 = vld [vmem:[%s192 + $0x1c0] sm:$0x3]
      %v312 = vld [vmem:[%s1] sm:$0xf]
      %v313 = vld [vmem:[%s1 + $0x4] sm:$0xf]
      %v314 = vld [vmem:[%s1 + $0x8] sm:$0xf]
      %v315 = vld [vmem:[%s1 + $0xc] sm:$0x1]
      %v316 = vld [vmem:[%s2] sm:$0x1]
      %v318 = vperm.slane %v316, 0
      %v433 = vunpack.c.l.b16 %v199
      %v434 = vunpack.c.l.b16 %v200
      %v435 = vunpack.c.l.b16 %v201
      %v436 = vunpack.c.l.b16 %v202
      %v437 = vunpack.c.l.b16 %v203
      %v438 = vunpack.c.l.b16 %v204
      %v439 = vunpack.c.l.b16 %v205
      %v440 = vunpack.c.l.b16 %v206
      %v441 = vunpack.c.l.b16 %v207
      %v442 = vunpack.c.l.b16 %v208
      %v443 = vunpack.c.l.b16 %v209
      %v444 = vunpack.c.l.b16 %v210
      %v445 = vunpack.c.l.b16 %v211
      %v446 = vunpack.c.l.b16 %v212
      %v447 = vunpack.c.l.b16 %v213
      %v448 = vunpack.c.l.b16 %v214
      %v449 = vunpack.c.l.b16 %v215
      %v450 = vunpack.c.l.b16 %v216
      %v451 = vunpack.c.l.b16 %v217
      %v452 = vunpack.c.l.b16 %v218
      %v453 = vunpack.c.l.b16 %v219
      %v454 = vunpack.c.l.b16 %v220
      %v455 = vunpack.c.l.b16 %v221
      %v456 = vunpack.c.l.b16 %v222
      %v457 = vunpack.c.l.b16 %v223
      %v458 = vunpack.c.l.b16 %v224
      %v459 = vunpack.c.l.b16 %v225
      %v460 = vunpack.c.l.b16 %v226
      %v461 = vunpack.c.l.b16 %v227
      %v462 = vunpack.c.l.b16 %v228
      %v463 = vunpack.c.l.b16 %v229
      %v464 = vunpack.c.l.b16 %v230
      %v465 = vunpack.c.l.b16 %v231
      %v466 = vunpack.c.l.b16 %v232
      %v467 = vunpack.c.l.b16 %v233
      %v468 = vunpack.c.l.b16 %v234
      %v469 = vunpack.c.l.b16 %v235
      %v470 = vunpack.c.l.b16 %v236
      %v471 = vunpack.c.l.b16 %v237
      %v472 = vunpack.c.l.b16 %v238
      %v473 = vunpack.c.l.b16 %v239
      %v474 = vunpack.c.l.b16 %v240
      %v475 = vunpack.c.l.b16 %v241
      %v476 = vunpack.c.l.b16 %v242
      %v477 = vunpack.c.l.b16 %v243
      %v478 = vunpack.c.l.b16 %v244
      %v479 = vunpack.c.l.b16 %v245
      %v480 = vunpack.c.l.b16 %v246
      %v481 = vunpack.c.l.b16 %v247
      %v482 = vunpack.c.l.b16 %v248
      %v483 = vunpack.c.l.b16 %v249
      %v484 = vunpack.c.l.b16 %v250
      %v485 = vunpack.c.l.b16 %v251
      %v486 = vunpack.c.l.b16 %v252
      %v487 = vunpack.c.l.b16 %v253
      %v488 = vunpack.c.l.b16 %v254
      %v489 = vunpack.c.l.b16 %v255
      %v490 = vunpack.c.l.b16 %v256
      %v491 = vunpack.c.l.b16 %v257
      %v492 = vunpack.c.l.b16 %v258
      %v493 = vunpack.c.l.b16 %v259
      %v494 = vunpack.c.l.b16 %v260
      %v495 = vunpack.c.l.b16 %v261
      %v496 = vunpack.c.l.b16 %v262
      %v497 = vunpack.c.l.b16 %v263
      %v498 = vunpack.c.l.b16 %v264
      %v499 = vunpack.c.l.b16 %v265
      %v500 = vunpack.c.l.b16 %v266
      %v501 = vunpack.c.l.b16 %v267
      %v502 = vunpack.c.l.b16 %v268
      %v503 = vunpack.c.l.b16 %v269
      %v504 = vunpack.c.l.b16 %v270
      %v505 = vunpack.c.l.b16 %v271
      %v506 = vunpack.c.l.b16 %v272
      %v507 = vunpack.c.l.b16 %v273
      %v508 = vunpack.c.l.b16 %v274
      %v509 = vunpack.c.l.b16 %v275
      %v510 = vunpack.c.l.b16 %v276
      %v511 = vunpack.c.l.b16 %v277
      %v512 = vunpack.c.l.b16 %v278
      %v513 = vunpack.c.l.b16 %v279
      %v514 = vunpack.c.l.b16 %v280
      %v515 = vunpack.c.l.b16 %v281
      %v516 = vunpack.c.l.b16 %v282
      %v517 = vunpack.c.l.b16 %v283
      %v518 = vunpack.c.l.b16 %v284
      %v519 = vunpack.c.l.b16 %v285
      %v520 = vunpack.c.l.b16 %v286
      %v521 = vunpack.c.l.b16 %v287
      %v522 = vunpack.c.l.b16 %v288
      %v523 = vunpack.c.l.b16 %v289
      %v524 = vunpack.c.l.b16 %v290
      %v525 = vunpack.c.l.b16 %v291
      %v526 = vunpack.c.l.b16 %v292
      %v527 = vunpack.c.l.b16 %v293
      %v528 = vunpack.c.l.b16 %v294
      %v529 = vunpack.c.l.b16 %v295
      %v530 = vunpack.c.l.b16 %v296
      %v531 = vunpack.c.l.b16 %v297
      %v532 = vunpack.c.l.b16 %v298
      %v533 = vunpack.c.l.b16 %v299
      %v534 = vunpack.c.l.b16 %v300
      %v535 = vunpack.c.l.b16 %v301
      %v536 = vunpack.c.l.b16 %v302
      %v537 = vunpack.c.l.b16 %v303
      %v538 = vunpack.c.l.b16 %v304
      %v539 = vunpack.c.l.b16 %v305
      %v540 = vunpack.c.l.b16 %v306
      %v541 = vunpack.c.l.b16 %v307
      %v542 = vunpack.c.l.b16 %v308
      %v543 = vunpack.c.l.b16 %v309
      %v544 = vunpack.c.l.b16 %v310
      %v545 = vunpack.c.l.b16 %v311
      %v546 = vpack.c.b16 %v434, %v433
      %v547 = vpack.c.b16 %v436, %v435
      %v548 = vpack.c.b16 %v438, %v437
      %v549 = vpack.c.b16 %v440, %v439
      %v550 = vpack.c.b16 %v442, %v441
      %v551 = vpack.c.b16 %v444, %v443
      %v552 = vpack.c.b16 %v446, %v445
      %v553 = vpack.c.b16 %v448, %v447
      %v554 = vpack.c.b16 %v450, %v449
      %v555 = vpack.c.b16 %v452, %v451
      %v556 = vpack.c.b16 %v454, %v453
      %v557 = vpack.c.b16 %v456, %v455
      %v558 = vpack.c.b16 %v458, %v457
      %v559 = vpack.c.b16 %v460, %v459
      %v560 = vpack.c.b16 %v462, %v461
      %v561 = vpack.c.b16 %v464, %v463
      %v562 = vpack.c.b16 %v466, %v465
      %v563 = vpack.c.b16 %v468, %v467
      %v564 = vpack.c.b16 %v470, %v469
      %v565 = vpack.c.b16 %v472, %v471
      %v566 = vpack.c.b16 %v474, %v473
      %v567 = vpack.c.b16 %v476, %v475
      %v568 = vpack.c.b16 %v478, %v477
      %v569 = vpack.c.b16 %v480, %v479
      %v570 = vpack.c.b16 %v482, %v481
      %v571 = vpack.c.b16 %v484, %v483
      %v572 = vpack.c.b16 %v486, %v485
      %v573 = vpack.c.b16 %v488, %v487
      %v574 = vpack.c.b16 %v490, %v489
      %v575 = vpack.c.b16 %v492, %v491
      %v576 = vpack.c.b16 %v494, %v493
      %v577 = vpack.c.b16 %v496, %v495
      %v578 = vpack.c.b16 %v498, %v497
      %v579 = vpack.c.b16 %v500, %v499
      %v580 = vpack.c.b16 %v502, %v501
      %v581 = vpack.c.b16 %v504, %v503
      %v582 = vpack.c.b16 %v506, %v505
      %v583 = vpack.c.b16 %v508, %v507
      %v584 = vpack.c.b16 %v510, %v509
      %v585 = vpack.c.b16 %v512, %v511
      %v586 = vpack.c.b16 %v514, %v513
      %v587 = vpack.c.b16 %v516, %v515
      %v588 = vpack.c.b16 %v518, %v517
      %v589 = vpack.c.b16 %v520, %v519
      %v590 = vpack.c.b16 %v522, %v521
      %v591 = vpack.c.b16 %v524, %v523
      %v592 = vpack.c.b16 %v526, %v525
      %v593 = vpack.c.b16 %v528, %v527
      %v594 = vpack.c.b16 %v530, %v529
      %v595 = vpack.c.b16 %v532, %v531
      %v596 = vpack.c.b16 %v534, %v533
      %v597 = vpack.c.b16 %v536, %v535
      %v598 = vpack.c.b16 %v538, %v537
      %v599 = vpack.c.b16 %v540, %v539
      %v600 = vpack.c.b16 %v542, %v541
      %v601 = vpack.c.b16 %v544, %v543
      %v602 = vpack.c.b16 %v545, %v545
      %v607 = vunpack.c.l.b16 %v312
      %v608 = vunpack.c.l.b16 %v313
      %v609 = vunpack.c.l.b16 %v314
      %v610 = vunpack.c.l.b16 %v315
      %v611 = vpack.c.b16 %v608, %v607
      %v612 = vpack.c.b16 %v610, %v609
      %vm614 = vcmask 203776
      %v616 = vsel %vm614, %v546, 0
      %v619 = vsel %vm614, %v547, 0
      %v622 = vsel %vm614, %v548, 0
      %v625 = vsel %vm614, %v549, 0
      %v628 = vsel %vm614, %v550, 0
      %v631 = vsel %vm614, %v551, 0
      %v634 = vsel %vm614, %v552, 0
      %v637 = vsel %vm614, %v553, 0
      %v640 = vsel %vm614, %v554, 0
      %v643 = vsel %vm614, %v555, 0
      %v646 = vsel %vm614, %v556, 0
      %v649 = vsel %vm614, %v557, 0
      %v652 = vsel %vm614, %v558, 0
      %v655 = vsel %vm614, %v559, 0
      %v658 = vsel %vm614, %v560, 0
      %v661 = vsel %vm614, %v561, 0
      %v664 = vsel %vm614, %v562, 0
      %v667 = vsel %vm614, %v563, 0
      %v670 = vsel %vm614, %v564, 0
      %v673 = vsel %vm614, %v565, 0
      %v676 = vsel %vm614, %v566, 0
      %v679 = vsel %vm614, %v567, 0
      %v682 = vsel %vm614, %v568, 0
      %v685 = vsel %vm614, %v569, 0
      %v688 = vsel %vm614, %v570, 0
      %v691 = vsel %vm614, %v571, 0
      %v694 = vsel %vm614, %v572, 0
      %v697 = vsel %vm614, %v573, 0
      %v700 = vsel %vm614, %v574, 0
      %v703 = vsel %vm614, %v575, 0
      %v706 = vsel %vm614, %v576, 0
      %v709 = vsel %vm614, %v577, 0
      %v712 = vsel %vm614, %v578, 0
      %v715 = vsel %vm614, %v579, 0
      %v718 = vsel %vm614, %v580, 0
      %v721 = vsel %vm614, %v581, 0
      %v724 = vsel %vm614, %v582, 0
      %v727 = vsel %vm614, %v583, 0
      %v730 = vsel %vm614, %v584, 0
      %v733 = vsel %vm614, %v585, 0
      %v736 = vsel %vm614, %v586, 0
      %v739 = vsel %vm614, %v587, 0
      %v742 = vsel %vm614, %v588, 0
      %v745 = vsel %vm614, %v589, 0
      %v748 = vsel %vm614, %v590, 0
      %v751 = vsel %vm614, %v591, 0
      %v754 = vsel %vm614, %v592, 0
      %v757 = vsel %vm614, %v593, 0
      %v760 = vsel %vm614, %v594, 0
      %v763 = vsel %vm614, %v595, 0
      %v766 = vsel %vm614, %v596, 0
      %v769 = vsel %vm614, %v597, 0
      %v772 = vsel %vm614, %v598, 0
      %v775 = vsel %vm614, %v599, 0
      %v778 = vsel %vm614, %v600, 0
      %v781 = vsel %vm614, %v601, 0
      %v784 = vsel %vm614, %v602, 0
      %vm786 = vcmask 1043456
      %vm787 = vcmask 1044480
      %v788 = vsel %vm786, 4294967295, 65535
      %v789 = vsel %vm787, %v788, 0
      %v791 = vand.u32 %v612, %v789
      %793 = vmatpush.bf16.msra.mxu0 0
      %794 = vmatpush.bf16.msra.mxu0 0
      %795 = vmatpush.bf16.msra.mxu0 0
      %796 = vmatpush.bf16.msra.mxu0 0
      %797 = vmatpush.bf16.msra.mxu0 0
      %798 = vmatpush.bf16.msra.mxu0 0
      %799 = vmatpush.bf16.msra.mxu0 %v791
      %800 = vmatpush.bf16.msra.mxu0 %v611
      %801 = vmatmul.bf16.gmra.mxu0 %v616
      %v802 = vpop.f32.mrf.mxu0
      %v803 = vadd.f32 %v318, %v802
      %v804 = vpop.f32.mrf.mxu0
      %v805 = vadd.f32 %v318, %v804
      %806 = vmatmul.bf16.gmra.mxu0 %v619
      %v807 = vpop.f32.mrf.mxu0
      %v808 = vadd.f32 %v318, %v807
      %v809 = vpop.f32.mrf.mxu0
      %v810 = vadd.f32 %v318, %v809
      %811 = vmatmul.bf16.gmra.mxu0 %v622
      %v812 = vpop.f32.mrf.mxu0
      %v813 = vadd.f32 %v318, %v812
      %v814 = vpop.f32.mrf.mxu0
      %v815 = vadd.f32 %v318, %v814
      %816 = vmatmul.bf16.gmra.mxu0 %v625
      %v817 = vpop.f32.mrf.mxu0
      %v818 = vadd.f32 %v318, %v817
      %v819 = vpop.f32.mrf.mxu0
      %v820 = vadd.f32 %v318, %v819
      %821 = vmatmul.bf16.gmra.mxu0 %v628
      %v822 = vpop.f32.mrf.mxu0
      %v823 = vadd.f32 %v318, %v822
      %v824 = vpop.f32.mrf.mxu0
      %v825 = vadd.f32 %v318, %v824
      %826 = vmatmul.bf16.gmra.mxu0 %v631
      %v827 = vpop.f32.mrf.mxu0
      %v828 = vadd.f32 %v318, %v827
      %v829 = vpop.f32.mrf.mxu0
      %v830 = vadd.f32 %v318, %v829
      %831 = vmatmul.bf16.gmra.mxu0 %v634
      %v832 = vpop.f32.mrf.mxu0
      %v833 = vadd.f32 %v318, %v832
      %v834 = vpop.f32.mrf.mxu0
      %v835 = vadd.f32 %v318, %v834
      %836 = vmatmul.bf16.gmra.mxu0 %v637
      %v837 = vpop.f32.mrf.mxu0
      %v838 = vadd.f32 %v318, %v837
      %v839 = vpop.f32.mrf.mxu0
      %v840 = vadd.f32 %v318, %v839
      %841 = vmatmul.bf16.gmra.mxu0 %v640
      %v842 = vpop.f32.mrf.mxu0
      %v843 = vadd.f32 %v318, %v842
      %v844 = vpop.f32.mrf.mxu0
      %v845 = vadd.f32 %v318, %v844
      %846 = vmatmul.bf16.gmra.mxu0 %v643
      %v847 = vpop.f32.mrf.mxu0
      %v848 = vadd.f32 %v318, %v847
      %v849 = vpop.f32.mrf.mxu0
      %v850 = vadd.f32 %v318, %v849
      %851 = vmatmul.bf16.gmra.mxu0 %v646
      %v852 = vpop.f32.mrf.mxu0
      %v853 = vadd.f32 %v318, %v852
      %v854 = vpop.f32.mrf.mxu0
      %v855 = vadd.f32 %v318, %v854
      %856 = vmatmul.bf16.gmra.mxu0 %v649
      %v857 = vpop.f32.mrf.mxu0
      %v858 = vadd.f32 %v318, %v857
      %v859 = vpop.f32.mrf.mxu0
      %v860 = vadd.f32 %v318, %v859
      %861 = vmatmul.bf16.gmra.mxu0 %v652
      %v862 = vpop.f32.mrf.mxu0
      %v863 = vadd.f32 %v318, %v862
      %v864 = vpop.f32.mrf.mxu0
      %v865 = vadd.f32 %v318, %v864
      %866 = vmatmul.bf16.gmra.mxu0 %v655
      %v867 = vpop.f32.mrf.mxu0
      %v868 = vadd.f32 %v318, %v867
      %v869 = vpop.f32.mrf.mxu0
      %v870 = vadd.f32 %v318, %v869
      %871 = vmatmul.bf16.gmra.mxu0 %v658
      %v872 = vpop.f32.mrf.mxu0
      %v873 = vadd.f32 %v318, %v872
      %v874 = vpop.f32.mrf.mxu0
      %v875 = vadd.f32 %v318, %v874
      %876 = vmatmul.bf16.gmra.mxu0 %v661
      %v877 = vpop.f32.mrf.mxu0
      %v878 = vadd.f32 %v318, %v877
      %v879 = vpop.f32.mrf.mxu0
      %v880 = vadd.f32 %v318, %v879
      %881 = vmatmul.bf16.gmra.mxu0 %v664
      %v882 = vpop.f32.mrf.mxu0
      %v883 = vadd.f32 %v318, %v882
      %v884 = vpop.f32.mrf.mxu0
      %v885 = vadd.f32 %v318, %v884
      %886 = vmatmul.bf16.gmra.mxu0 %v667
      %v887 = vpop.f32.mrf.mxu0
      %v888 = vadd.f32 %v318, %v887
      %v889 = vpop.f32.mrf.mxu0
      %v890 = vadd.f32 %v318, %v889
      %891 = vmatmul.bf16.gmra.mxu0 %v670
      %v892 = vpop.f32.mrf.mxu0
      %v893 = vadd.f32 %v318, %v892
      %v894 = vpop.f32.mrf.mxu0
      %v895 = vadd.f32 %v318, %v894
      %896 = vmatmul.bf16.gmra.mxu0 %v673
      %v897 = vpop.f32.mrf.mxu0
      %v898 = vadd.f32 %v318, %v897
      %v899 = vpop.f32.mrf.mxu0
      %v900 = vadd.f32 %v318, %v899
      %901 = vmatmul.bf16.gmra.mxu0 %v676
      %v902 = vpop.f32.mrf.mxu0
      %v903 = vadd.f32 %v318, %v902
      %v904 = vpop.f32.mrf.mxu0
      %v905 = vadd.f32 %v318, %v904
      %906 = vmatmul.bf16.gmra.mxu0 %v679
      %v907 = vpop.f32.mrf.mxu0
      %v908 = vadd.f32 %v318, %v907
      %v909 = vpop.f32.mrf.mxu0
      %v910 = vadd.f32 %v318, %v909
      %911 = vmatmul.bf16.gmra.mxu0 %v682
      %v912 = vpop.f32.mrf.mxu0
      %v913 = vadd.f32 %v318, %v912
      %v914 = vpop.f32.mrf.mxu0
      %v915 = vadd.f32 %v318, %v914
      %916 = vmatmul.bf16.gmra.mxu0 %v685
      %v917 = vpop.f32.mrf.mxu0
      %v918 = vadd.f32 %v318, %v917
      %v919 = vpop.f32.mrf.mxu0
      %v920 = vadd.f32 %v318, %v919
      %921 = vmatmul.bf16.gmra.mxu0 %v688
      %v922 = vpop.f32.mrf.mxu0
      %v923 = vadd.f32 %v318, %v922
      %v924 = vpop.f32.mrf.mxu0
      %v925 = vadd.f32 %v318, %v924
      %926 = vmatmul.bf16.gmra.mxu0 %v691
      %v927 = vpop.f32.mrf.mxu0
      %v928 = vadd.f32 %v318, %v927
      %v929 = vpop.f32.mrf.mxu0
      %v930 = vadd.f32 %v318, %v929
      %931 = vmatmul.bf16.gmra.mxu0 %v694
      %v932 = vpop.f32.mrf.mxu0
      %v933 = vadd.f32 %v318, %v932
      %v934 = vpop.f32.mrf.mxu0
      %v935 = vadd.f32 %v318, %v934
      %936 = vmatmul.bf16.gmra.mxu0 %v697
      %v937 = vpop.f32.mrf.mxu0
      %v938 = vadd.f32 %v318, %v937
      %v939 = vpop.f32.mrf.mxu0
      %v940 = vadd.f32 %v318, %v939
      %941 = vmatmul.bf16.gmra.mxu0 %v700
      %v942 = vpop.f32.mrf.mxu0
      %v943 = vadd.f32 %v318, %v942
      %v944 = vpop.f32.mrf.mxu0
      %v945 = vadd.f32 %v318, %v944
      %946 = vmatmul.bf16.gmra.mxu0 %v703
      %v947 = vpop.f32.mrf.mxu0
      %v948 = vadd.f32 %v318, %v947
      %v949 = vpop.f32.mrf.mxu0
      %v950 = vadd.f32 %v318, %v949
      %951 = vmatmul.bf16.gmra.mxu0 %v706
      %v952 = vpop.f32.mrf.mxu0
      %v953 = vadd.f32 %v318, %v952
      %v954 = vpop.f32.mrf.mxu0
      %v955 = vadd.f32 %v318, %v954
      %956 = vmatmul.bf16.gmra.mxu0 %v709
      %v957 = vpop.f32.mrf.mxu0
      %v958 = vadd.f32 %v318, %v957
      %v959 = vpop.f32.mrf.mxu0
      %v960 = vadd.f32 %v318, %v959
      %961 = vmatmul.bf16.gmra.mxu0 %v712
      %v962 = vpop.f32.mrf.mxu0
      %v963 = vadd.f32 %v318, %v962
      %v964 = vpop.f32.mrf.mxu0
      %v965 = vadd.f32 %v318, %v964
      %966 = vmatmul.bf16.gmra.mxu0 %v715
      %v967 = vpop.f32.mrf.mxu0
      %v968 = vadd.f32 %v318, %v967
      %v969 = vpop.f32.mrf.mxu0
      %v970 = vadd.f32 %v318, %v969
      %971 = vmatmul.bf16.gmra.mxu0 %v718
      %v972 = vpop.f32.mrf.mxu0
      %v973 = vadd.f32 %v318, %v972
      %v974 = vpop.f32.mrf.mxu0
      %v975 = vadd.f32 %v318, %v974
      %976 = vmatmul.bf16.gmra.mxu0 %v721
      %v977 = vpop.f32.mrf.mxu0
      %v978 = vadd.f32 %v318, %v977
      %v979 = vpop.f32.mrf.mxu0
      %v980 = vadd.f32 %v318, %v979
      %981 = vmatmul.bf16.gmra.mxu0 %v724
      %v982 = vpop.f32.mrf.mxu0
      %v983 = vadd.f32 %v318, %v982
      %v984 = vpop.f32.mrf.mxu0
      %v985 = vadd.f32 %v318, %v984
      %986 = vmatmul.bf16.gmra.mxu0 %v727
      %v987 = vpop.f32.mrf.mxu0
      %v988 = vadd.f32 %v318, %v987
      %v989 = vpop.f32.mrf.mxu0
      %v990 = vadd.f32 %v318, %v989
      %991 = vmatmul.bf16.gmra.mxu0 %v730
      %v992 = vpop.f32.mrf.mxu0
      %v993 = vadd.f32 %v318, %v992
      %v994 = vpop.f32.mrf.mxu0
      %v995 = vadd.f32 %v318, %v994
      %996 = vmatmul.bf16.gmra.mxu0 %v733
      %v997 = vpop.f32.mrf.mxu0
      %v998 = vadd.f32 %v318, %v997
      %v999 = vpop.f32.mrf.mxu0
      %v1000 = vadd.f32 %v318, %v999
      %1001 = vmatmul.bf16.gmra.mxu0 %v736
      %v1002 = vpop.f32.mrf.mxu0
      %v1003 = vadd.f32 %v318, %v1002
      %v1004 = vpop.f32.mrf.mxu0
      %v1005 = vadd.f32 %v318, %v1004
      %1006 = vmatmul.bf16.gmra.mxu0 %v739
      %v1007 = vpop.f32.mrf.mxu0
      %v1008 = vadd.f32 %v318, %v1007
      %v1009 = vpop.f32.mrf.mxu0
      %v1010 = vadd.f32 %v318, %v1009
      %1011 = vmatmul.bf16.gmra.mxu0 %v742
      %v1012 = vpop.f32.mrf.mxu0
      %v1013 = vadd.f32 %v318, %v1012
      %v1014 = vpop.f32.mrf.mxu0
      %v1015 = vadd.f32 %v318, %v1014
      %1016 = vmatmul.bf16.gmra.mxu0 %v745
      %v1017 = vpop.f32.mrf.mxu0
      %v1018 = vadd.f32 %v318, %v1017
      %v1019 = vpop.f32.mrf.mxu0
      %v1020 = vadd.f32 %v318, %v1019
      %1021 = vmatmul.bf16.gmra.mxu0 %v748
      %v1022 = vpop.f32.mrf.mxu0
      %v1023 = vadd.f32 %v318, %v1022
      %v1024 = vpop.f32.mrf.mxu0
      %v1025 = vadd.f32 %v318, %v1024
      %1026 = vmatmul.bf16.gmra.mxu0 %v751
      %v1027 = vpop.f32.mrf.mxu0
      %v1028 = vadd.f32 %v318, %v1027
      %v1029 = vpop.f32.mrf.mxu0
      %v1030 = vadd.f32 %v318, %v1029
      %1031 = vmatmul.bf16.gmra.mxu0 %v754
      %v1032 = vpop.f32.mrf.mxu0
      %v1033 = vadd.f32 %v318, %v1032
      %v1034 = vpop.f32.mrf.mxu0
      %v1035 = vadd.f32 %v318, %v1034
      %1036 = vmatmul.bf16.gmra.mxu0 %v757
      %v1037 = vpop.f32.mrf.mxu0
      %v1038 = vadd.f32 %v318, %v1037
      %v1039 = vpop.f32.mrf.mxu0
      %v1040 = vadd.f32 %v318, %v1039
      %1041 = vmatmul.bf16.gmra.mxu0 %v760
      %v1042 = vpop.f32.mrf.mxu0
      %v1043 = vadd.f32 %v318, %v1042
      %v1044 = vpop.f32.mrf.mxu0
      %v1045 = vadd.f32 %v318, %v1044
      %1046 = vmatmul.bf16.gmra.mxu0 %v763
      %v1047 = vpop.f32.mrf.mxu0
      %v1048 = vadd.f32 %v318, %v1047
      %v1049 = vpop.f32.mrf.mxu0
      %v1050 = vadd.f32 %v318, %v1049
      %1051 = vmatmul.bf16.gmra.mxu0 %v766
      %v1052 = vpop.f32.mrf.mxu0
      %v1053 = vadd.f32 %v318, %v1052
      %v1054 = vpop.f32.mrf.mxu0
      %v1055 = vadd.f32 %v318, %v1054
      %1056 = vmatmul.bf16.gmra.mxu0 %v769
      %v1057 = vpop.f32.mrf.mxu0
      %v1058 = vadd.f32 %v318, %v1057
      %v1059 = vpop.f32.mrf.mxu0
      %v1060 = vadd.f32 %v318, %v1059
      %1061 = vmatmul.bf16.gmra.mxu0 %v772
      %v1062 = vpop.f32.mrf.mxu0
      %v1063 = vadd.f32 %v318, %v1062
      %v1064 = vpop.f32.mrf.mxu0
      %v1065 = vadd.f32 %v318, %v1064
      %1066 = vmatmul.bf16.gmra.mxu0 %v775
      %v1067 = vpop.f32.mrf.mxu0
      %v1068 = vadd.f32 %v318, %v1067
      %v1069 = vpop.f32.mrf.mxu0
      %v1070 = vadd.f32 %v318, %v1069
      %1071 = vmatmul.bf16.gmra.mxu0 %v778
      %v1072 = vpop.f32.mrf.mxu0
      %v1073 = vadd.f32 %v318, %v1072
      %v1074 = vpop.f32.mrf.mxu0
      %v1075 = vadd.f32 %v318, %v1074
      %1076 = vmatmul.bf16.gmra.mxu0 %v781
      %v1077 = vpop.f32.mrf.mxu0
      %v1078 = vadd.f32 %v318, %v1077
      %v1079 = vpop.f32.mrf.mxu0
      %v1080 = vadd.f32 %v318, %v1079
      %1081 = vmatmul.bf16.gmra.mxu0 %v784
      %v1082 = vpop.f32.mrf.mxu0
      %v1083 = vadd.f32 %v318, %v1082
      %v1084 = vpop.f32.mrf.mxu0
      %1085 = vdwg.mxu0
      %v1086 = vmax.f32 %v803, 0.0
      %v1087 = vmax.f32 %v805, 0.0
      %v1088 = vmax.f32 %v808, 0.0
      %v1089 = vmax.f32 %v810, 0.0
      %v1090 = vmax.f32 %v813, 0.0
      %v1091 = vmax.f32 %v815, 0.0
      %v1092 = vmax.f32 %v818, 0.0
      %v1093 = vmax.f32 %v820, 0.0
      %v1094 = vmax.f32 %v823, 0.0
      %v1095 = vmax.f32 %v825, 0.0
      %v1096 = vmax.f32 %v828, 0.0
      %v1097 = vmax.f32 %v830, 0.0
      %v1098 = vmax.f32 %v833, 0.0
      %v1099 = vmax.f32 %v835, 0.0
      %v1100 = vmax.f32 %v838, 0.0
      %v1101 = vmax.f32 %v840, 0.0
      %v1102 = vmax.f32 %v843, 0.0
      %v1103 = vmax.f32 %v845, 0.0
      %v1104 = vmax.f32 %v848, 0.0
      %v1105 = vmax.f32 %v850, 0.0
      %v1106 = vmax.f32 %v853, 0.0
      %v1107 = vmax.f32 %v855, 0.0
      %v1108 = vmax.f32 %v858, 0.0
      %v1109 = vmax.f32 %v860, 0.0
      %v1110 = vmax.f32 %v863, 0.0
      %v1111 = vmax.f32 %v865, 0.0
      %v1112 = vmax.f32 %v868, 0.0
      %v1113 = vmax.f32 %v870, 0.0
      %v1114 = vmax.f32 %v873, 0.0
      %v1115 = vmax.f32 %v875, 0.0
      %v1116 = vmax.f32 %v878, 0.0
      %v1117 = vmax.f32 %v880, 0.0
      %v1118 = vmax.f32 %v883, 0.0
      %v1119 = vmax.f32 %v885, 0.0
      %v1120 = vmax.f32 %v888, 0.0
      %v1121 = vmax.f32 %v890, 0.0
      %v1122 = vmax.f32 %v893, 0.0
      %v1123 = vmax.f32 %v895, 0.0
      %v1124 = vmax.f32 %v898, 0.0
      %v1125 = vmax.f32 %v900, 0.0
      %v1126 = vmax.f32 %v903, 0.0
      %v1127 = vmax.f32 %v905, 0.0
      %v1128 = vmax.f32 %v908, 0.0
      %v1129 = vmax.f32 %v910, 0.0
      %v1130 = vmax.f32 %v913, 0.0
      %v1131 = vmax.f32 %v915, 0.0
      %v1132 = vmax.f32 %v918, 0.0
      %v1133 = vmax.f32 %v920, 0.0
      %v1134 = vmax.f32 %v923, 0.0
      %v1135 = vmax.f32 %v925, 0.0
      %v1136 = vmax.f32 %v928, 0.0
      %v1137 = vmax.f32 %v930, 0.0
      %v1138 = vmax.f32 %v933, 0.0
      %v1139 = vmax.f32 %v935, 0.0
      %v1140 = vmax.f32 %v938, 0.0
      %v1141 = vmax.f32 %v940, 0.0
      %v1142 = vmax.f32 %v943, 0.0
      %v1143 = vmax.f32 %v945, 0.0
      %v1144 = vmax.f32 %v948, 0.0
      %v1145 = vmax.f32 %v950, 0.0
      %v1146 = vmax.f32 %v953, 0.0
      %v1147 = vmax.f32 %v955, 0.0
      %v1148 = vmax.f32 %v958, 0.0
      %v1149 = vmax.f32 %v960, 0.0
      %v1150 = vmax.f32 %v963, 0.0
      %v1151 = vmax.f32 %v965, 0.0
      %v1152 = vmax.f32 %v968, 0.0
      %v1153 = vmax.f32 %v970, 0.0
      %v1154 = vmax.f32 %v973, 0.0
      %v1155 = vmax.f32 %v975, 0.0
      %v1156 = vmax.f32 %v978, 0.0
      %v1157 = vmax.f32 %v980, 0.0
      %v1158 = vmax.f32 %v983, 0.0
      %v1159 = vmax.f32 %v985, 0.0
      %v1160 = vmax.f32 %v988, 0.0
      %v1161 = vmax.f32 %v990, 0.0
      %v1162 = vmax.f32 %v993, 0.0
      %v1163 = vmax.f32 %v995, 0.0
      %v1164 = vmax.f32 %v998, 0.0
      %v1165 = vmax.f32 %v1000, 0.0
      %v1166 = vmax.f32 %v1003, 0.0
      %v1167 = vmax.f32 %v1005, 0.0
      %v1168 = vmax.f32 %v1008, 0.0
      %v1169 = vmax.f32 %v1010, 0.0
      %v1170 = vmax.f32 %v1013, 0.0
      %v1171 = vmax.f32 %v1015, 0.0
      %v1172 = vmax.f32 %v1018, 0.0
      %v1173 = vmax.f32 %v1020, 0.0
      %v1174 = vmax.f32 %v1023, 0.0
      %v1175 = vmax.f32 %v1025, 0.0
      %v1176 = vmax.f32 %v1028, 0.0
      %v1177 = vmax.f32 %v1030, 0.0
      %v1178 = vmax.f32 %v1033, 0.0
      %v1179 = vmax.f32 %v1035, 0.0
      %v1180 = vmax.f32 %v1038, 0.0
      %v1181 = vmax.f32 %v1040, 0.0
      %v1182 = vmax.f32 %v1043, 0.0
      %v1183 = vmax.f32 %v1045, 0.0
      %v1184 = vmax.f32 %v1048, 0.0
      %v1185 = vmax.f32 %v1050, 0.0
      %v1186 = vmax.f32 %v1053, 0.0
      %v1187 = vmax.f32 %v1055, 0.0
      %v1188 = vmax.f32 %v1058, 0.0
      %v1189 = vmax.f32 %v1060, 0.0
      %v1190 = vmax.f32 %v1063, 0.0
      %v1191 = vmax.f32 %v1065, 0.0
      %v1192 = vmax.f32 %v1068, 0.0
      %v1193 = vmax.f32 %v1070, 0.0
      %v1194 = vmax.f32 %v1073, 0.0
      %v1195 = vmax.f32 %v1075, 0.0
      %v1196 = vmax.f32 %v1078, 0.0
      %v1197 = vmax.f32 %v1080, 0.0
      %v1198 = vmax.f32 %v1083, 0.0
      %v1199 = vld [vmem:[%s3] sm:$0xff]
      %v1200 = vld [vmem:[%s3 + $0x8] sm:$0xff]
      %v1201 = vld [vmem:[%s3 + $0x10] sm:$0xff]
      %v1202 = vld [vmem:[%s3 + $0x18] sm:$0xff]
      %v1203 = vld [vmem:[%s3 + $0x20] sm:$0xff]
      %v1204 = vld [vmem:[%s3 + $0x28] sm:$0xff]
      %v1205 = vld [vmem:[%s3 + $0x30] sm:$0xff]
      %v1206 = vld [vmem:[%s3 + $0x38] sm:$0xff]
      %v1207 = vld [vmem:[%s3 + $0x40] sm:$0xff]
      %v1208 = vld [vmem:[%s3 + $0x48] sm:$0xff]
      %v1209 = vld [vmem:[%s3 + $0x50] sm:$0xff]
      %v1210 = vld [vmem:[%s3 + $0x58] sm:$0xff]
      %v1211 = vld [vmem:[%s3 + $0x60] sm:$0xff]
      %v1212 = vld [vmem:[%s3 + $0x68] sm:$0xff]
      %v1213 = vld [vmem:[%s3 + $0x70] sm:$0xff]
      %v1214 = vld [vmem:[%s3 + $0x78] sm:$0xff]
      %v1215 = vld [vmem:[%s3 + $0x80] sm:$0xff]
      %v1216 = vld [vmem:[%s3 + $0x88] sm:$0xff]
      %v1217 = vld [vmem:[%s3 + $0x90] sm:$0xff]
      %v1218 = vld [vmem:[%s3 + $0x98] sm:$0xff]
      %v1219 = vld [vmem:[%s3 + $0xa0] sm:$0xff]
      %v1220 = vld [vmem:[%s3 + $0xa8] sm:$0xff]
      %v1221 = vld [vmem:[%s3 + $0xb0] sm:$0xff]
      %v1222 = vld [vmem:[%s3 + $0xb8] sm:$0xff]
      %v1223 = vld [vmem:[%s3 + $0xc0] sm:$0xff]
      %v1224 = vld [vmem:[%s3 + $0xc8] sm:$0xff]
      %v1225 = vld [vmem:[%s3 + $0xd0] sm:$0xff]
      %v1226 = vld [vmem:[%s3 + $0xd8] sm:$0xff]
      %v1227 = vld [vmem:[%s3 + $0xe0] sm:$0xff]
      %v1228 = vld [vmem:[%s3 + $0xe8] sm:$0xff]
      %v1229 = vld [vmem:[%s3 + $0xf0] sm:$0xff]
      %v1230 = vld [vmem:[%s3 + $0xf8] sm:$0xff]
      %v1231 = vld [vmem:[%s3 + $0x100] sm:$0xff]
      %v1232 = vld [vmem:[%s3 + $0x108] sm:$0xff]
      %v1233 = vld [vmem:[%s3 + $0x110] sm:$0xff]
      %v1234 = vld [vmem:[%s3 + $0x118] sm:$0xff]
      %v1235 = vld [vmem:[%s3 + $0x120] sm:$0xff]
      %v1236 = vld [vmem:[%s3 + $0x128] sm:$0xff]
      %v1237 = vld [vmem:[%s3 + $0x130] sm:$0xff]
      %v1238 = vld [vmem:[%s3 + $0x138] sm:$0xff]
      %v1239 = vld [vmem:[%s3 + $0x140] sm:$0xff]
      %v1240 = vld [vmem:[%s3 + $0x148] sm:$0xff]
      %v1241 = vld [vmem:[%s3 + $0x150] sm:$0xff]
      %v1242 = vld [vmem:[%s3 + $0x158] sm:$0xff]
      %v1243 = vld [vmem:[%s3 + $0x160] sm:$0xff]
      %v1244 = vld [vmem:[%s3 + $0x168] sm:$0xff]
      %v1245 = vld [vmem:[%s3 + $0x170] sm:$0xff]
      %v1246 = vld [vmem:[%s3 + $0x178] sm:$0xff]
      %v1247 = vld [vmem:[%s3 + $0x180] sm:$0xff]
      %v1248 = vld [vmem:[%s3 + $0x188] sm:$0xff]
      %v1249 = vld [vmem:[%s3 + $0x190] sm:$0xff]
      %v1250 = vld [vmem:[%s3 + $0x198] sm:$0xff]
      %v1251 = vld [vmem:[%s3 + $0x1a0] sm:$0xff]
      %v1252 = vld [vmem:[%s3 + $0x1a8] sm:$0xff]
      %v1253 = vld [vmem:[%s3 + $0x1b0] sm:$0xff]
      %v1254 = vld [vmem:[%s3 + $0x1b8] sm:$0xff]
      %v1255 = vld [vmem:[%s3 + $0x1c0] sm:$0xff]
      %v1256 = vld [vmem:[%s3 + $0x1c8] sm:$0xff]
      %v1257 = vld [vmem:[%s3 + $0x1d0] sm:$0xff]
      %v1258 = vld [vmem:[%s3 + $0x1d8] sm:$0xff]
      %v1259 = vld [vmem:[%s3 + $0x1e0] sm:$0xff]
      %v1260 = vld [vmem:[%s3 + $0x1e8] sm:$0xff]
      %v1261 = vld [vmem:[%s3 + $0x1f0] sm:$0xff]
      %v1262 = vld [vmem:[%s3 + $0x1f8] sm:$0xff]
      %v1263 = vld [vmem:[%s3 + $0x200] sm:$0xff]
      %v1264 = vld [vmem:[%s3 + $0x208] sm:$0xff]
      %v1265 = vld [vmem:[%s3 + $0x210] sm:$0xff]
      %v1266 = vld [vmem:[%s3 + $0x218] sm:$0xff]
      %v1267 = vld [vmem:[%s3 + $0x220] sm:$0xff]
      %v1268 = vld [vmem:[%s3 + $0x228] sm:$0xff]
      %v1269 = vld [vmem:[%s3 + $0x230] sm:$0xff]
      %v1270 = vld [vmem:[%s3 + $0x238] sm:$0xff]
      %v1271 = vld [vmem:[%s3 + $0x240] sm:$0xff]
      %v1272 = vld [vmem:[%s3 + $0x248] sm:$0xff]
      %v1273 = vld [vmem:[%s3 + $0x250] sm:$0xff]
      %v1274 = vld [vmem:[%s3 + $0x258] sm:$0xff]
      %v1275 = vld [vmem:[%s3 + $0x260] sm:$0xff]
      %v1276 = vld [vmem:[%s3 + $0x268] sm:$0xff]
      %v1277 = vld [vmem:[%s3 + $0x270] sm:$0xff]
      %v1278 = vld [vmem:[%s3 + $0x278] sm:$0xff]
      %v1279 = vld [vmem:[%s3 + $0x280] sm:$0xff]
      %v1280 = vld [vmem:[%s3 + $0x288] sm:$0xff]
      %v1281 = vld [vmem:[%s3 + $0x290] sm:$0xff]
      %v1282 = vld [vmem:[%s3 + $0x298] sm:$0xff]
      %v1283 = vld [vmem:[%s3 + $0x2a0] sm:$0xff]
      %v1284 = vld [vmem:[%s3 + $0x2a8] sm:$0xff]
      %v1285 = vld [vmem:[%s3 + $0x2b0] sm:$0xff]
      %v1286 = vld [vmem:[%s3 + $0x2b8] sm:$0xff]
      %v1287 = vld [vmem:[%s3 + $0x2c0] sm:$0xff]
      %v1288 = vld [vmem:[%s3 + $0x2c8] sm:$0xff]
      %v1289 = vld [vmem:[%s3 + $0x2d0] sm:$0xff]
      %v1290 = vld [vmem:[%s3 + $0x2d8] sm:$0xff]
      %v1291 = vld [vmem:[%s3 + $0x2e0] sm:$0xff]
      %v1292 = vld [vmem:[%s3 + $0x2e8] sm:$0xff]
      %v1293 = vld [vmem:[%s3 + $0x2f0] sm:$0xff]
      %v1294 = vld [vmem:[%s3 + $0x2f8] sm:$0xff]
      %v1295 = vld [vmem:[%s3 + $0x300] sm:$0xff]
      %v1296 = vld [vmem:[%s3 + $0x308] sm:$0xff]
      %v1297 = vld [vmem:[%s3 + $0x310] sm:$0xff]
      %v1298 = vld [vmem:[%s3 + $0x318] sm:$0xff]
      %v1299 = vld [vmem:[%s3 + $0x320] sm:$0xff]
      %v1300 = vld [vmem:[%s3 + $0x328] sm:$0xff]
      %v1301 = vld [vmem:[%s3 + $0x330] sm:$0xff]
      %v1302 = vld [vmem:[%s3 + $0x338] sm:$0xff]
      %v1303 = vld [vmem:[%s3 + $0x340] sm:$0xff]
      %v1304 = vld [vmem:[%s3 + $0x348] sm:$0xff]
      %v1305 = vld [vmem:[%s3 + $0x350] sm:$0xff]
      %v1306 = vld [vmem:[%s3 + $0x358] sm:$0xff]
      %v1307 = vld [vmem:[%s3 + $0x360] sm:$0xff]
      %v1308 = vld [vmem:[%s3 + $0x368] sm:$0xff]
      %v1309 = vld [vmem:[%s3 + $0x370] sm:$0xff]
      %v1310 = vld [vmem:[%s3 + $0x378] sm:$0xff]
      %v1311 = vld [vmem:[%s3 + $0x380] sm:$0x11]
      %v1312 = vld [vmem:[%s3 + $0x388] sm:$0x11]
      %v1313 = vld [vmem:[%s3 + $0x390] sm:$0x11]
      %v1314 = vld [vmem:[%s3 + $0x398] sm:$0x11]
      %v1315 = vpack.c.bf16 %v1087, %v1086
      %v1316 = vpack.c.bf16 %v1089, %v1088
      %v1317 = vpack.c.bf16 %v1091, %v1090
      %v1318 = vpack.c.bf16 %v1093, %v1092
      %v1319 = vpack.c.bf16 %v1095, %v1094
      %v1320 = vpack.c.bf16 %v1097, %v1096
      %v1321 = vpack.c.bf16 %v1099, %v1098
      %v1322 = vpack.c.bf16 %v1101, %v1100
      %v1323 = vpack.c.bf16 %v1103, %v1102
      %v1324 = vpack.c.bf16 %v1105, %v1104
      %v1325 = vpack.c.bf16 %v1107, %v1106
      %v1326 = vpack.c.bf16 %v1109, %v1108
      %v1327 = vpack.c.bf16 %v1111, %v1110
      %v1328 = vpack.c.bf16 %v1113, %v1112
      %v1329 = vpack.c.bf16 %v1115, %v1114
      %v1330 = vpack.c.bf16 %v1117, %v1116
      %v1331 = vpack.c.bf16 %v1119, %v1118
      %v1332 = vpack.c.bf16 %v1121, %v1120
      %v1333 = vpack.c.bf16 %v1123, %v1122
      %v1334 = vpack.c.bf16 %v1125, %v1124
      %v1335 = vpack.c.bf16 %v1127, %v1126
      %v1336 = vpack.c.bf16 %v1129, %v1128
      %v1337 = vpack.c.bf16 %v1131, %v1130
      %v1338 = vpack.c.bf16 %v1133, %v1132
      %v1339 = vpack.c.bf16 %v1135, %v1134
      %v1340 = vpack.c.bf16 %v1137, %v1136
      %v1341 = vpack.c.bf16 %v1139, %v1138
      %v1342 = vpack.c.bf16 %v1141, %v1140
      %v1343 = vpack.c.bf16 %v1143, %v1142
      %v1344 = vpack.c.bf16 %v1145, %v1144
      %v1345 = vpack.c.bf16 %v1147, %v1146
      %v1346 = vpack.c.bf16 %v1149, %v1148
      %v1347 = vpack.c.bf16 %v1151, %v1150
      %v1348 = vpack.c.bf16 %v1153, %v1152
      %v1349 = vpack.c.bf16 %v1155, %v1154
      %v1350 = vpack.c.bf16 %v1157, %v1156
      %v1351 = vpack.c.bf16 %v1159, %v1158
      %v1352 = vpack.c.bf16 %v1161, %v1160
      %v1353 = vpack.c.bf16 %v1163, %v1162
      %v1354 = vpack.c.bf16 %v1165, %v1164
      %v1355 = vpack.c.bf16 %v1167, %v1166
      %v1356 = vpack.c.bf16 %v1169, %v1168
      %v1357 = vpack.c.bf16 %v1171, %v1170
      %v1358 = vpack.c.bf16 %v1173, %v1172
      %v1359 = vpack.c.bf16 %v1175, %v1174
      %v1360 = vpack.c.bf16 %v1177, %v1176
      %v1361 = vpack.c.bf16 %v1179, %v1178
      %v1362 = vpack.c.bf16 %v1181, %v1180
      %v1363 = vpack.c.bf16 %v1183, %v1182
      %v1364 = vpack.c.bf16 %v1185, %v1184
      %v1365 = vpack.c.bf16 %v1187, %v1186
      %v1366 = vpack.c.bf16 %v1189, %v1188
      %v1367 = vpack.c.bf16 %v1191, %v1190
      %v1368 = vpack.c.bf16 %v1193, %v1192
      %v1369 = vpack.c.bf16 %v1195, %v1194
      %v1370 = vpack.c.bf16 %v1197, %v1196
      %v1371 = vpack.c.bf16 %v1198, %v1198
      %v1488 = vunpack.c.l.b16 %v1199
      %v1489 = vunpack.c.h.b16 %v1199
      %v1490 = vunpack.c.l.b16 %v1200
      %v1491 = vunpack.c.h.b16 %v1200
      %v1492 = vunpack.c.l.b16 %v1201
      %v1493 = vunpack.c.h.b16 %v1201
      %v1494 = vunpack.c.l.b16 %v1202
      %v1495 = vunpack.c.h.b16 %v1202
      %v1496 = vunpack.c.l.b16 %v1203
      %v1497 = vunpack.c.h.b16 %v1203
      %v1498 = vunpack.c.l.b16 %v1204
      %v1499 = vunpack.c.h.b16 %v1204
      %v1500 = vunpack.c.l.b16 %v1205
      %v1501 = vunpack.c.h.b16 %v1205
      %v1502 = vunpack.c.l.b16 %v1206
      %v1503 = vunpack.c.h.b16 %v1206
      %v1504 = vunpack.c.l.b16 %v1207
      %v1505 = vunpack.c.h.b16 %v1207
      %v1506 = vunpack.c.l.b16 %v1208
      %v1507 = vunpack.c.h.b16 %v1208
      %v1508 = vunpack.c.l.b16 %v1209
      %v1509 = vunpack.c.h.b16 %v1209
      %v1510 = vunpack.c.l.b16 %v1210
      %v1511 = vunpack.c.h.b16 %v1210
      %v1512 = vunpack.c.l.b16 %v1211
      %v1513 = vunpack.c.h.b16 %v1211
      %v1514 = vunpack.c.l.b16 %v1212
      %v1515 = vunpack.c.h.b16 %v1212
      %v1516 = vunpack.c.l.b16 %v1213
      %v1517 = vunpack.c.h.b16 %v1213
      %v1518 = vunpack.c.l.b16 %v1214
      %v1519 = vunpack.c.h.b16 %v1214
      %v1520 = vunpack.c.l.b16 %v1215
      %v1521 = vunpack.c.h.b16 %v1215
      %v1522 = vunpack.c.l.b16 %v1216
      %v1523 = vunpack.c.h.b16 %v1216
      %v1524 = vunpack.c.l.b16 %v1217
      %v1525 = vunpack.c.h.b16 %v1217
      %v1526 = vunpack.c.l.b16 %v1218
      %v1527 = vunpack.c.h.b16 %v1218
      %v1528 = vunpack.c.l.b16 %v1219
      %v1529 = vunpack.c.h.b16 %v1219
      %v1530 = vunpack.c.l.b16 %v1220
      %v1531 = vunpack.c.h.b16 %v1220
      %v1532 = vunpack.c.l.b16 %v1221
      %v1533 = vunpack.c.h.b16 %v1221
      %v1534 = vunpack.c.l.b16 %v1222
      %v1535 = vunpack.c.h.b16 %v1222
      %v1536 = vunpack.c.l.b16 %v1223
      %v1537 = vunpack.c.h.b16 %v1223
      %v1538 = vunpack.c.l.b16 %v1224
      %v1539 = vunpack.c.h.b16 %v1224
      %v1540 = vunpack.c.l.b16 %v1225
      %v1541 = vunpack.c.h.b16 %v1225
      %v1542 = vunpack.c.l.b16 %v1226
      %v1543 = vunpack.c.h.b16 %v1226
      %v1544 = vunpack.c.l.b16 %v1227
      %v1545 = vunpack.c.h.b16 %v1227
      %v1546 = vunpack.c.l.b16 %v1228
      %v1547 = vunpack.c.h.b16 %v1228
      %v1548 = vunpack.c.l.b16 %v1229
      %v1549 = vunpack.c.h.b16 %v1229
      %v1550 = vunpack.c.l.b16 %v1230
      %v1551 = vunpack.c.h.b16 %v1230
      %v1552 = vunpack.c.l.b16 %v1231
      %v1553 = vunpack.c.h.b16 %v1231
      %v1554 = vunpack.c.l.b16 %v1232
      %v1555 = vunpack.c.h.b16 %v1232
      %v1556 = vunpack.c.l.b16 %v1233
      %v1557 = vunpack.c.h.b16 %v1233
      %v1558 = vunpack.c.l.b16 %v1234
      %v1559 = vunpack.c.h.b16 %v1234
      %v1560 = vunpack.c.l.b16 %v1235
      %v1561 = vunpack.c.h.b16 %v1235
      %v1562 = vunpack.c.l.b16 %v1236
      %v1563 = vunpack.c.h.b16 %v1236
      %v1564 = vunpack.c.l.b16 %v1237
      %v1565 = vunpack.c.h.b16 %v1237
      %v1566 = vunpack.c.l.b16 %v1238
      %v1567 = vunpack.c.h.b16 %v1238
      %v1568 = vunpack.c.l.b16 %v1239
      %v1569 = vunpack.c.h.b16 %v1239
      %v1570 = vunpack.c.l.b16 %v1240
      %v1571 = vunpack.c.h.b16 %v1240
      %v1572 = vunpack.c.l.b16 %v1241
      %v1573 = vunpack.c.h.b16 %v1241
      %v1574 = vunpack.c.l.b16 %v1242
      %v1575 = vunpack.c.h.b16 %v1242
      %v1576 = vunpack.c.l.b16 %v1243
      %v1577 = vunpack.c.h.b16 %v1243
      %v1578 = vunpack.c.l.b16 %v1244
      %v1579 = vunpack.c.h.b16 %v1244
      %v1580 = vunpack.c.l.b16 %v1245
      %v1581 = vunpack.c.h.b16 %v1245
      %v1582 = vunpack.c.l.b16 %v1246
      %v1583 = vunpack.c.h.b16 %v1246
      %v1584 = vunpack.c.l.b16 %v1247
      %v1585 = vunpack.c.h.b16 %v1247
      %v1586 = vunpack.c.l.b16 %v1248
      %v1587 = vunpack.c.h.b16 %v1248
      %v1588 = vunpack.c.l.b16 %v1249
      %v1589 = vunpack.c.h.b16 %v1249
      %v1590 = vunpack.c.l.b16 %v1250
      %v1591 = vunpack.c.h.b16 %v1250
      %v1592 = vunpack.c.l.b16 %v1251
      %v1593 = vunpack.c.h.b16 %v1251
      %v1594 = vunpack.c.l.b16 %v1252
      %v1595 = vunpack.c.h.b16 %v1252
      %v1596 = vunpack.c.l.b16 %v1253
      %v1597 = vunpack.c.h.b16 %v1253
      %v1598 = vunpack.c.l.b16 %v1254
      %v1599 = vunpack.c.h.b16 %v1254
      %v1600 = vunpack.c.l.b16 %v1255
      %v1601 = vunpack.c.h.b16 %v1255
      %v1602 = vunpack.c.l.b16 %v1256
      %v1603 = vunpack.c.h.b16 %v1256
      %v1604 = vunpack.c.l.b16 %v1257
      %v1605 = vunpack.c.h.b16 %v1257
      %v1606 = vunpack.c.l.b16 %v1258
      %v1607 = vunpack.c.h.b16 %v1258
      %v1608 = vunpack.c.l.b16 %v1259
      %v1609 = vunpack.c.h.b16 %v1259
      %v1610 = vunpack.c.l.b16 %v1260
      %v1611 = vunpack.c.h.b16 %v1260
      %v1612 = vunpack.c.l.b16 %v1261
      %v1613 = vunpack.c.h.b16 %v1261
      %v1614 = vunpack.c.l.b16 %v1262
      %v1615 = vunpack.c.h.b16 %v1262
      %v1616 = vunpack.c.l.b16 %v1263
      %v1617 = vunpack.c.h.b16 %v1263
      %v1618 = vunpack.c.l.b16 %v1264
      %v1619 = vunpack.c.h.b16 %v1264
      %v1620 = vunpack.c.l.b16 %v1265
      %v1621 = vunpack.c.h.b16 %v1265
      %v1622 = vunpack.c.l.b16 %v1266
      %v1623 = vunpack.c.h.b16 %v1266
      %v1624 = vunpack.c.l.b16 %v1267
      %v1625 = vunpack.c.h.b16 %v1267
      %v1626 = vunpack.c.l.b16 %v1268
      %v1627 = vunpack.c.h.b16 %v1268
      %v1628 = vunpack.c.l.b16 %v1269
      %v1629 = vunpack.c.h.b16 %v1269
      %v1630 = vunpack.c.l.b16 %v1270
      %v1631 = vunpack.c.h.b16 %v1270
      %v1632 = vunpack.c.l.b16 %v1271
      %v1633 = vunpack.c.h.b16 %v1271
      %v1634 = vunpack.c.l.b16 %v1272
      %v1635 = vunpack.c.h.b16 %v1272
      %v1636 = vunpack.c.l.b16 %v1273
      %v1637 = vunpack.c.h.b16 %v1273
      %v1638 = vunpack.c.l.b16 %v1274
      %v1639 = vunpack.c.h.b16 %v1274
      %v1640 = vunpack.c.l.b16 %v1275
      %v1641 = vunpack.c.h.b16 %v1275
      %v1642 = vunpack.c.l.b16 %v1276
      %v1643 = vunpack.c.h.b16 %v1276
      %v1644 = vunpack.c.l.b16 %v1277
      %v1645 = vunpack.c.h.b16 %v1277
      %v1646 = vunpack.c.l.b16 %v1278
      %v1647 = vunpack.c.h.b16 %v1278
      %v1648 = vunpack.c.l.b16 %v1279
      %v1649 = vunpack.c.h.b16 %v1279
      %v1650 = vunpack.c.l.b16 %v1280
      %v1651 = vunpack.c.h.b16 %v1280
      %v1652 = vunpack.c.l.b16 %v1281
      %v1653 = vunpack.c.h.b16 %v1281
      %v1654 = vunpack.c.l.b16 %v1282
      %v1655 = vunpack.c.h.b16 %v1282
      %v1656 = vunpack.c.l.b16 %v1283
      %v1657 = vunpack.c.h.b16 %v1283
      %v1658 = vunpack.c.l.b16 %v1284
      %v1659 = vunpack.c.h.b16 %v1284
      %v1660 = vunpack.c.l.b16 %v1285
      %v1661 = vunpack.c.h.b16 %v1285
      %v1662 = vunpack.c.l.b16 %v1286
      %v1663 = vunpack.c.h.b16 %v1286
      %v1664 = vunpack.c.l.b16 %v1287
      %v1665 = vunpack.c.h.b16 %v1287
      %v1666 = vunpack.c.l.b16 %v1288
      %v1667 = vunpack.c.h.b16 %v1288
      %v1668 = vunpack.c.l.b16 %v1289
      %v1669 = vunpack.c.h.b16 %v1289
      %v1670 = vunpack.c.l.b16 %v1290
      %v1671 = vunpack.c.h.b16 %v1290
      %v1672 = vunpack.c.l.b16 %v1291
      %v1673 = vunpack.c.h.b16 %v1291
      %v1674 = vunpack.c.l.b16 %v1292
      %v1675 = vunpack.c.h.b16 %v1292
      %v1676 = vunpack.c.l.b16 %v1293
      %v1677 = vunpack.c.h.b16 %v1293
      %v1678 = vunpack.c.l.b16 %v1294
      %v1679 = vunpack.c.h.b16 %v1294
      %v1680 = vunpack.c.l.b16 %v1295
      %v1681 = vunpack.c.h.b16 %v1295
      %v1682 = vunpack.c.l.b16 %v1296
      %v1683 = vunpack.c.h.b16 %v1296
      %v1684 = vunpack.c.l.b16 %v1297
      %v1685 = vunpack.c.h.b16 %v1297
      %v1686 = vunpack.c.l.b16 %v1298
      %v1687 = vunpack.c.h.b16 %v1298
      %v1688 = vunpack.c.l.b16 %v1299
      %v1689 = vunpack.c.h.b16 %v1299
      %v1690 = vunpack.c.l.b16 %v1300
      %v1691 = vunpack.c.h.b16 %v1300
      %v1692 = vunpack.c.l.b16 %v1301
      %v1693 = vunpack.c.h.b16 %v1301
      %v1694 = vunpack.c.l.b16 %v1302
      %v1695 = vunpack.c.h.b16 %v1302
      %v1696 = vunpack.c.l.b16 %v1303
      %v1697 = vunpack.c.h.b16 %v1303
      %v1698 = vunpack.c.l.b16 %v1304
      %v1699 = vunpack.c.h.b16 %v1304
      %v1700 = vunpack.c.l.b16 %v1305
      %v1701 = vunpack.c.h.b16 %v1305
      %v1702 = vunpack.c.l.b16 %v1306
      %v1703 = vunpack.c.h.b16 %v1306
      %v1704 = vunpack.c.l.b16 %v1307
      %v1705 = vunpack.c.h.b16 %v1307
      %v1706 = vunpack.c.l.b16 %v1308
      %v1707 = vunpack.c.h.b16 %v1308
      %v1708 = vunpack.c.l.b16 %v1309
      %v1709 = vunpack.c.h.b16 %v1309
      %v1710 = vunpack.c.l.b16 %v1310
      %v1711 = vunpack.c.h.b16 %v1310
      %v1712 = vunpack.c.l.b16 %v1311
      %v1713 = vunpack.c.h.b16 %v1311
      %v1714 = vunpack.c.l.b16 %v1312
      %v1715 = vunpack.c.h.b16 %v1312
      %v1716 = vunpack.c.l.b16 %v1313
      %v1717 = vunpack.c.h.b16 %v1313
      %v1718 = vunpack.c.l.b16 %v1314
      %v1719 = vunpack.c.h.b16 %v1314
      %v1720 = vpack.c.b16 %v1496, %v1488
      %v1721 = vpack.c.b16 %v1497, %v1489
      %v1722 = vpack.c.b16 %v1498, %v1490
      %v1723 = vpack.c.b16 %v1499, %v1491
      %v1724 = vpack.c.b16 %v1500, %v1492
      %v1725 = vpack.c.b16 %v1501, %v1493
      %v1726 = vpack.c.b16 %v1502, %v1494
      %v1727 = vpack.c.b16 %v1503, %v1495
      %v1728 = vpack.c.b16 %v1512, %v1504
      %v1729 = vpack.c.b16 %v1513, %v1505
      %v1730 = vpack.c.b16 %v1514, %v1506
      %v1731 = vpack.c.b16 %v1515, %v1507
      %v1732 = vpack.c.b16 %v1516, %v1508
      %v1733 = vpack.c.b16 %v1517, %v1509
      %v1734 = vpack.c.b16 %v1518, %v1510
      %v1735 = vpack.c.b16 %v1519, %v1511
      %v1736 = vpack.c.b16 %v1528, %v1520
      %v1737 = vpack.c.b16 %v1529, %v1521
      %v1738 = vpack.c.b16 %v1530, %v1522
      %v1739 = vpack.c.b16 %v1531, %v1523
      %v1740 = vpack.c.b16 %v1532, %v1524
      %v1741 = vpack.c.b16 %v1533, %v1525
      %v1742 = vpack.c.b16 %v1534, %v1526
      %v1743 = vpack.c.b16 %v1535, %v1527
      %v1744 = vpack.c.b16 %v1544, %v1536
      %v1745 = vpack.c.b16 %v1545, %v1537
      %v1746 = vpack.c.b16 %v1546, %v1538
      %v1747 = vpack.c.b16 %v1547, %v1539
      %v1748 = vpack.c.b16 %v1548, %v1540
      %v1749 = vpack.c.b16 %v1549, %v1541
      %v1750 = vpack.c.b16 %v1550, %v1542
      %v1751 = vpack.c.b16 %v1551, %v1543
      %v1752 = vpack.c.b16 %v1560, %v1552
      %v1753 = vpack.c.b16 %v1561, %v1553
      %v1754 = vpack.c.b16 %v1562, %v1554
      %v1755 = vpack.c.b16 %v1563, %v1555
      %v1756 = vpack.c.b16 %v1564, %v1556
      %v1757 = vpack.c.b16 %v1565, %v1557
      %v1758 = vpack.c.b16 %v1566, %v1558
      %v1759 = vpack.c.b16 %v1567, %v1559
      %v1760 = vpack.c.b16 %v1576, %v1568
      %v1761 = vpack.c.b16 %v1577, %v1569
      %v1762 = vpack.c.b16 %v1578, %v1570
      %v1763 = vpack.c.b16 %v1579, %v1571
      %v1764 = vpack.c.b16 %v1580, %v1572
      %v1765 = vpack.c.b16 %v1581, %v1573
      %v1766 = vpack.c.b16 %v1582, %v1574
      %v1767 = vpack.c.b16 %v1583, %v1575
      %v1768 = vpack.c.b16 %v1592, %v1584
      %v1769 = vpack.c.b16 %v1593, %v1585
      %v1770 = vpack.c.b16 %v1594, %v1586
      %v1771 = vpack.c.b16 %v1595, %v1587
      %v1772 = vpack.c.b16 %v1596, %v1588
      %v1773 = vpack.c.b16 %v1597, %v1589
      %v1774 = vpack.c.b16 %v1598, %v1590
      %v1775 = vpack.c.b16 %v1599, %v1591
      %v1776 = vpack.c.b16 %v1608, %v1600
      %v1777 = vpack.c.b16 %v1609, %v1601
      %v1778 = vpack.c.b16 %v1610, %v1602
      %v1779 = vpack.c.b16 %v1611, %v1603
      %v1780 = vpack.c.b16 %v1612, %v1604
      %v1781 = vpack.c.b16 %v1613, %v1605
      %v1782 = vpack.c.b16 %v1614, %v1606
      %v1783 = vpack.c.b16 %v1615, %v1607
      %v1784 = vpack.c.b16 %v1624, %v1616
      %v1785 = vpack.c.b16 %v1625, %v1617
      %v1786 = vpack.c.b16 %v1626, %v1618
      %v1787 = vpack.c.b16 %v1627, %v1619
      %v1788 = vpack.c.b16 %v1628, %v1620
      %v1789 = vpack.c.b16 %v1629, %v1621
      %v1790 = vpack.c.b16 %v1630, %v1622
      %v1791 = vpack.c.b16 %v1631, %v1623
      %v1792 = vpack.c.b16 %v1640, %v1632
      %v1793 = vpack.c.b16 %v1641, %v1633
      %v1794 = vpack.c.b16 %v1642, %v1634
      %v1795 = vpack.c.b16 %v1643, %v1635
      %v1796 = vpack.c.b16 %v1644, %v1636
      %v1797 = vpack.c.b16 %v1645, %v1637
      %v1798 = vpack.c.b16 %v1646, %v1638
      %v1799 = vpack.c.b16 %v1647, %v1639
      %v1800 = vpack.c.b16 %v1656, %v1648
      %v1801 = vpack.c.b16 %v1657, %v1649
      %v1802 = vpack.c.b16 %v1658, %v1650
      %v1803 = vpack.c.b16 %v1659, %v1651
      %v1804 = vpack.c.b16 %v1660, %v1652
      %v1805 = vpack.c.b16 %v1661, %v1653
      %v1806 = vpack.c.b16 %v1662, %v1654
      %v1807 = vpack.c.b16 %v1663, %v1655
      %v1808 = vpack.c.b16 %v1672, %v1664
      %v1809 = vpack.c.b16 %v1673, %v1665
      %v1810 = vpack.c.b16 %v1674, %v1666
      %v1811 = vpack.c.b16 %v1675, %v1667
      %v1812 = vpack.c.b16 %v1676, %v1668
      %v1813 = vpack.c.b16 %v1677, %v1669
      %v1814 = vpack.c.b16 %v1678, %v1670
      %v1815 = vpack.c.b16 %v1679, %v1671
      %v1816 = vpack.c.b16 %v1688, %v1680
      %v1817 = vpack.c.b16 %v1689, %v1681
      %v1818 = vpack.c.b16 %v1690, %v1682
      %v1819 = vpack.c.b16 %v1691, %v1683
      %v1820 = vpack.c.b16 %v1692, %v1684
      %v1821 = vpack.c.b16 %v1693, %v1685
      %v1822 = vpack.c.b16 %v1694, %v1686
      %v1823 = vpack.c.b16 %v1695, %v1687
      %v1824 = vpack.c.b16 %v1704, %v1696
      %v1825 = vpack.c.b16 %v1705, %v1697
      %v1826 = vpack.c.b16 %v1706, %v1698
      %v1827 = vpack.c.b16 %v1707, %v1699
      %v1828 = vpack.c.b16 %v1708, %v1700
      %v1829 = vpack.c.b16 %v1709, %v1701
      %v1830 = vpack.c.b16 %v1710, %v1702
      %v1831 = vpack.c.b16 %v1711, %v1703
      %v1832 = vpack.c.b16 %v1712, %v1712
      %v1833 = vpack.c.b16 %v1713, %v1713
      %v1834 = vpack.c.b16 %v1714, %v1714
      %v1835 = vpack.c.b16 %v1715, %v1715
      %v1836 = vpack.c.b16 %v1716, %v1716
      %v1837 = vpack.c.b16 %v1717, %v1717
      %v1838 = vpack.c.b16 %v1718, %v1718
      %v1839 = vpack.c.b16 %v1719, %v1719
      %vm1945 = vcmask 31744
      %v1947 = vsel %vm1945, %v1727, 0
      %v1950 = vsel %vm1945, %v1735, 0
      %v1953 = vsel %vm1945, %v1743, 0
      %v1956 = vsel %vm1945, %v1751, 0
      %v1959 = vsel %vm1945, %v1759, 0
      %v1962 = vsel %vm1945, %v1767, 0
      %v1965 = vsel %vm1945, %v1775, 0
      %v1968 = vsel %vm1945, %v1783, 0
      %v1971 = vsel %vm1945, %v1791, 0
      %v1974 = vsel %vm1945, %v1799, 0
      %v1977 = vsel %vm1945, %v1807, 0
      %v1980 = vsel %vm1945, %v1815, 0
      %v1983 = vsel %vm1945, %v1823, 0
      %v1986 = vsel %vm1945, %v1831, 0
      %v1989 = vsel %vm1945, %v1839, 0
      %vm1991 = vcmask 1041408
      %v1993 = vsel %vm1991, %v1371, 0
      %1995 = vmatpush.bf16.msra.mxu0 %v1322
      %1996 = vmatpush.bf16.msra.mxu0 %v1321
      %1997 = vmatpush.bf16.msra.mxu0 %v1320
      %1998 = vmatpush.bf16.msra.mxu0 %v1319
      %1999 = vmatpush.bf16.msra.mxu0 %v1318
      %2000 = vmatpush.bf16.msra.mxu0 %v1317
      %2001 = vmatpush.bf16.msra.mxu0 %v1316
      %2002 = vmatpush.bf16.msra.mxu0 %v1315
      %2003 = vmatmul.bf16.gmra.mxu0 %v1720
      %v2004 = vpop.f32.mrf.mxu0
      %v2005 = vadd.f32 0.0, %v2004
      %v2006 = vpop.f32.mrf.mxu0
      %v2007 = vadd.f32 0.0, %v2006
      %2008 = vmatmul.bf16.gmra.mxu0 %v1728
      %v2009 = vpop.f32.mrf.mxu0
      %v2010 = vadd.f32 0.0, %v2009
      %v2011 = vpop.f32.mrf.mxu0
      %v2012 = vadd.f32 0.0, %v2011
      %2013 = vmatmul.bf16.gmra.mxu0 %v1736
      %v2014 = vpop.f32.mrf.mxu0
      %v2015 = vadd.f32 0.0, %v2014
      %v2016 = vpop.f32.mrf.mxu0
      %v2017 = vadd.f32 0.0, %v2016
      %2018 = vmatmul.bf16.gmra.mxu0 %v1744
      %v2019 = vpop.f32.mrf.mxu0
      %v2020 = vadd.f32 0.0, %v2019
      %v2021 = vpop.f32.mrf.mxu0
      %v2022 = vadd.f32 0.0, %v2021
      %2023 = vmatmul.bf16.gmra.mxu0 %v1752
      %v2024 = vpop.f32.mrf.mxu0
      %v2025 = vadd.f32 0.0, %v2024
      %v2026 = vpop.f32.mrf.mxu0
      %v2027 = vadd.f32 0.0, %v2026
      %2028 = vmatmul.bf16.gmra.mxu0 %v1760
      %v2029 = vpop.f32.mrf.mxu0
      %v2030 = vadd.f32 0.0, %v2029
      %v2031 = vpop.f32.mrf.mxu0
      %v2032 = vadd.f32 0.0, %v2031
      %2033 = vmatmul.bf16.gmra.mxu0 %v1768
      %v2034 = vpop.f32.mrf.mxu0
      %v2035 = vadd.f32 0.0, %v2034
      %v2036 = vpop.f32.mrf.mxu0
      %v2037 = vadd.f32 0.0, %v2036
      %2038 = vmatmul.bf16.gmra.mxu0 %v1776
      %v2039 = vpop.f32.mrf.mxu0
      %v2040 = vadd.f32 0.0, %v2039
      %v2041 = vpop.f32.mrf.mxu0
      %v2042 = vadd.f32 0.0, %v2041
      %2043 = vmatmul.bf16.gmra.mxu0 %v1784
      %v2044 = vpop.f32.mrf.mxu0
      %v2045 = vadd.f32 0.0, %v2044
      %v2046 = vpop.f32.mrf.mxu0
      %v2047 = vadd.f32 0.0, %v2046
      %2048 = vmatmul.bf16.gmra.mxu0 %v1792
      %v2049 = vpop.f32.mrf.mxu0
      %v2050 = vadd.f32 0.0, %v2049
      %v2051 = vpop.f32.mrf.mxu0
      %v2052 = vadd.f32 0.0, %v2051
      %2053 = vmatmul.bf16.gmra.mxu0 %v1800
      %v2054 = vpop.f32.mrf.mxu0
      %v2055 = vadd.f32 0.0, %v2054
      %v2056 = vpop.f32.mrf.mxu0
      %v2057 = vadd.f32 0.0, %v2056
      %2058 = vmatmul.bf16.gmra.mxu0 %v1808
      %v2059 = vpop.f32.mrf.mxu0
      %v2060 = vadd.f32 0.0, %v2059
      %v2061 = vpop.f32.mrf.mxu0
      %v2062 = vadd.f32 0.0, %v2061
      %2063 = vmatmul.bf16.gmra.mxu0 %v1816
      %v2064 = vpop.f32.mrf.mxu0
      %v2065 = vadd.f32 0.0, %v2064
      %v2066 = vpop.f32.mrf.mxu0
      %v2067 = vadd.f32 0.0, %v2066
      %2068 = vmatmul.bf16.gmra.mxu0 %v1824
      %v2069 = vpop.f32.mrf.mxu0
      %v2070 = vadd.f32 0.0, %v2069
      %v2071 = vpop.f32.mrf.mxu0
      %v2072 = vadd.f32 0.0, %v2071
      %2073 = vmatmul.bf16.gmra.mxu0 %v1832
      %v2074 = vpop.f32.mrf.mxu0
      %v2075 = vadd.f32 0.0, %v2074
      %v2076 = vpop.f32.mrf.mxu0
      %2077 = vdwg.mxu0
      %2078 = vmatpush.bf16.msra.mxu0 %v1330
      %2079 = vmatpush.bf16.msra.mxu0 %v1329
      %2080 = vmatpush.bf16.msra.mxu0 %v1328
      %2081 = vmatpush.bf16.msra.mxu0 %v1327
      %2082 = vmatpush.bf16.msra.mxu0 %v1326
      %2083 = vmatpush.bf16.msra.mxu0 %v1325
      %2084 = vmatpush.bf16.msra.mxu0 %v1324
      %2085 = vmatpush.bf16.msra.mxu0 %v1323
      %2086 = vmatmul.bf16.gmra.mxu0 %v1721
      %v2087 = vpop.f32.mrf.mxu0
      %v2088 = vadd.f32 %v2005, %v2087
      %v2089 = vpop.f32.mrf.mxu0
      %v2090 = vadd.f32 %v2007, %v2089
      %2091 = vmatmul.bf16.gmra.mxu0 %v1729
      %v2092 = vpop.f32.mrf.mxu0
      %v2093 = vadd.f32 %v2010, %v2092
      %v2094 = vpop.f32.mrf.mxu0
      %v2095 = vadd.f32 %v2012, %v2094
      %2096 = vmatmul.bf16.gmra.mxu0 %v1737
      %v2097 = vpop.f32.mrf.mxu0
      %v2098 = vadd.f32 %v2015, %v2097
      %v2099 = vpop.f32.mrf.mxu0
      %v2100 = vadd.f32 %v2017, %v2099
      %2101 = vmatmul.bf16.gmra.mxu0 %v1745
      %v2102 = vpop.f32.mrf.mxu0
      %v2103 = vadd.f32 %v2020, %v2102
      %v2104 = vpop.f32.mrf.mxu0
      %v2105 = vadd.f32 %v2022, %v2104
      %2106 = vmatmul.bf16.gmra.mxu0 %v1753
      %v2107 = vpop.f32.mrf.mxu0
      %v2108 = vadd.f32 %v2025, %v2107
      %v2109 = vpop.f32.mrf.mxu0
      %v2110 = vadd.f32 %v2027, %v2109
      %2111 = vmatmul.bf16.gmra.mxu0 %v1761
      %v2112 = vpop.f32.mrf.mxu0
      %v2113 = vadd.f32 %v2030, %v2112
      %v2114 = vpop.f32.mrf.mxu0
      %v2115 = vadd.f32 %v2032, %v2114
      %2116 = vmatmul.bf16.gmra.mxu0 %v1769
      %v2117 = vpop.f32.mrf.mxu0
      %v2118 = vadd.f32 %v2035, %v2117
      %v2119 = vpop.f32.mrf.mxu0
      %v2120 = vadd.f32 %v2037, %v2119
      %2121 = vmatmul.bf16.gmra.mxu0 %v1777
      %v2122 = vpop.f32.mrf.mxu0
      %v2123 = vadd.f32 %v2040, %v2122
      %v2124 = vpop.f32.mrf.mxu0
      %v2125 = vadd.f32 %v2042, %v2124
      %2126 = vmatmul.bf16.gmra.mxu0 %v1785
      %v2127 = vpop.f32.mrf.mxu0
      %v2128 = vadd.f32 %v2045, %v2127
      %v2129 = vpop.f32.mrf.mxu0
      %v2130 = vadd.f32 %v2047, %v2129
      %2131 = vmatmul.bf16.gmra.mxu0 %v1793
      %v2132 = vpop.f32.mrf.mxu0
      %v2133 = vadd.f32 %v2050, %v2132
      %v2134 = vpop.f32.mrf.mxu0
      %v2135 = vadd.f32 %v2052, %v2134
      %2136 = vmatmul.bf16.gmra.mxu0 %v1801
      %v2137 = vpop.f32.mrf.mxu0
      %v2138 = vadd.f32 %v2055, %v2137
      %v2139 = vpop.f32.mrf.mxu0
      %v2140 = vadd.f32 %v2057, %v2139
      %2141 = vmatmul.bf16.gmra.mxu0 %v1809
      %v2142 = vpop.f32.mrf.mxu0
      %v2143 = vadd.f32 %v2060, %v2142
      %v2144 = vpop.f32.mrf.mxu0
      %v2145 = vadd.f32 %v2062, %v2144
      %2146 = vmatmul.bf16.gmra.mxu0 %v1817
      %v2147 = vpop.f32.mrf.mxu0
      %v2148 = vadd.f32 %v2065, %v2147
      %v2149 = vpop.f32.mrf.mxu0
      %v2150 = vadd.f32 %v2067, %v2149
      %2151 = vmatmul.bf16.gmra.mxu0 %v1825
      %v2152 = vpop.f32.mrf.mxu0
      %v2153 = vadd.f32 %v2070, %v2152
      %v2154 = vpop.f32.mrf.mxu0
      %v2155 = vadd.f32 %v2072, %v2154
      %2156 = vmatmul.bf16.gmra.mxu0 %v1833
      %v2157 = vpop.f32.mrf.mxu0
      %v2158 = vadd.f32 %v2075, %v2157
      %v2159 = vpop.f32.mrf.mxu0
      %2160 = vdwg.mxu0
      %2161 = vmatpush.bf16.msra.mxu0 %v1338
      %2162 = vmatpush.bf16.msra.mxu0 %v1337
      %2163 = vmatpush.bf16.msra.mxu0 %v1336
      %2164 = vmatpush.bf16.msra.mxu0 %v1335
      %2165 = vmatpush.bf16.msra.mxu0 %v1334
      %2166 = vmatpush.bf16.msra.mxu0 %v1333
      %2167 = vmatpush.bf16.msra.mxu0 %v1332
      %2168 = vmatpush.bf16.msra.mxu0 %v1331
      %2169 = vmatmul.bf16.gmra.mxu0 %v1722
      %v2170 = vpop.f32.mrf.mxu0
      %v2171 = vadd.f32 %v2088, %v2170
      %v2172 = vpop.f32.mrf.mxu0
      %v2173 = vadd.f32 %v2090, %v2172
      %2174 = vmatmul.bf16.gmra.mxu0 %v1730
      %v2175 = vpop.f32.mrf.mxu0
      %v2176 = vadd.f32 %v2093, %v2175
      %v2177 = vpop.f32.mrf.mxu0
      %v2178 = vadd.f32 %v2095, %v2177
      %2179 = vmatmul.bf16.gmra.mxu0 %v1738
      %v2180 = vpop.f32.mrf.mxu0
      %v2181 = vadd.f32 %v2098, %v2180
      %v2182 = vpop.f32.mrf.mxu0
      %v2183 = vadd.f32 %v2100, %v2182
      %2184 = vmatmul.bf16.gmra.mxu0 %v1746
      %v2185 = vpop.f32.mrf.mxu0
      %v2186 = vadd.f32 %v2103, %v2185
      %v2187 = vpop.f32.mrf.mxu0
      %v2188 = vadd.f32 %v2105, %v2187
      %2189 = vmatmul.bf16.gmra.mxu0 %v1754
      %v2190 = vpop.f32.mrf.mxu0
      %v2191 = vadd.f32 %v2108, %v2190
      %v2192 = vpop.f32.mrf.mxu0
      %v2193 = vadd.f32 %v2110, %v2192
      %2194 = vmatmul.bf16.gmra.mxu0 %v1762
      %v2195 = vpop.f32.mrf.mxu0
      %v2196 = vadd.f32 %v2113, %v2195
      %v2197 = vpop.f32.mrf.mxu0
      %v2198 = vadd.f32 %v2115, %v2197
      %2199 = vmatmul.bf16.gmra.mxu0 %v1770
      %v2200 = vpop.f32.mrf.mxu0
      %v2201 = vadd.f32 %v2118, %v2200
      %v2202 = vpop.f32.mrf.mxu0
      %v2203 = vadd.f32 %v2120, %v2202
      %2204 = vmatmul.bf16.gmra.mxu0 %v1778
      %v2205 = vpop.f32.mrf.mxu0
      %v2206 = vadd.f32 %v2123, %v2205
      %v2207 = vpop.f32.mrf.mxu0
      %v2208 = vadd.f32 %v2125, %v2207
      %2209 = vmatmul.bf16.gmra.mxu0 %v1786
      %v2210 = vpop.f32.mrf.mxu0
      %v2211 = vadd.f32 %v2128, %v2210
      %v2212 = vpop.f32.mrf.mxu0
      %v2213 = vadd.f32 %v2130, %v2212
      %2214 = vmatmul.bf16.gmra.mxu0 %v1794
      %v2215 = vpop.f32.mrf.mxu0
      %v2216 = vadd.f32 %v2133, %v2215
      %v2217 = vpop.f32.mrf.mxu0
      %v2218 = vadd.f32 %v2135, %v2217
      %2219 = vmatmul.bf16.gmra.mxu0 %v1802
      %v2220 = vpop.f32.mrf.mxu0
      %v2221 = vadd.f32 %v2138, %v2220
      %v2222 = vpop.f32.mrf.mxu0
      %v2223 = vadd.f32 %v2140, %v2222
      %2224 = vmatmul.bf16.gmra.mxu0 %v1810
      %v2225 = vpop.f32.mrf.mxu0
      %v2226 = vadd.f32 %v2143, %v2225
      %v2227 = vpop.f32.mrf.mxu0
      %v2228 = vadd.f32 %v2145, %v2227
      %2229 = vmatmul.bf16.gmra.mxu0 %v1818
      %v2230 = vpop.f32.mrf.mxu0
      %v2231 = vadd.f32 %v2148, %v2230
      %v2232 = vpop.f32.mrf.mxu0
      %v2233 = vadd.f32 %v2150, %v2232
      %2234 = vmatmul.bf16.gmra.mxu0 %v1826
      %v2235 = vpop.f32.mrf.mxu0
      %v2236 = vadd.f32 %v2153, %v2235
      %v2237 = vpop.f32.mrf.mxu0
      %v2238 = vadd.f32 %v2155, %v2237
      %2239 = vmatmul.bf16.gmra.mxu0 %v1834
      %v2240 = vpop.f32.mrf.mxu0
      %v2241 = vadd.f32 %v2158, %v2240
      %v2242 = vpop.f32.mrf.mxu0
      %2243 = vdwg.mxu0
      %2244 = vmatpush.bf16.msra.mxu0 %v1346
      %2245 = vmatpush.bf16.msra.mxu0 %v1345
      %2246 = vmatpush.bf16.msra.mxu0 %v1344
      %2247 = vmatpush.bf16.msra.mxu0 %v1343
      %2248 = vmatpush.bf16.msra.mxu0 %v1342
      %2249 = vmatpush.bf16.msra.mxu0 %v1341
      %2250 = vmatpush.bf16.msra.mxu0 %v1340
      %2251 = vmatpush.bf16.msra.mxu0 %v1339
      %2252 = vmatmul.bf16.gmra.mxu0 %v1723
      %v2253 = vpop.f32.mrf.mxu0
      %v2254 = vadd.f32 %v2171, %v2253
      %v2255 = vpop.f32.mrf.mxu0
      %v2256 = vadd.f32 %v2173, %v2255
      %2257 = vmatmul.bf16.gmra.mxu0 %v1731
      %v2258 = vpop.f32.mrf.mxu0
      %v2259 = vadd.f32 %v2176, %v2258
      %v2260 = vpop.f32.mrf.mxu0
      %v2261 = vadd.f32 %v2178, %v2260
      %2262 = vmatmul.bf16.gmra.mxu0 %v1739
      %v2263 = vpop.f32.mrf.mxu0
      %v2264 = vadd.f32 %v2181, %v2263
      %v2265 = vpop.f32.mrf.mxu0
      %v2266 = vadd.f32 %v2183, %v2265
      %2267 = vmatmul.bf16.gmra.mxu0 %v1747
      %v2268 = vpop.f32.mrf.mxu0
      %v2269 = vadd.f32 %v2186, %v2268
      %v2270 = vpop.f32.mrf.mxu0
      %v2271 = vadd.f32 %v2188, %v2270
      %2272 = vmatmul.bf16.gmra.mxu0 %v1755
      %v2273 = vpop.f32.mrf.mxu0
      %v2274 = vadd.f32 %v2191, %v2273
      %v2275 = vpop.f32.mrf.mxu0
      %v2276 = vadd.f32 %v2193, %v2275
      %2277 = vmatmul.bf16.gmra.mxu0 %v1763
      %v2278 = vpop.f32.mrf.mxu0
      %v2279 = vadd.f32 %v2196, %v2278
      %v2280 = vpop.f32.mrf.mxu0
      %v2281 = vadd.f32 %v2198, %v2280
      %2282 = vmatmul.bf16.gmra.mxu0 %v1771
      %v2283 = vpop.f32.mrf.mxu0
      %v2284 = vadd.f32 %v2201, %v2283
      %v2285 = vpop.f32.mrf.mxu0
      %v2286 = vadd.f32 %v2203, %v2285
      %2287 = vmatmul.bf16.gmra.mxu0 %v1779
      %v2288 = vpop.f32.mrf.mxu0
      %v2289 = vadd.f32 %v2206, %v2288
      %v2290 = vpop.f32.mrf.mxu0
      %v2291 = vadd.f32 %v2208, %v2290
      %2292 = vmatmul.bf16.gmra.mxu0 %v1787
      %v2293 = vpop.f32.mrf.mxu0
      %v2294 = vadd.f32 %v2211, %v2293
      %v2295 = vpop.f32.mrf.mxu0
      %v2296 = vadd.f32 %v2213, %v2295
      %2297 = vmatmul.bf16.gmra.mxu0 %v1795
      %v2298 = vpop.f32.mrf.mxu0
      %v2299 = vadd.f32 %v2216, %v2298
      %v2300 = vpop.f32.mrf.mxu0
      %v2301 = vadd.f32 %v2218, %v2300
      %2302 = vmatmul.bf16.gmra.mxu0 %v1803
      %v2303 = vpop.f32.mrf.mxu0
      %v2304 = vadd.f32 %v2221, %v2303
      %v2305 = vpop.f32.mrf.mxu0
      %v2306 = vadd.f32 %v2223, %v2305
      %2307 = vmatmul.bf16.gmra.mxu0 %v1811
      %v2308 = vpop.f32.mrf.mxu0
      %v2309 = vadd.f32 %v2226, %v2308
      %v2310 = vpop.f32.mrf.mxu0
      %v2311 = vadd.f32 %v2228, %v2310
      %2312 = vmatmul.bf16.gmra.mxu0 %v1819
      %v2313 = vpop.f32.mrf.mxu0
      %v2314 = vadd.f32 %v2231, %v2313
      %v2315 = vpop.f32.mrf.mxu0
      %v2316 = vadd.f32 %v2233, %v2315
      %2317 = vmatmul.bf16.gmra.mxu0 %v1827
      %v2318 = vpop.f32.mrf.mxu0
      %v2319 = vadd.f32 %v2236, %v2318
      %v2320 = vpop.f32.mrf.mxu0
      %v2321 = vadd.f32 %v2238, %v2320
      %2322 = vmatmul.bf16.gmra.mxu0 %v1835
      %v2323 = vpop.f32.mrf.mxu0
      %v2324 = vadd.f32 %v2241, %v2323
      %v2325 = vpop.f32.mrf.mxu0
      %2326 = vdwg.mxu0
      %2327 = vmatpush.bf16.msra.mxu0 %v1354
      %2328 = vmatpush.bf16.msra.mxu0 %v1353
      %2329 = vmatpush.bf16.msra.mxu0 %v1352
      %2330 = vmatpush.bf16.msra.mxu0 %v1351
      %2331 = vmatpush.bf16.msra.mxu0 %v1350
      %2332 = vmatpush.bf16.msra.mxu0 %v1349
      %2333 = vmatpush.bf16.msra.mxu0 %v1348
      %2334 = vmatpush.bf16.msra.mxu0 %v1347
      %2335 = vmatmul.bf16.gmra.mxu0 %v1724
      %v2336 = vpop.f32.mrf.mxu0
      %v2337 = vadd.f32 %v2254, %v2336
      %v2338 = vpop.f32.mrf.mxu0
      %v2339 = vadd.f32 %v2256, %v2338
      %2340 = vmatmul.bf16.gmra.mxu0 %v1732
      %v2341 = vpop.f32.mrf.mxu0
      %v2342 = vadd.f32 %v2259, %v2341
      %v2343 = vpop.f32.mrf.mxu0
      %v2344 = vadd.f32 %v2261, %v2343
      %2345 = vmatmul.bf16.gmra.mxu0 %v1740
      %v2346 = vpop.f32.mrf.mxu0
      %v2347 = vadd.f32 %v2264, %v2346
      %v2348 = vpop.f32.mrf.mxu0
      %v2349 = vadd.f32 %v2266, %v2348
      %2350 = vmatmul.bf16.gmra.mxu0 %v1748
      %v2351 = vpop.f32.mrf.mxu0
      %v2352 = vadd.f32 %v2269, %v2351
      %v2353 = vpop.f32.mrf.mxu0
      %v2354 = vadd.f32 %v2271, %v2353
      %2355 = vmatmul.bf16.gmra.mxu0 %v1756
      %v2356 = vpop.f32.mrf.mxu0
      %v2357 = vadd.f32 %v2274, %v2356
      %v2358 = vpop.f32.mrf.mxu0
      %v2359 = vadd.f32 %v2276, %v2358
      %2360 = vmatmul.bf16.gmra.mxu0 %v1764
      %v2361 = vpop.f32.mrf.mxu0
      %v2362 = vadd.f32 %v2279, %v2361
      %v2363 = vpop.f32.mrf.mxu0
      %v2364 = vadd.f32 %v2281, %v2363
      %2365 = vmatmul.bf16.gmra.mxu0 %v1772
      %v2366 = vpop.f32.mrf.mxu0
      %v2367 = vadd.f32 %v2284, %v2366
      %v2368 = vpop.f32.mrf.mxu0
      %v2369 = vadd.f32 %v2286, %v2368
      %2370 = vmatmul.bf16.gmra.mxu0 %v1780
      %v2371 = vpop.f32.mrf.mxu0
      %v2372 = vadd.f32 %v2289, %v2371
      %v2373 = vpop.f32.mrf.mxu0
      %v2374 = vadd.f32 %v2291, %v2373
      %2375 = vmatmul.bf16.gmra.mxu0 %v1788
      %v2376 = vpop.f32.mrf.mxu0
      %v2377 = vadd.f32 %v2294, %v2376
      %v2378 = vpop.f32.mrf.mxu0
      %v2379 = vadd.f32 %v2296, %v2378
      %2380 = vmatmul.bf16.gmra.mxu0 %v1796
      %v2381 = vpop.f32.mrf.mxu0
      %v2382 = vadd.f32 %v2299, %v2381
      %v2383 = vpop.f32.mrf.mxu0
      %v2384 = vadd.f32 %v2301, %v2383
      %2385 = vmatmul.bf16.gmra.mxu0 %v1804
      %v2386 = vpop.f32.mrf.mxu0
      %v2387 = vadd.f32 %v2304, %v2386
      %v2388 = vpop.f32.mrf.mxu0
      %v2389 = vadd.f32 %v2306, %v2388
      %2390 = vmatmul.bf16.gmra.mxu0 %v1812
      %v2391 = vpop.f32.mrf.mxu0
      %v2392 = vadd.f32 %v2309, %v2391
      %v2393 = vpop.f32.mrf.mxu0
      %v2394 = vadd.f32 %v2311, %v2393
      %2395 = vmatmul.bf16.gmra.mxu0 %v1820
      %v2396 = vpop.f32.mrf.mxu0
      %v2397 = vadd.f32 %v2314, %v2396
      %v2398 = vpop.f32.mrf.mxu0
      %v2399 = vadd.f32 %v2316, %v2398
      %2400 = vmatmul.bf16.gmra.mxu0 %v1828
      %v2401 = vpop.f32.mrf.mxu0
      %v2402 = vadd.f32 %v2319, %v2401
      %v2403 = vpop.f32.mrf.mxu0
      %v2404 = vadd.f32 %v2321, %v2403
      %2405 = vmatmul.bf16.gmra.mxu0 %v1836
      %v2406 = vpop.f32.mrf.mxu0
      %v2407 = vadd.f32 %v2324, %v2406
      %v2408 = vpop.f32.mrf.mxu0
      %2409 = vdwg.mxu0
      %2410 = vmatpush.bf16.msra.mxu0 %v1362
      %2411 = vmatpush.bf16.msra.mxu0 %v1361
      %2412 = vmatpush.bf16.msra.mxu0 %v1360
      %2413 = vmatpush.bf16.msra.mxu0 %v1359
      %2414 = vmatpush.bf16.msra.mxu0 %v1358
      %2415 = vmatpush.bf16.msra.mxu0 %v1357
      %2416 = vmatpush.bf16.msra.mxu0 %v1356
      %2417 = vmatpush.bf16.msra.mxu0 %v1355
      %2418 = vmatmul.bf16.gmra.mxu0 %v1725
      %v2419 = vpop.f32.mrf.mxu0
      %v2420 = vadd.f32 %v2337, %v2419
      %v2421 = vpop.f32.mrf.mxu0
      %v2422 = vadd.f32 %v2339, %v2421
      %2423 = vmatmul.bf16.gmra.mxu0 %v1733
      %v2424 = vpop.f32.mrf.mxu0
      %v2425 = vadd.f32 %v2342, %v2424
      %v2426 = vpop.f32.mrf.mxu0
      %v2427 = vadd.f32 %v2344, %v2426
      %2428 = vmatmul.bf16.gmra.mxu0 %v1741
      %v2429 = vpop.f32.mrf.mxu0
      %v2430 = vadd.f32 %v2347, %v2429
      %v2431 = vpop.f32.mrf.mxu0
      %v2432 = vadd.f32 %v2349, %v2431
      %2433 = vmatmul.bf16.gmra.mxu0 %v1749
      %v2434 = vpop.f32.mrf.mxu0
      %v2435 = vadd.f32 %v2352, %v2434
      %v2436 = vpop.f32.mrf.mxu0
      %v2437 = vadd.f32 %v2354, %v2436
      %2438 = vmatmul.bf16.gmra.mxu0 %v1757
      %v2439 = vpop.f32.mrf.mxu0
      %v2440 = vadd.f32 %v2357, %v2439
      %v2441 = vpop.f32.mrf.mxu0
      %v2442 = vadd.f32 %v2359, %v2441
      %2443 = vmatmul.bf16.gmra.mxu0 %v1765
      %v2444 = vpop.f32.mrf.mxu0
      %v2445 = vadd.f32 %v2362, %v2444
      %v2446 = vpop.f32.mrf.mxu0
      %v2447 = vadd.f32 %v2364, %v2446
      %2448 = vmatmul.bf16.gmra.mxu0 %v1773
      %v2449 = vpop.f32.mrf.mxu0
      %v2450 = vadd.f32 %v2367, %v2449
      %v2451 = vpop.f32.mrf.mxu0
      %v2452 = vadd.f32 %v2369, %v2451
      %2453 = vmatmul.bf16.gmra.mxu0 %v1781
      %v2454 = vpop.f32.mrf.mxu0
      %v2455 = vadd.f32 %v2372, %v2454
      %v2456 = vpop.f32.mrf.mxu0
      %v2457 = vadd.f32 %v2374, %v2456
      %2458 = vmatmul.bf16.gmra.mxu0 %v1789
      %v2459 = vpop.f32.mrf.mxu0
      %v2460 = vadd.f32 %v2377, %v2459
      %v2461 = vpop.f32.mrf.mxu0
      %v2462 = vadd.f32 %v2379, %v2461
      %2463 = vmatmul.bf16.gmra.mxu0 %v1797
      %v2464 = vpop.f32.mrf.mxu0
      %v2465 = vadd.f32 %v2382, %v2464
      %v2466 = vpop.f32.mrf.mxu0
      %v2467 = vadd.f32 %v2384, %v2466
      %2468 = vmatmul.bf16.gmra.mxu0 %v1805
      %v2469 = vpop.f32.mrf.mxu0
      %v2470 = vadd.f32 %v2387, %v2469
      %v2471 = vpop.f32.mrf.mxu0
      %v2472 = vadd.f32 %v2389, %v2471
      %2473 = vmatmul.bf16.gmra.mxu0 %v1813
      %v2474 = vpop.f32.mrf.mxu0
      %v2475 = vadd.f32 %v2392, %v2474
      %v2476 = vpop.f32.mrf.mxu0
      %v2477 = vadd.f32 %v2394, %v2476
      %2478 = vmatmul.bf16.gmra.mxu0 %v1821
      %v2479 = vpop.f32.mrf.mxu0
      %v2480 = vadd.f32 %v2397, %v2479
      %v2481 = vpop.f32.mrf.mxu0
      %v2482 = vadd.f32 %v2399, %v2481
      %2483 = vmatmul.bf16.gmra.mxu0 %v1829
      %v2484 = vpop.f32.mrf.mxu0
      %v2485 = vadd.f32 %v2402, %v2484
      %v2486 = vpop.f32.mrf.mxu0
      %v2487 = vadd.f32 %v2404, %v2486
      %2488 = vmatmul.bf16.gmra.mxu0 %v1837
      %v2489 = vpop.f32.mrf.mxu0
      %v2490 = vadd.f32 %v2407, %v2489
      %v2491 = vpop.f32.mrf.mxu0
      %2492 = vdwg.mxu0
      %2493 = vmatpush.bf16.msra.mxu0 %v1370
      %2494 = vmatpush.bf16.msra.mxu0 %v1369
      %2495 = vmatpush.bf16.msra.mxu0 %v1368
      %2496 = vmatpush.bf16.msra.mxu0 %v1367
      %2497 = vmatpush.bf16.msra.mxu0 %v1366
      %2498 = vmatpush.bf16.msra.mxu0 %v1365
      %2499 = vmatpush.bf16.msra.mxu0 %v1364
      %2500 = vmatpush.bf16.msra.mxu0 %v1363
      %2501 = vmatmul.bf16.gmra.mxu0 %v1726
      %v2502 = vpop.f32.mrf.mxu0
      %v2503 = vadd.f32 %v2420, %v2502
      %v2504 = vpop.f32.mrf.mxu0
      %v2505 = vadd.f32 %v2422, %v2504
      %2506 = vmatmul.bf16.gmra.mxu0 %v1734
      %v2507 = vpop.f32.mrf.mxu0
      %v2508 = vadd.f32 %v2425, %v2507
      %v2509 = vpop.f32.mrf.mxu0
      %v2510 = vadd.f32 %v2427, %v2509
      %2511 = vmatmul.bf16.gmra.mxu0 %v1742
      %v2512 = vpop.f32.mrf.mxu0
      %v2513 = vadd.f32 %v2430, %v2512
      %v2514 = vpop.f32.mrf.mxu0
      %v2515 = vadd.f32 %v2432, %v2514
      %2516 = vmatmul.bf16.gmra.mxu0 %v1750
      %v2517 = vpop.f32.mrf.mxu0
      %v2518 = vadd.f32 %v2435, %v2517
      %v2519 = vpop.f32.mrf.mxu0
      %v2520 = vadd.f32 %v2437, %v2519
      %2521 = vmatmul.bf16.gmra.mxu0 %v1758
      %v2522 = vpop.f32.mrf.mxu0
      %v2523 = vadd.f32 %v2440, %v2522
      %v2524 = vpop.f32.mrf.mxu0
      %v2525 = vadd.f32 %v2442, %v2524
      %2526 = vmatmul.bf16.gmra.mxu0 %v1766
      %v2527 = vpop.f32.mrf.mxu0
      %v2528 = vadd.f32 %v2445, %v2527
      %v2529 = vpop.f32.mrf.mxu0
      %v2530 = vadd.f32 %v2447, %v2529
      %2531 = vmatmul.bf16.gmra.mxu0 %v1774
      %v2532 = vpop.f32.mrf.mxu0
      %v2533 = vadd.f32 %v2450, %v2532
      %v2534 = vpop.f32.mrf.mxu0
      %v2535 = vadd.f32 %v2452, %v2534
      %2536 = vmatmul.bf16.gmra.mxu0 %v1782
      %v2537 = vpop.f32.mrf.mxu0
      %v2538 = vadd.f32 %v2455, %v2537
      %v2539 = vpop.f32.mrf.mxu0
      %v2540 = vadd.f32 %v2457, %v2539
      %2541 = vmatmul.bf16.gmra.mxu0 %v1790
      %v2542 = vpop.f32.mrf.mxu0
      %v2543 = vadd.f32 %v2460, %v2542
      %v2544 = vpop.f32.mrf.mxu0
      %v2545 = vadd.f32 %v2462, %v2544
      %2546 = vmatmul.bf16.gmra.mxu0 %v1798
      %v2547 = vpop.f32.mrf.mxu0
      %v2548 = vadd.f32 %v2465, %v2547
      %v2549 = vpop.f32.mrf.mxu0
      %v2550 = vadd.f32 %v2467, %v2549
      %2551 = vmatmul.bf16.gmra.mxu0 %v1806
      %v2552 = vpop.f32.mrf.mxu0
      %v2553 = vadd.f32 %v2470, %v2552
      %v2554 = vpop.f32.mrf.mxu0
      %v2555 = vadd.f32 %v2472, %v2554
      %2556 = vmatmul.bf16.gmra.mxu0 %v1814
      %v2557 = vpop.f32.mrf.mxu0
      %v2558 = vadd.f32 %v2475, %v2557
      %v2559 = vpop.f32.mrf.mxu0
      %v2560 = vadd.f32 %v2477, %v2559
      %2561 = vmatmul.bf16.gmra.mxu0 %v1822
      %v2562 = vpop.f32.mrf.mxu0
      %v2563 = vadd.f32 %v2480, %v2562
      %v2564 = vpop.f32.mrf.mxu0
      %v2565 = vadd.f32 %v2482, %v2564
      %2566 = vmatmul.bf16.gmra.mxu0 %v1830
      %v2567 = vpop.f32.mrf.mxu0
      %v2568 = vadd.f32 %v2485, %v2567
      %v2569 = vpop.f32.mrf.mxu0
      %v2570 = vadd.f32 %v2487, %v2569
      %2571 = vmatmul.bf16.gmra.mxu0 %v1838
      %v2572 = vpop.f32.mrf.mxu0
      %v2573 = vadd.f32 %v2490, %v2572
      %v2574 = vpop.f32.mrf.mxu0
      %2575 = vdwg.mxu0
      %2576 = vmatpush.bf16.msra.mxu0 0
      %2577 = vmatpush.bf16.msra.mxu0 0
      %2578 = vmatpush.bf16.msra.mxu0 0
      %2579 = vmatpush.bf16.msra.mxu0 0
      %2580 = vmatpush.bf16.msra.mxu0 0
      %2581 = vmatpush.bf16.msra.mxu0 0
      %2582 = vmatpush.bf16.msra.mxu0 0
      %2583 = vmatpush.bf16.msra.mxu0 %v1993
      %2584 = vmatmul.bf16.gmra.mxu0 %v1947
      %v2585 = vpop.f32.mrf.mxu0
      %v2586 = vadd.f32 %v2503, %v2585
      %v2587 = vpop.f32.mrf.mxu0
      %v2588 = vadd.f32 %v2505, %v2587
      %2589 = vmatmul.bf16.gmra.mxu0 %v1950
      %v2590 = vpop.f32.mrf.mxu0
      %v2591 = vadd.f32 %v2508, %v2590
      %v2592 = vpop.f32.mrf.mxu0
      %v2593 = vadd.f32 %v2510, %v2592
      %2594 = vmatmul.bf16.gmra.mxu0 %v1953
      %v2595 = vpop.f32.mrf.mxu0
      %v2596 = vadd.f32 %v2513, %v2595
      %v2597 = vpop.f32.mrf.mxu0
      %v2598 = vadd.f32 %v2515, %v2597
      %2599 = vmatmul.bf16.gmra.mxu0 %v1956
      %v2600 = vpop.f32.mrf.mxu0
      %v2601 = vadd.f32 %v2518, %v2600
      %v2602 = vpop.f32.mrf.mxu0
      %v2603 = vadd.f32 %v2520, %v2602
      %2604 = vmatmul.bf16.gmra.mxu0 %v1959
      %v2605 = vpop.f32.mrf.mxu0
      %v2606 = vadd.f32 %v2523, %v2605
      %v2607 = vpop.f32.mrf.mxu0
      %v2608 = vadd.f32 %v2525, %v2607
      %2609 = vmatmul.bf16.gmra.mxu0 %v1962
      %v2610 = vpop.f32.mrf.mxu0
      %v2611 = vadd.f32 %v2528, %v2610
      %v2612 = vpop.f32.mrf.mxu0
      %v2613 = vadd.f32 %v2530, %v2612
      %2614 = vmatmul.bf16.gmra.mxu0 %v1965
      %v2615 = vpop.f32.mrf.mxu0
      %v2616 = vadd.f32 %v2533, %v2615
      %v2617 = vpop.f32.mrf.mxu0
      %v2618 = vadd.f32 %v2535, %v2617
      %2619 = vmatmul.bf16.gmra.mxu0 %v1968
      %v2620 = vpop.f32.mrf.mxu0
      %v2621 = vadd.f32 %v2538, %v2620
      %v2622 = vpop.f32.mrf.mxu0
      %v2623 = vadd.f32 %v2540, %v2622
      %2624 = vmatmul.bf16.gmra.mxu0 %v1971
      %v2625 = vpop.f32.mrf.mxu0
      %v2626 = vadd.f32 %v2543, %v2625
      %v2627 = vpop.f32.mrf.mxu0
      %v2628 = vadd.f32 %v2545, %v2627
      %2629 = vmatmul.bf16.gmra.mxu0 %v1974
      %v2630 = vpop.f32.mrf.mxu0
      %v2631 = vadd.f32 %v2548, %v2630
      %v2632 = vpop.f32.mrf.mxu0
      %v2633 = vadd.f32 %v2550, %v2632
      %2634 = vmatmul.bf16.gmra.mxu0 %v1977
      %v2635 = vpop.f32.mrf.mxu0
      %v2636 = vadd.f32 %v2553, %v2635
      %v2637 = vpop.f32.mrf.mxu0
      %v2638 = vadd.f32 %v2555, %v2637
      %2639 = vmatmul.bf16.gmra.mxu0 %v1980
      %v2640 = vpop.f32.mrf.mxu0
      %v2641 = vadd.f32 %v2558, %v2640
      %v2642 = vpop.f32.mrf.mxu0
      %v2643 = vadd.f32 %v2560, %v2642
      %2644 = vmatmul.bf16.gmra.mxu0 %v1983
      %v2645 = vpop.f32.mrf.mxu0
      %v2646 = vadd.f32 %v2563, %v2645
      %v2647 = vpop.f32.mrf.mxu0
      %v2648 = vadd.f32 %v2565, %v2647
      %2649 = vmatmul.bf16.gmra.mxu0 %v1986
      %v2650 = vpop.f32.mrf.mxu0
      %v2651 = vadd.f32 %v2568, %v2650
      %v2652 = vpop.f32.mrf.mxu0
      %v2653 = vadd.f32 %v2570, %v2652
      %2654 = vmatmul.bf16.gmra.mxu0 %v1989
      %v2655 = vpop.f32.mrf.mxu0
      %v2656 = vadd.f32 %v2573, %v2655
      %v2657 = vpop.f32.mrf.mxu0
      %2658 = vdwg.mxu0
      %v2659 = vmax.f32 %v2586, 0.0
      %v2660 = vmax.f32 %v2588, 0.0
      %v2661 = vmax.f32 %v2591, 0.0
      %v2662 = vmax.f32 %v2593, 0.0
      %v2663 = vmax.f32 %v2596, 0.0
      %v2664 = vmax.f32 %v2598, 0.0
      %v2665 = vmax.f32 %v2601, 0.0
      %v2666 = vmax.f32 %v2603, 0.0
      %v2667 = vmax.f32 %v2606, 0.0
      %v2668 = vmax.f32 %v2608, 0.0
      %v2669 = vmax.f32 %v2611, 0.0
      %v2670 = vmax.f32 %v2613, 0.0
      %v2671 = vmax.f32 %v2616, 0.0
      %v2672 = vmax.f32 %v2618, 0.0
      %v2673 = vmax.f32 %v2621, 0.0
      %v2674 = vmax.f32 %v2623, 0.0
      %v2675 = vmax.f32 %v2626, 0.0
      %v2676 = vmax.f32 %v2628, 0.0
      %v2677 = vmax.f32 %v2631, 0.0
      %v2678 = vmax.f32 %v2633, 0.0
      %v2679 = vmax.f32 %v2636, 0.0
      %v2680 = vmax.f32 %v2638, 0.0
      %v2681 = vmax.f32 %v2641, 0.0
      %v2682 = vmax.f32 %v2643, 0.0
      %v2683 = vmax.f32 %v2646, 0.0
      %v2684 = vmax.f32 %v2648, 0.0
      %v2685 = vmax.f32 %v2651, 0.0
      %v2686 = vmax.f32 %v2653, 0.0
      %v2687 = vmax.f32 %v2656, 0.0
      %v2688 = vpack.c.bf16 %v2659, %v2659
      %v2689 = vpack.c.bf16 %v2660, %v2660
      %v2690 = vpack.c.bf16 %v2661, %v2661
      %v2691 = vpack.c.bf16 %v2662, %v2662
      %v2692 = vpack.c.bf16 %v2663, %v2663
      %v2693 = vpack.c.bf16 %v2664, %v2664
      %v2694 = vpack.c.bf16 %v2665, %v2665
      %v2695 = vpack.c.bf16 %v2666, %v2666
      %v2696 = vpack.c.bf16 %v2667, %v2667
      %v2697 = vpack.c.bf16 %v2668, %v2668
      %v2698 = vpack.c.bf16 %v2669, %v2669
      %v2699 = vpack.c.bf16 %v2670, %v2670
      %v2700 = vpack.c.bf16 %v2671, %v2671
      %v2701 = vpack.c.bf16 %v2672, %v2672
      %v2702 = vpack.c.bf16 %v2673, %v2673
      %v2703 = vpack.c.bf16 %v2674, %v2674
      %v2704 = vpack.c.bf16 %v2675, %v2675
      %v2705 = vpack.c.bf16 %v2676, %v2676
      %v2706 = vpack.c.bf16 %v2677, %v2677
      %v2707 = vpack.c.bf16 %v2678, %v2678
      %v2708 = vpack.c.bf16 %v2679, %v2679
      %v2709 = vpack.c.bf16 %v2680, %v2680
      %v2710 = vpack.c.bf16 %v2681, %v2681
      %v2711 = vpack.c.bf16 %v2682, %v2682
      %v2712 = vpack.c.bf16 %v2683, %v2683
      %v2713 = vpack.c.bf16 %v2684, %v2684
      %v2714 = vpack.c.bf16 %v2685, %v2685
      %v2715 = vpack.c.bf16 %v2686, %v2686
      %v2716 = vpack.c.bf16 %v2687, %v2687
      %2717 = vst [vmem:[%s197] sm:$0xf] %v2688
      %2718 = vst [vmem:[%s197 + $0x4] sm:$0xf] %v2689
      %2719 = vst [vmem:[%s197 + $0x8] sm:$0xf] %v2690
      %2720 = vst [vmem:[%s197 + $0xc] sm:$0xf] %v2691
      %2721 = vst [vmem:[%s197 + $0x10] sm:$0xf] %v2692
      %2722 = vst [vmem:[%s197 + $0x14] sm:$0xf] %v2693
      %2723 = vst [vmem:[%s197 + $0x18] sm:$0xf] %v2694
      %2724 = vst [vmem:[%s197 + $0x1c] sm:$0xf] %v2695
      %2725 = vst [vmem:[%s197 + $0x20] sm:$0xf] %v2696
      %2726 = vst [vmem:[%s197 + $0x24] sm:$0xf] %v2697
      %2727 = vst [vmem:[%s197 + $0x28] sm:$0xf] %v2698
      %2728 = vst [vmem:[%s197 + $0x2c] sm:$0xf] %v2699
      %2729 = vst [vmem:[%s197 + $0x30] sm:$0xf] %v2700
      %2730 = vst [vmem:[%s197 + $0x34] sm:$0xf] %v2701
      %2731 = vst [vmem:[%s197 + $0x38] sm:$0xf] %v2702
      %2732 = vst [vmem:[%s197 + $0x3c] sm:$0xf] %v2703
      %2733 = vst [vmem:[%s197 + $0x40] sm:$0xf] %v2704
      %2734 = vst [vmem:[%s197 + $0x44] sm:$0xf] %v2705
      %2735 = vst [vmem:[%s197 + $0x48] sm:$0xf] %v2706
      %2736 = vst [vmem:[%s197 + $0x4c] sm:$0xf] %v2707
      %2737 = vst [vmem:[%s197 + $0x50] sm:$0xf] %v2708
      %2738 = vst [vmem:[%s197 + $0x54] sm:$0xf] %v2709
      %2739 = vst [vmem:[%s197 + $0x58] sm:$0xf] %v2710
      %2740 = vst [vmem:[%s197 + $0x5c] sm:$0xf] %v2711
      %2741 = vst [vmem:[%s197 + $0x60] sm:$0xf] %v2712
      %2742 = vst [vmem:[%s197 + $0x64] sm:$0xf] %v2713
      %2743 = vst [vmem:[%s197 + $0x68] sm:$0xf] %v2714
      %2744 = vst [vmem:[%s197 + $0x6c] sm:$0xf] %v2715
      %vm2745 = vcmask 1040384
      %vm2746 = vsmask.f32 256
      %vm2747 = vmand %vm2745, %vm2746
      %v2748 = vld [vmem:[%s197 + $0x70] sm:$0x1]
      %v2749 = vsel %vm2747, %v2716, %v2748
      %2750 = vst [vmem:[%s197 + $0x70] sm:$0x1] %v2749
      %p2751 = scmp.lt.s32.totalorder %s15, 1
      %s2752 = scalar_select %p2751, %s15, 1
      %s2753 = smul.addr %s2752, 29
      %s2754 = smul.addr %s2753, 4
      %s2755 = scalar_lea.vmem %s4, %s2754
      // Predicated region
      $region37: #{lenet_forward.3} parent=35 // pred_check
        %p2756 = pneg %p122
      $region38: #{lenet_forward.3} parent=35 // pred_check_branch
        %2758 = sbr.rel (%p2756) target = $region40
      $region39: #{lenet_forward.3} parent=35 // pred_region
        _
      $region40: #{lenet_forward.3} parent=35 // pred_fallthru
        _
    $region36: #{lenet_forward.3} parent=5 // pred_fallthru
      _
    %p2759 = scmp.le.s32.totalorder 2, %s10
    // Predicated region
    $region41: #{lenet_forward.3} parent=5 // pred_check
      %p2760 = pneg %p2759
    $region42: #{lenet_forward.3} parent=5 // pred_check_branch
      %2762 = sbr.rel (%p2760) target = $region44
    $region43: #{lenet_forward.3} parent=5 // pred_region
      %s2763 = ssub.s32 %s10, 2
      // Predicated region
      $region45: #{lenet_forward.3} parent=43 // pred_check
        %p2764 = pneg %p128
      $region46: #{lenet_forward.3} parent=43 // pred_check_branch
        %2766 = sbr.rel (%p2764) target = $region48
      $region47: #{lenet_forward.3} parent=43 // pred_region
        %p2767 = scmp.lt.s32.totalorder %s16, 1
        %s2768 = scalar_select %p2767, %s16, 1
        %s2769 = smul.addr %s2768, 29
        %s2770 = smul.addr %s2769, 4
        %s2771 = scalar_lea.vmem %s4, %s2770
      $region48: #{lenet_forward.3} parent=43 // pred_fallthru
        _
    $region44: #{lenet_forward.3} parent=5 // pred_fallthru
      _
  $region6: #{lenet_forward.3} parent=0 // loop_footer
    %s14 = sadd.s32 1, %s10
  $region7: #{lenet_forward.3} parent=0 // loop_footer_branch
    %9 = sbr.rel target = $region3
  $region8: #{lenet_forward.3} parent=0 // loop_exit
    _

// kernel: lenet_forward.4
$region0: #{lenet_forward.4}
  #allocation0 [shape = 'u32[]', space=smem, size = 0x4, offset = 0x4, fixed_abs, tag = 'smem constant byte address 0x4 - core index']
  #allocation1 [shape = 'u32[72,128]{1,0:T(1,128)}', space=vmem, size = 0x9000, scoped, tag = 'internal scratch']
  %s0 = inlined_call_operand.vmem [shape: bf16[2,100,150], index: 0, kind: input, shape index: {}]
  %s1 = inlined_call_operand.vmem [shape: bf16[150,128], index: 1, kind: input, shape index: {}]
  %s2 = inlined_call_operand.vmem [shape: f32[1,128], index: 2, kind: input, shape index: {}]
  %s3 = inlined_call_operand.vmem [shape: bf16[25,100], index: 3, kind: input, shape index: {}]
  %s4 = inlined_call_operand.vmem [shape: bf16[2,25,128], index: 4, kind: output, shape index: {}]
  %s5 = sld [smem:[#allocation0]]
  $region49: #{lenet_forward.4} parent=0
    _
  %s7 = ssub.s32 1, %s5
  %s8 = scalar_select 0, %s7, %s5
  loop: start=0, step=1, limit=4
  $region2: #{lenet_forward.4} parent=0 // loop_pre_header
    _
  $region3: #{lenet_forward.4} parent=0 // loop_header
    %s10 = sphi 0, %s14
    %p11 = scmp.ge.s32.totalorder %s10, 4
    %s20 = sphi 0, %s22
    %s23 = sphi 0, %s20
    %s24 = sphi 0, %s23
    %s40 = sphi 0, %s24
    %s44 = sphi 0, %s44
    %s46 = sphi 0, %s44
    %s47 = sphi 0, %s46
    %s61 = sphi 0, %s47
    %s65 = sphi 0, %s65
    %s67 = sphi 0, %s65
    %s68 = sphi 0, %s67
    %s82 = sphi 0, %s68
    %s86 = sphi 0, %s86
    %s88 = sphi 0, %s86
    %s89 = sphi 0, %s88
    %s103 = sphi 0, %s89
    %s109 = sphi 0, %s111
    %s112 = sphi 0, %s109
    %s113 = sphi 0, %s112
    %s129 = sphi 0, %s113
  $region4: #{lenet_forward.4} parent=0 // loop_header_branch
    %13 = sbr.rel (%p11) target = $region8
  $region5: #{lenet_forward.4} parent=0 // loop_body
    %s15 = ssub.s32 %s10, 1
    %s16 = ssub.s32 %s10, 2
    %s17 = sadd.s32 %s10, 1
    %s18 = ssub.s32 %s10, %s17
    %p19 = scmp.eq.s32.totalorder %s18, 0
    %s21 = sadd.s32 %s20, 1
    %s22 = scalar_select %p19, %s20, %s21
    %p25 = pneg %p19
    %p26 = scmp.eq.s32.totalorder %s10, 1
    %p27 = por %p25, %p26
    %p28 = scmp.ne.s32.totalorder %s20, %s23
    %p29 = scmp.eq.s32.totalorder %s10, 0
    %p30 = por %p28, %p29
    %p31 = scmp.ne.s32.totalorder %s20, %s23
    %p32 = scmp.eq.s32.totalorder %s15, 1
    %p33 = por %p31, %p32
    %p34 = scmp.ne.s32.totalorder %s23, %s24
    %p35 = scmp.eq.s32.totalorder %s15, 0
    %p36 = por %p34, %p35
    %p37 = scmp.ne.s32.totalorder %s23, %s24
    %p38 = scmp.eq.s32.totalorder %s16, 1
    %p39 = por %p37, %p38
    %p41 = scmp.ne.s32.totalorder %s24, %s40
    %p42 = scmp.eq.s32.totalorder %s16, 0
    %p43 = por %p41, %p42
    %s45 = sadd.s32 %s44, 1
    %p48 = scmp.eq.s32.totalorder %s10, 1
    %p49 = scmp.ne.s32.totalorder %s44, %s46
    %p50 = scmp.eq.s32.totalorder %s10, 0
    %p51 = por %p49, %p50
    %p52 = scmp.ne.s32.totalorder %s44, %s46
    %p53 = scmp.eq.s32.totalorder %s15, 1
    %p54 = por %p52, %p53
    %p55 = scmp.ne.s32.totalorder %s46, %s47
    %p56 = scmp.eq.s32.totalorder %s15, 0
    %p57 = por %p55, %p56
    %p58 = scmp.ne.s32.totalorder %s46, %s47
    %p59 = scmp.eq.s32.totalorder %s16, 1
    %p60 = por %p58, %p59
    %p62 = scmp.ne.s32.totalorder %s47, %s61
    %p63 = scmp.eq.s32.totalorder %s16, 0
    %p64 = por %p62, %p63
    %s66 = sadd.s32 %s65, 1
    %p69 = scmp.eq.s32.totalorder %s10, 1
    %p70 = scmp.ne.s32.totalorder %s65, %s67
    %p71 = scmp.eq.s32.totalorder %s10, 0
    %p72 = por %p70, %p71
    %p73 = scmp.ne.s32.totalorder %s65, %s67
    %p74 = scmp.eq.s32.totalorder %s15, 1
    %p75 = por %p73, %p74
    %p76 = scmp.ne.s32.totalorder %s67, %s68
    %p77 = scmp.eq.s32.totalorder %s15, 0
    %p78 = por %p76, %p77
    %p79 = scmp.ne.s32.totalorder %s67, %s68
    %p80 = scmp.eq.s32.totalorder %s16, 1
    %p81 = por %p79, %p80
    %p83 = scmp.ne.s32.totalorder %s68, %s82
    %p84 = scmp.eq.s32.totalorder %s16, 0
    %p85 = por %p83, %p84
    %s87 = sadd.s32 %s86, 1
    %p90 = scmp.eq.s32.totalorder %s10, 1
    %p91 = scmp.ne.s32.totalorder %s86, %s88
    %p92 = scmp.eq.s32.totalorder %s10, 0
    %p93 = por %p91, %p92
    %p94 = scmp.ne.s32.totalorder %s86, %s88
    %p95 = scmp.eq.s32.totalorder %s15, 1
    %p96 = por %p94, %p95
    %p97 = scmp.ne.s32.totalorder %s88, %s89
    %p98 = scmp.eq.s32.totalorder %s15, 0
    %p99 = por %p97, %p98
    %p100 = scmp.ne.s32.totalorder %s88, %s89
    %p101 = scmp.eq.s32.totalorder %s16, 1
    %p102 = por %p100, %p101
    %p104 = scmp.ne.s32.totalorder %s89, %s103
    %p105 = scmp.eq.s32.totalorder %s16, 0
    %p106 = por %p104, %p105
    %s107 = ssub.s32 %s10, %s17
    %p108 = scmp.eq.s32.totalorder %s107, 0
    %s110 = sadd.s32 %s109, 1
    %s111 = scalar_select %p108, %s109, %s110
    %p114 = pneg %p108
    %p115 = scmp.eq.s32.totalorder %s10, 1
    %p116 = por %p114, %p115
    %p117 = scmp.ne.s32.totalorder %s109, %s112
    %p118 = scmp.eq.s32.totalorder %s10, 0
    %p119 = por %p117, %p118
    %p120 = scmp.ne.s32.totalorder %s109, %s112
    %p121 = scmp.eq.s32.totalorder %s15, 1
    %p122 = por %p120, %p121
    %p123 = scmp.ne.s32.totalorder %s112, %s113
    %p124 = scmp.eq.s32.totalorder %s15, 0
    %p125 = por %p123, %p124
    %p126 = scmp.ne.s32.totalorder %s112, %s113
    %p127 = scmp.eq.s32.totalorder %s16, 1
    %p128 = por %p126, %p127
    %p130 = scmp.ne.s32.totalorder %s113, %s129
    %p131 = scmp.eq.s32.totalorder %s16, 0
    %p132 = por %p130, %p131
    %p133 = scmp.le.s32.totalorder 1, %s10
    %p134 = scmp.lt.s32.totalorder %s10, 3
    %p135 = pnand %p133, %p134
    %p136 = pneg %p135
    // Predicated region
    $region9: #{lenet_forward.4} parent=5 // pred_check
      _
    $region10: #{lenet_forward.4} parent=5 // pred_check_branch
      %138 = sbr.rel (%p135) target = $region12
    $region11: #{lenet_forward.4} parent=5 // pred_region
      %s139 = ssub.s32 %s10, 1
      // Predicated region
      $region13: #{lenet_forward.4} parent=11 // pred_check
        %p140 = pneg %p57
      $region14: #{lenet_forward.4} parent=11 // pred_check_branch
        %142 = sbr.rel (%p140) target = $region16
      $region15: #{lenet_forward.4} parent=11 // pred_region
        _
      $region16: #{lenet_forward.4} parent=11 // pred_fallthru
        _
      // Predicated region
      $region17: #{lenet_forward.4} parent=11 // pred_check
        %p143 = pneg %p78
      $region18: #{lenet_forward.4} parent=11 // pred_check_branch
        %145 = sbr.rel (%p143) target = $region20
      $region19: #{lenet_forward.4} parent=11 // pred_region
        _
      $region20: #{lenet_forward.4} parent=11 // pred_fallthru
        _
      // Predicated region
      $region21: #{lenet_forward.4} parent=11 // pred_check
        %p146 = pneg %p99
      $region22: #{lenet_forward.4} parent=11 // pred_check_branch
        %148 = sbr.rel (%p146) target = $region24
      $region23: #{lenet_forward.4} parent=11 // pred_region
        _
      $region24: #{lenet_forward.4} parent=11 // pred_fallthru
        _
    $region12: #{lenet_forward.4} parent=5 // pred_fallthru
      _
    %p149 = scmp.lt.s32.totalorder %s10, 2
    // Predicated region
    $region25: #{lenet_forward.4} parent=5 // pred_check
      %p150 = pneg %p149
    $region26: #{lenet_forward.4} parent=5 // pred_check_branch
      %152 = sbr.rel (%p150) target = $region28
    $region27: #{lenet_forward.4} parent=5 // pred_region
      // Predicated region
      $region29: #{lenet_forward.4} parent=27 // pred_check
        %p153 = pneg %p30
      $region30: #{lenet_forward.4} parent=27 // pred_check_branch
        %155 = sbr.rel (%p153) target = $region32
      $region31: #{lenet_forward.4} parent=27 // pred_region
        %p156 = scmp.lt.s32.totalorder %s10, 1
        %s157 = scalar_select %p156, %s10, 1
        %s158 = smul.addr %s157, 26
        %s159 = smul.addr %s158, 4
        %s160 = scalar_lea.vmem %s0, %s159
      $region32: #{lenet_forward.4} parent=27 // pred_fallthru
        _
    $region28: #{lenet_forward.4} parent=5 // pred_fallthru
      _
    %p161 = scmp.le.s32.totalorder 1, %s10
    %p162 = scmp.lt.s32.totalorder %s10, 3
    %p163 = pnand %p161, %p162
    %p164 = pneg %p163
    // Predicated region
    $region33: #{lenet_forward.4} parent=5 // pred_check
      _
    $region34: #{lenet_forward.4} parent=5 // pred_check_branch
      %166 = sbr.rel (%p163) target = $region36
    $region35: #{lenet_forward.4} parent=5 // pred_region
      %s167 = ssub.s32 %s10, 1
      %p168 = scmp.lt.s32.totalorder %s15, 1
      %s169 = scalar_select %p168, %s15, 1
      %s170 = smul.addr %s169, 26
      %s171 = smul.addr %s170, 4
      %s172 = scalar_lea.vmem %s0, %s171
      %p173 = pneg %p36
      %p174 = pneg %p33
      %p175 = pneg %p57
      %p176 = pneg %p54
      %p177 = pneg %p78
      %p178 = pneg %p75
      %p179 = pneg %p99
      %p180 = pneg %p96
      %p181 = pneg %p125
      %p182 = pneg %p122
      %p183 = scmp.lt.s32.totalorder %s15, 1
      %s184 = scalar_select %p183, %s15, 1
      %s185 = smul.addr %s184, 4
      %s186 = smul.addr %s185, 4
      %s187 = scalar_lea.vmem %s4, %s186
      %p188 = scmp.lt.s32.totalorder %s15, 1
      %s189 = scalar_select %p188, %s15, 1
      %s190 = smul.addr %s189, 26
      %s191 = smul.addr %s190, 4
      %s192 = scalar_lea.vmem %s0, %s191
      %p193 = scmp.lt.s32.totalorder %s15, 1
      %s194 = scalar_select %p193, %s15, 1
      %s195 = smul.addr %s194, 4
      %s196 = smul.addr %s195, 4
      %s197 = scalar_lea.vmem %s4, %s196
      %v199 = vld [vmem:[%s192] sm:$0xff]
      %v200 = vld [vmem:[%s192 + $0x8] sm:$0xff]
      %v201 = vld [vmem:[%s192 + $0x10] sm:$0xff]
      %v202 = vld [vmem:[%s192 + $0x18] sm:$0xff]
      %v203 = vld [vmem:[%s192 + $0x20] sm:$0xff]
      %v204 = vld [vmem:[%s192 + $0x28] sm:$0xff]
      %v205 = vld [vmem:[%s192 + $0x30] sm:$0xff]
      %v206 = vld [vmem:[%s192 + $0x38] sm:$0xff]
      %v207 = vld [vmem:[%s192 + $0x40] sm:$0xff]
      %v208 = vld [vmem:[%s192 + $0x48] sm:$0xff]
      %v209 = vld [vmem:[%s192 + $0x50] sm:$0xff]
      %v210 = vld [vmem:[%s192 + $0x58] sm:$0xff]
      %v211 = vld [vmem:[%s192 + $0x60] sm:$0x33]
      %v212 = vld [vmem:[%s1] sm:$0xf]
      %v213 = vld [vmem:[%s1 + $0x4] sm:$0xf]
      %v214 = vld [vmem:[%s1 + $0x8] sm:$0xf]
      %v215 = vld [vmem:[%s1 + $0xc] sm:$0xf]
      %v216 = vld [vmem:[%s1 + $0x10] sm:$0xf]
      %v217 = vld [vmem:[%s1 + $0x14] sm:$0xf]
      %v218 = vld [vmem:[%s1 + $0x18] sm:$0xf]
      %v219 = vld [vmem:[%s1 + $0x1c] sm:$0xf]
      %v220 = vld [vmem:[%s1 + $0x20] sm:$0xf]
      %v221 = vld [vmem:[%s1 + $0x24] sm:$0xf]
      %v222 = vld [vmem:[%s1 + $0x28] sm:$0xf]
      %v223 = vld [vmem:[%s1 + $0x2c] sm:$0xf]
      %v224 = vld [vmem:[%s1 + $0x30] sm:$0xf]
      %v225 = vld [vmem:[%s1 + $0x34] sm:$0xf]
      %v226 = vld [vmem:[%s1 + $0x38] sm:$0xf]
      %v227 = vld [vmem:[%s1 + $0x3c] sm:$0xf]
      %v228 = vld [vmem:[%s1 + $0x40] sm:$0xf]
      %v229 = vld [vmem:[%s1 + $0x44] sm:$0xf]
      %v230 = vld [vmem:[%s1 + $0x48] sm:$0x7]
      %v231 = vld [vmem:[%s2] sm:$0x1]
      %v233 = vperm.slane %v231, 0
      %v248 = vunpack.c.l.b16 %v199
      %v249 = vunpack.c.h.b16 %v199
      %v250 = vunpack.c.l.b16 %v200
      %v251 = vunpack.c.h.b16 %v200
      %v252 = vunpack.c.l.b16 %v201
      %v253 = vunpack.c.h.b16 %v201
      %v254 = vunpack.c.l.b16 %v202
      %v255 = vunpack.c.h.b16 %v202
      %v256 = vunpack.c.l.b16 %v203
      %v257 = vunpack.c.h.b16 %v203
      %v258 = vunpack.c.l.b16 %v204
      %v259 = vunpack.c.h.b16 %v204
      %v260 = vunpack.c.l.b16 %v205
      %v261 = vunpack.c.h.b16 %v205
      %v262 = vunpack.c.l.b16 %v206
      %v263 = vunpack.c.h.b16 %v206
      %v264 = vunpack.c.l.b16 %v207
      %v265 = vunpack.c.h.b16 %v207
      %v266 = vunpack.c.l.b16 %v208
      %v267 = vunpack.c.h.b16 %v208
      %v268 = vunpack.c.l.b16 %v209
      %v269 = vunpack.c.h.b16 %v209
      %v270 = vunpack.c.l.b16 %v210
      %v271 = vunpack.c.h.b16 %v210
      %v272 = vunpack.c.l.b16 %v211
      %v273 = vunpack.c.h.b16 %v211
      %v274 = vpack.c.b16 %v250, %v248
      %v275 = vpack.c.b16 %v251, %v249
      %v276 = vpack.c.b16 %v254, %v252
      %v277 = vpack.c.b16 %v255, %v253
      %v278 = vpack.c.b16 %v258, %v256
      %v279 = vpack.c.b16 %v259, %v257
      %v280 = vpack.c.b16 %v262, %v260
      %v281 = vpack.c.b16 %v263, %v261
      %v282 = vpack.c.b16 %v266, %v264
      %v283 = vpack.c.b16 %v267, %v265
      %v284 = vpack.c.b16 %v270, %v268
      %v285 = vpack.c.b16 %v271, %v269
      %v286 = vpack.c.b16 %v272, %v272
      %v287 = vpack.c.b16 %v273, %v273
      %v314 = vunpack.c.l.b16 %v212
      %v315 = vunpack.c.l.b16 %v213
      %v316 = vunpack.c.l.b16 %v214
      %v317 = vunpack.c.l.b16 %v215
      %v318 = vunpack.c.l.b16 %v216
      %v319 = vunpack.c.l.b16 %v217
      %v320 = vunpack.c.l.b16 %v218
      %v321 = vunpack.c.l.b16 %v219
      %v322 = vunpack.c.l.b16 %v220
      %v323 = vunpack.c.l.b16 %v221
      %v324 = vunpack.c.l.b16 %v222
      %v325 = vunpack.c.l.b16 %v223
      %v326 = vunpack.c.l.b16 %v224
      %v327 = vunpack.c.l.b16 %v225
      %v328 = vunpack.c.l.b16 %v226
      %v329 = vunpack.c.l.b16 %v227
      %v330 = vunpack.c.l.b16 %v228
      %v331 = vunpack.c.l.b16 %v229
      %v332 = vunpack.c.l.b16 %v230
      %v333 = vpack.c.b16 %v315, %v314
      %v334 = vpack.c.b16 %v317, %v316
      %v335 = vpack.c.b16 %v319, %v318
      %v336 = vpack.c.b16 %v321, %v320
      %v337 = vpack.c.b16 %v323, %v322
      %v338 = vpack.c.b16 %v325, %v324
      %v339 = vpack.c.b16 %v327, %v326
      %v340 = vpack.c.b16 %v329, %v328
      %v341 = vpack.c.b16 %v331, %v330
      %v342 = vpack.c.b16 %v332, %v332
      %vm352 = vcmask 179200
      %v354 = vsel %vm352, %v275, 0
      %v357 = vsel %vm352, %v277, 0
      %v360 = vsel %vm352, %v279, 0
      %v363 = vsel %vm352, %v281, 0
      %v366 = vsel %vm352, %v283, 0
      %v369 = vsel %vm352, %v285, 0
      %v372 = vsel %vm352, %v287, 0
      %vm374 = vcmask 1042432
      %v376 = vsel %vm374, %v342, 0
      %378 = vmatpush.bf16.msra.mxu0 %v340
      %379 = vmatpush.bf16.msra.mxu0 %v339
      %380 = vmatpush.bf16.msra.mxu0 %v338
      %381 = vmatpush.bf16.msra.mxu0 %v337
      %382 = vmatpush.bf16.msra.mxu0 %v336
      %383 = vmatpush.bf16.msra.mxu0 %v335
      %384 = vmatpush.bf16.msra.mxu0 %v334
      %385 = vmatpush.bf16.msra.mxu0 %v333
      %386 = vmatmul.bf16.gmra.mxu0 %v274
      %v387 = vpop.f32.mrf.mxu0
      %v388 = vadd.f32 %v233, %v387
      %v389 = vpop.f32.mrf.mxu0
      %v390 = vadd.f32 %v233, %v389
      %391 = vmatmul.bf16.gmra.mxu0 %v276
      %v392 = vpop.f32.mrf.mxu0
      %v393 = vadd.f32 %v233, %v392
      %v394 = vpop.f32.mrf.mxu0
      %v395 = vadd.f32 %v233, %v394
      %396 = vmatmul.bf16.gmra.mxu0 %v278
      %v397 = vpop.f32.mrf.mxu0
      %v398 = vadd.f32 %v233, %v397
      %v399 = vpop.f32.mrf.mxu0
      %v400 = vadd.f32 %v233, %v399
      %401 = vmatmul.bf16.gmra.mxu0 %v280
      %v402 = vpop.f32.mrf.mxu0
      %v403 = vadd.f32 %v233, %v402
      %v404 = vpop.f32.mrf.mxu0
      %v405 = vadd.f32 %v233, %v404
      %406 = vmatmul.bf16.gmra.mxu0 %v282
      %v407 = vpop.f32.mrf.mxu0
      %v408 = vadd.f32 %v233, %v407
      %v409 = vpop.f32.mrf.mxu0
      %v410 = vadd.f32 %v233, %v409
      %411 = vmatmul.bf16.gmra.mxu0 %v284
      %v412 = vpop.f32.mrf.mxu0
      %v413 = vadd.f32 %v233, %v412
      %v414 = vpop.f32.mrf.mxu0
      %v415 = vadd.f32 %v233, %v414
      %416 = vmatmul.bf16.gmra.mxu0 %v286
      %v417 = vpop.f32.mrf.mxu0
      %v418 = vadd.f32 %v233, %v417
      %v419 = vpop.f32.mrf.mxu0
      %420 = vdwg.mxu0
      %421 = vmatpush.bf16.msra.mxu0 0
      %422 = vmatpush.bf16.msra.mxu0 0
      %423 = vmatpush.bf16.msra.mxu0 0
      %424 = vmatpush.bf16.msra.mxu0 0
      %425 = vmatpush.bf16.msra.mxu0 0
      %426 = vmatpush.bf16.msra.mxu0 0
      %427 = vmatpush.bf16.msra.mxu0 %v376
      %428 = vmatpush.bf16.msra.mxu0 %v341
      %429 = vmatmul.bf16.gmra.mxu0 %v354
      %v430 = vpop.f32.mrf.mxu0
      %v431 = vadd.f32 %v388, %v430
      %v432 = vpop.f32.mrf.mxu0
      %v433 = vadd.f32 %v390, %v432
      %434 = vmatmul.bf16.gmra.mxu0 %v357
      %v435 = vpop.f32.mrf.mxu0
      %v436 = vadd.f32 %v393, %v435
      %v437 = vpop.f32.mrf.mxu0
      %v438 = vadd.f32 %v395, %v437
      %439 = vmatmul.bf16.gmra.mxu0 %v360
      %v440 = vpop.f32.mrf.mxu0
      %v441 = vadd.f32 %v398, %v440
      %v442 = vpop.f32.mrf.mxu0
      %v443 = vadd.f32 %v400, %v442
      %444 = vmatmul.bf16.gmra.mxu0 %v363
      %v445 = vpop.f32.mrf.mxu0
      %v446 = vadd.f32 %v403, %v445
      %v447 = vpop.f32.mrf.mxu0
      %v448 = vadd.f32 %v405, %v447
      %449 = vmatmul.bf16.gmra.mxu0 %v366
      %v450 = vpop.f32.mrf.mxu0
      %v451 = vadd.f32 %v408, %v450
      %v452 = vpop.f32.mrf.mxu0
      %v453 = vadd.f32 %v410, %v452
      %454 = vmatmul.bf16.gmra.mxu0 %v369
      %v455 = vpop.f32.mrf.mxu0
      %v456 = vadd.f32 %v413, %v455
      %v457 = vpop.f32.mrf.mxu0
      %v458 = vadd.f32 %v415, %v457
      %459 = vmatmul.bf16.gmra.mxu0 %v372
      %v460 = vpop.f32.mrf.mxu0
      %v461 = vadd.f32 %v418, %v460
      %v462 = vpop.f32.mrf.mxu0
      %463 = vdwg.mxu0
      %v464 = vmax.f32 %v431, 0.0
      %v465 = vmax.f32 %v433, 0.0
      %v466 = vmax.f32 %v436, 0.0
      %v467 = vmax.f32 %v438, 0.0
      %v468 = vmax.f32 %v441, 0.0
      %v469 = vmax.f32 %v443, 0.0
      %v470 = vmax.f32 %v446, 0.0
      %v471 = vmax.f32 %v448, 0.0
      %v472 = vmax.f32 %v451, 0.0
      %v473 = vmax.f32 %v453, 0.0
      %v474 = vmax.f32 %v456, 0.0
      %v475 = vmax.f32 %v458, 0.0
      %v476 = vmax.f32 %v461, 0.0
      %v477 = vld [vmem:[%s3] sm:$0xf]
      %v478 = vld [vmem:[%s3 + $0x4] sm:$0xf]
      %v479 = vld [vmem:[%s3 + $0x8] sm:$0xf]
      %v480 = vld [vmem:[%s3 + $0xc] sm:$0x1]
      %v481 = vpack.c.bf16 %v465, %v464
      %v482 = vpack.c.bf16 %v467, %v466
      %v483 = vpack.c.bf16 %v469, %v468
      %v484 = vpack.c.bf16 %v471, %v470
      %v485 = vpack.c.bf16 %v473, %v472
      %v486 = vpack.c.bf16 %v475, %v474
      %v487 = vpack.c.bf16 %v476, %v476
      %v492 = vunpack.c.l.b16 %v477
      %v493 = vunpack.c.l.b16 %v478
      %v494 = vunpack.c.l.b16 %v479
      %v495 = vunpack.c.l.b16 %v480
      %v496 = vpack.c.b16 %v493, %v492
      %v497 = vpack.c.b16 %v495, %v494
      %vm498 = vcmask 818176
      %v500 = vsel %vm498, %v496, 0
      %v503 = vsel %vm498, %v497, 0
      %vm505 = vcmask 1041408
      %v507 = vsel %vm505, %v487, 0
      %509 = vmatpush.bf16.msra.mxu0 0
      %510 = vmatpush.bf16.msra.mxu0 %v507
      %511 = vmatpush.bf16.msra.mxu0 %v486
      %512 = vmatpush.bf16.msra.mxu0 %v485
      %513 = vmatpush.bf16.msra.mxu0 %v484
      %514 = vmatpush.bf16.msra.mxu0 %v483
      %515 = vmatpush.bf16.msra.mxu0 %v482
      %516 = vmatpush.bf16.msra.mxu0 %v481
      %517 = vmatmul.bf16.gmra.mxu0 %v500
      %v518 = vpop.f32.mrf.mxu0
      %v519 = vadd.f32 0.0, %v518
      %v520 = vpop.f32.mrf.mxu0
      %v521 = vadd.f32 0.0, %v520
      %522 = vmatmul.bf16.gmra.mxu0 %v503
      %v523 = vpop.f32.mrf.mxu0
      %v524 = vadd.f32 0.0, %v523
      %v525 = vpop.f32.mrf.mxu0
      %v526 = vadd.f32 0.0, %v525
      %527 = vdwg.mxu0
      %v528 = vmax.f32 %v519, 0.0
      %v529 = vmax.f32 %v521, 0.0
      %v530 = vmax.f32 %v524, 0.0
      %v531 = vmax.f32 %v526, 0.0
      %v532 = vpack.c.bf16 %v528, %v528
      %v533 = vpack.c.bf16 %v529, %v529
      %v534 = vpack.c.bf16 %v530, %v530
      %v535 = vpack.c.bf16 %v531, %v531
      %536 = vst [vmem:[%s197] sm:$0xf] %v532
      %537 = vst [vmem:[%s197 + $0x4] sm:$0xf] %v533
      %538 = vst [vmem:[%s197 + $0x8] sm:$0xf] %v534
      %vm539 = vcmask 1040384
      %vm540 = vsmask.f32 256
      %vm541 = vmand %vm539, %vm540
      %v542 = vld [vmem:[%s197 + $0xc] sm:$0x1]
      %v543 = vsel %vm541, %v535, %v542
      %544 = vst [vmem:[%s197 + $0xc] sm:$0x1] %v543
      %p545 = scmp.lt.s32.totalorder %s15, 1
      %s546 = scalar_select %p545, %s15, 1
      %s547 = smul.addr %s546, 4
      %s548 = smul.addr %s547, 4
      %s549 = scalar_lea.vmem %s4, %s548
      // Predicated region
      $region37: #{lenet_forward.4} parent=35 // pred_check
        %p550 = pneg %p122
      $region38: #{lenet_forward.4} parent=35 // pred_check_branch
        %552 = sbr.rel (%p550) target = $region40
      $region39: #{lenet_forward.4} parent=35 // pred_region
        _
      $region40: #{lenet_forward.4} parent=35 // pred_fallthru
        _
    $region36: #{lenet_forward.4} parent=5 // pred_fallthru
      _
    %p553 = scmp.le.s32.totalorder 2, %s10
    // Predicated region
    $region41: #{lenet_forward.4} parent=5 // pred_check
      %p554 = pneg %p553
    $region42: #{lenet_forward.4} parent=5 // pred_check_branch
      %556 = sbr.rel (%p554) target = $region44
    $region43: #{lenet_forward.4} parent=5 // pred_region
      %s557 = ssub.s32 %s10, 2
      // Predicated region
      $region45: #{lenet_forward.4} parent=43 // pred_check
        %p558 = pneg %p128
      $region46: #{lenet_forward.4} parent=43 // pred_check_branch
        %560 = sbr.rel (%p558) target = $region48
      $region47: #{lenet_forward.4} parent=43 // pred_region
        %p561 = scmp.lt.s32.totalorder %s16, 1
        %s562 = scalar_select %p561, %s16, 1
        %s563 = smul.addr %s562, 4
        %s564 = smul.addr %s563, 4
        %s565 = scalar_lea.vmem %s4, %s564
      $region48: #{lenet_forward.4} parent=43 // pred_fallthru
        _
    $region44: #{lenet_forward.4} parent=5 // pred_fallthru
      _
  $region6: #{lenet_forward.4} parent=0 // loop_footer
    %s14 = sadd.s32 1, %s10
  $region7: #{lenet_forward.4} parent=0 // loop_footer_branch
    %9 = sbr.rel target = $region3
  $region8: #{lenet_forward.4} parent=0 // loop_exit
    _

// kernel: lenet_forward.5
$region0: #{lenet_forward.5}
  #allocation0 [shape = 'u32[]', space=smem, size = 0x4, offset = 0x4, fixed_abs, tag = 'smem constant byte address 0x4 - core index']
  #allocation1 [shape = 'u32[72,128]{1,0:T(1,128)}', space=vmem, size = 0x9000, scoped, tag = 'internal scratch']
  %s0 = inlined_call_operand.vmem [shape: bf16[8,400], index: 0, kind: input, shape index: {}]
  %s1 = inlined_call_operand.vmem [shape: bf16[400,128], index: 1, kind: input, shape index: {}]
  %s2 = inlined_call_operand.vmem [shape: f32[1,128], index: 2, kind: input, shape index: {}]
  %s3 = inlined_call_operand.vmem [shape: bf16[128,128], index: 3, kind: input, shape index: {}]
  %s4 = inlined_call_operand.vmem [shape: f32[1,128], index: 4, kind: input, shape index: {}]
  %s5 = inlined_call_operand.vmem [shape: bf16[128,128], index: 5, kind: input, shape index: {}]
  %s6 = inlined_call_operand.vmem [shape: f32[1,128], index: 6, kind: input, shape index: {}]
  %s7 = inlined_call_operand.vmem [shape: f32[8,128], index: 7, kind: output, shape index: {}]
  %s8 = sld [smem:[#allocation0]]
  $region38: #{lenet_forward.5} parent=0
    _
  %s10 = ssub.s32 1, %s8
  %s11 = scalar_select 0, %s10, %s8
  // Predicated region
  $region2: #{lenet_forward.5} parent=0 // pred_check
    _
  $region3: #{lenet_forward.5} parent=0 // pred_check_branch
    %13 = sbr.rel (0) target = $region5
  $region4: #{lenet_forward.5} parent=0 // pred_region
    _
  $region5: #{lenet_forward.5} parent=0 // pred_fallthru
    _
  // Predicated region
  $region6: #{lenet_forward.5} parent=0 // pred_check
    _
  $region7: #{lenet_forward.5} parent=0 // pred_check_branch
    %15 = sbr.rel (0) target = $region9
  $region8: #{lenet_forward.5} parent=0 // pred_region
    _
  $region9: #{lenet_forward.5} parent=0 // pred_fallthru
    _
  // Predicated region
  $region10: #{lenet_forward.5} parent=0 // pred_check
    _
  $region11: #{lenet_forward.5} parent=0 // pred_check_branch
    %17 = sbr.rel (0) target = $region13
  $region12: #{lenet_forward.5} parent=0 // pred_region
    _
  $region13: #{lenet_forward.5} parent=0 // pred_fallthru
    _
  // Predicated region
  $region14: #{lenet_forward.5} parent=0 // pred_check
    _
  $region15: #{lenet_forward.5} parent=0 // pred_check_branch
    %19 = sbr.rel (0) target = $region17
  $region16: #{lenet_forward.5} parent=0 // pred_region
    _
  $region17: #{lenet_forward.5} parent=0 // pred_fallthru
    _
  // Predicated region
  $region18: #{lenet_forward.5} parent=0 // pred_check
    _
  $region19: #{lenet_forward.5} parent=0 // pred_check_branch
    %21 = sbr.rel (0) target = $region21
  $region20: #{lenet_forward.5} parent=0 // pred_region
    _
  $region21: #{lenet_forward.5} parent=0 // pred_fallthru
    _
  // Predicated region
  $region22: #{lenet_forward.5} parent=0 // pred_check
    _
  $region23: #{lenet_forward.5} parent=0 // pred_check_branch
    %23 = sbr.rel (0) target = $region25
  $region24: #{lenet_forward.5} parent=0 // pred_region
    _
  $region25: #{lenet_forward.5} parent=0 // pred_fallthru
    _
  // Predicated region
  $region26: #{lenet_forward.5} parent=0 // pred_check
    _
  $region27: #{lenet_forward.5} parent=0 // pred_check_branch
    %25 = sbr.rel (0) target = $region29
  $region28: #{lenet_forward.5} parent=0 // pred_region
    _
  $region29: #{lenet_forward.5} parent=0 // pred_fallthru
    _
  %v27 = vld [vmem:[%s0] sm:$0xff]
  %v28 = vld [vmem:[%s0 + $0x8] sm:$0xff]
  %v29 = vld [vmem:[%s1] sm:$0xf]
  %v30 = vld [vmem:[%s1 + $0x4] sm:$0xf]
  %v31 = vld [vmem:[%s1 + $0x8] sm:$0xf]
  %v32 = vld [vmem:[%s1 + $0xc] sm:$0xf]
  %v33 = vld [vmem:[%s1 + $0x10] sm:$0xf]
  %v34 = vld [vmem:[%s1 + $0x14] sm:$0xf]
  %v35 = vld [vmem:[%s1 + $0x18] sm:$0xf]
  %v36 = vld [vmem:[%s1 + $0x1c] sm:$0xf]
  %v37 = vld [vmem:[%s1 + $0x20] sm:$0xf]
  %v38 = vld [vmem:[%s1 + $0x24] sm:$0xf]
  %v39 = vld [vmem:[%s1 + $0x28] sm:$0xf]
  %v40 = vld [vmem:[%s1 + $0x2c] sm:$0xf]
  %v41 = vld [vmem:[%s1 + $0x30] sm:$0xf]
  %v42 = vld [vmem:[%s1 + $0x34] sm:$0xf]
  %v43 = vld [vmem:[%s1 + $0x38] sm:$0xf]
  %v44 = vld [vmem:[%s1 + $0x3c] sm:$0xf]
  %v45 = vld [vmem:[%s1 + $0x40] sm:$0xf]
  %v46 = vld [vmem:[%s1 + $0x44] sm:$0xf]
  %v47 = vld [vmem:[%s1 + $0x48] sm:$0xf]
  %v48 = vld [vmem:[%s1 + $0x4c] sm:$0xf]
  %v49 = vld [vmem:[%s1 + $0x50] sm:$0xf]
  %v50 = vld [vmem:[%s1 + $0x54] sm:$0xf]
  %v51 = vld [vmem:[%s1 + $0x58] sm:$0xf]
  %v52 = vld [vmem:[%s1 + $0x5c] sm:$0xf]
  %v53 = vld [vmem:[%s1 + $0x60] sm:$0xf]
  %v54 = vld [vmem:[%s1 + $0x64] sm:$0xf]
  %v55 = vld [vmem:[%s1 + $0x68] sm:$0xf]
  %v56 = vld [vmem:[%s1 + $0x6c] sm:$0xf]
  %v57 = vld [vmem:[%s1 + $0x70] sm:$0xf]
  %v58 = vld [vmem:[%s1 + $0x74] sm:$0xf]
  %v59 = vld [vmem:[%s1 + $0x78] sm:$0xf]
  %v60 = vld [vmem:[%s1 + $0x7c] sm:$0xf]
  %v61 = vld [vmem:[%s1 + $0x80] sm:$0xf]
  %v62 = vld [vmem:[%s1 + $0x84] sm:$0xf]
  %v63 = vld [vmem:[%s1 + $0x88] sm:$0xf]
  %v64 = vld [vmem:[%s1 + $0x8c] sm:$0xf]
  %v65 = vld [vmem:[%s1 + $0x90] sm:$0xf]
  %v66 = vld [vmem:[%s1 + $0x94] sm:$0xf]
  %v67 = vld [vmem:[%s1 + $0x98] sm:$0xf]
  %v68 = vld [vmem:[%s1 + $0x9c] sm:$0xf]
  %v69 = vld [vmem:[%s1 + $0xa0] sm:$0xf]
  %v70 = vld [vmem:[%s1 + $0xa4] sm:$0xf]
  %v71 = vld [vmem:[%s1 + $0xa8] sm:$0xf]
  %v72 = vld [vmem:[%s1 + $0xac] sm:$0xf]
  %v73 = vld [vmem:[%s1 + $0xb0] sm:$0xf]
  %v74 = vld [vmem:[%s1 + $0xb4] sm:$0xf]
  %v75 = vld [vmem:[%s1 + $0xb8] sm:$0xf]
  %v76 = vld [vmem:[%s1 + $0xbc] sm:$0xf]
  %v77 = vld [vmem:[%s1 + $0xc0] sm:$0xf]
  %v78 = vld [vmem:[%s1 + $0xc4] sm:$0xf]
  %v79 = vld [vmem:[%s2] sm:$0x1]
  %v81 = vperm.slane %v79, 0
  %v85 = vunpack.c.l.b16 %v27
  %v86 = vunpack.c.h.b16 %v27
  %v87 = vunpack.c.l.b16 %v28
  %v88 = vunpack.c.h.b16 %v28
  %v89 = vpack.c.b16 %v85, %v85
  %v90 = vpack.c.b16 %v86, %v86
  %v91 = vpack.c.b16 %v87, %v87
  %v92 = vpack.c.b16 %v88, %v88
  %v146 = vunpack.c.l.b16 %v29
  %v147 = vunpack.c.l.b16 %v30
  %v148 = vunpack.c.l.b16 %v31
  %v149 = vunpack.c.l.b16 %v32
  %v150 = vunpack.c.l.b16 %v33
  %v151 = vunpack.c.l.b16 %v34
  %v152 = vunpack.c.l.b16 %v35
  %v153 = vunpack.c.l.b16 %v36
  %v154 = vunpack.c.l.b16 %v37
  %v155 = vunpack.c.l.b16 %v38
  %v156 = vunpack.c.l.b16 %v39
  %v157 = vunpack.c.l.b16 %v40
  %v158 = vunpack.c.l.b16 %v41
  %v159 = vunpack.c.l.b16 %v42
  %v160 = vunpack.c.l.b16 %v43
  %v161 = vunpack.c.l.b16 %v44
  %v162 = vunpack.c.l.b16 %v45
  %v163 = vunpack.c.l.b16 %v46
  %v164 = vunpack.c.l.b16 %v47
  %v165 = vunpack.c.l.b16 %v48
  %v166 = vunpack.c.l.b16 %v49
  %v167 = vunpack.c.l.b16 %v50
  %v168 = vunpack.c.l.b16 %v51
  %v169 = vunpack.c.l.b16 %v52
  %v170 = vunpack.c.l.b16 %v53
  %v171 = vunpack.c.l.b16 %v54
  %v172 = vunpack.c.l.b16 %v55
  %v173 = vunpack.c.l.b16 %v56
  %v174 = vunpack.c.l.b16 %v57
  %v175 = vunpack.c.l.b16 %v58
  %v176 = vunpack.c.l.b16 %v59
  %v177 = vunpack.c.l.b16 %v60
  %v178 = vunpack.c.l.b16 %v61
  %v179 = vunpack.c.l.b16 %v62
  %v180 = vunpack.c.l.b16 %v63
  %v181 = vunpack.c.l.b16 %v64
  %v182 = vunpack.c.l.b16 %v65
  %v183 = vunpack.c.l.b16 %v66
  %v184 = vunpack.c.l.b16 %v67
  %v185 = vunpack.c.l.b16 %v68
  %v186 = vunpack.c.l.b16 %v69
  %v187 = vunpack.c.l.b16 %v70
  %v188 = vunpack.c.l.b16 %v71
  %v189 = vunpack.c.l.b16 %v72
  %v190 = vunpack.c.l.b16 %v73
  %v191 = vunpack.c.l.b16 %v74
  %v192 = vunpack.c.l.b16 %v75
  %v193 = vunpack.c.l.b16 %v76
  %v194 = vunpack.c.l.b16 %v77
  %v195 = vunpack.c.l.b16 %v78
  %v196 = vpack.c.b16 %v147, %v146
  %v197 = vpack.c.b16 %v149, %v148
  %v198 = vpack.c.b16 %v151, %v150
  %v199 = vpack.c.b16 %v153, %v152
  %v200 = vpack.c.b16 %v155, %v154
  %v201 = vpack.c.b16 %v157, %v156
  %v202 = vpack.c.b16 %v159, %v158
  %v203 = vpack.c.b16 %v161, %v160
  %v204 = vpack.c.b16 %v163, %v162
  %v205 = vpack.c.b16 %v165, %v164
  %v206 = vpack.c.b16 %v167, %v166
  %v207 = vpack.c.b16 %v169, %v168
  %v208 = vpack.c.b16 %v171, %v170
  %v209 = vpack.c.b16 %v173, %v172
  %v210 = vpack.c.b16 %v175, %v174
  %v211 = vpack.c.b16 %v177, %v176
  %v212 = vpack.c.b16 %v179, %v178
  %v213 = vpack.c.b16 %v181, %v180
  %v214 = vpack.c.b16 %v183, %v182
  %v215 = vpack.c.b16 %v185, %v184
  %v216 = vpack.c.b16 %v187, %v186
  %v217 = vpack.c.b16 %v189, %v188
  %v218 = vpack.c.b16 %v191, %v190
  %v219 = vpack.c.b16 %v193, %v192
  %v220 = vpack.c.b16 %v195, %v194
  %vm246 = vcmask 130048
  %v248 = vsel %vm246, %v92, 0
  %250 = vmatpush.bf16.msra.mxu0 %v203
  %251 = vmatpush.bf16.msra.mxu0 %v202
  %252 = vmatpush.bf16.msra.mxu0 %v201
  %253 = vmatpush.bf16.msra.mxu0 %v200
  %254 = vmatpush.bf16.msra.mxu0 %v199
  %255 = vmatpush.bf16.msra.mxu0 %v198
  %256 = vmatpush.bf16.msra.mxu0 %v197
  %257 = vmatpush.bf16.msra.mxu0 %v196
  %258 = vmatmul.bf16.gmra.mxu0 %v89
  %v259 = vpop.f32.mrf.mxu0
  %v260 = vadd.f32 %v81, %v259
  %v261 = vpop.f32.mrf.mxu0
  %262 = vdwg.mxu0
  %263 = vmatpush.bf16.msra.mxu0 %v211
  %264 = vmatpush.bf16.msra.mxu0 %v210
  %265 = vmatpush.bf16.msra.mxu0 %v209
  %266 = vmatpush.bf16.msra.mxu0 %v208
  %267 = vmatpush.bf16.msra.mxu0 %v207
  %268 = vmatpush.bf16.msra.mxu0 %v206
  %269 = vmatpush.bf16.msra.mxu0 %v205
  %270 = vmatpush.bf16.msra.mxu0 %v204
  %271 = vmatmul.bf16.gmra.mxu0 %v90
  %v272 = vpop.f32.mrf.mxu0
  %v273 = vadd.f32 %v260, %v272
  %v274 = vpop.f32.mrf.mxu0
  %275 = vdwg.mxu0
  %276 = vmatpush.bf16.msra.mxu0 %v219
  %277 = vmatpush.bf16.msra.mxu0 %v218
  %278 = vmatpush.bf16.msra.mxu0 %v217
  %279 = vmatpush.bf16.msra.mxu0 %v216
  %280 = vmatpush.bf16.msra.mxu0 %v215
  %281 = vmatpush.bf16.msra.mxu0 %v214
  %282 = vmatpush.bf16.msra.mxu0 %v213
  %283 = vmatpush.bf16.msra.mxu0 %v212
  %284 = vmatmul.bf16.gmra.mxu0 %v91
  %v285 = vpop.f32.mrf.mxu0
  %v286 = vadd.f32 %v273, %v285
  %v287 = vpop.f32.mrf.mxu0
  %288 = vdwg.mxu0
  %289 = vmatpush.bf16.msra.mxu0 0
  %290 = vmatpush.bf16.msra.mxu0 0
  %291 = vmatpush.bf16.msra.mxu0 0
  %292 = vmatpush.bf16.msra.mxu0 0
  %293 = vmatpush.bf16.msra.mxu0 0
  %294 = vmatpush.bf16.msra.mxu0 0
  %295 = vmatpush.bf16.msra.mxu0 0
  %296 = vmatpush.bf16.msra.mxu0 %v220
  %297 = vmatmul.bf16.gmra.mxu0 %v248
  %v298 = vpop.f32.mrf.mxu0
  %v299 = vadd.f32 %v286, %v298
  %v300 = vpop.f32.mrf.mxu0
  %301 = vdwg.mxu0
  %v302 = vmax.f32 %v299, 0.0
  %v303 = vpack.c.bf16 %v302, %v302
  %v304 = vld [vmem:[%s3] sm:$0xf]
  %v305 = vld [vmem:[%s3 + $0x4] sm:$0xf]
  %v306 = vld [vmem:[%s3 + $0x8] sm:$0xf]
  %v307 = vld [vmem:[%s3 + $0xc] sm:$0xf]
  %v308 = vld [vmem:[%s3 + $0x10] sm:$0xf]
  %v309 = vld [vmem:[%s3 + $0x14] sm:$0xf]
  %v310 = vld [vmem:[%s3 + $0x18] sm:$0xf]
  %v311 = vld [vmem:[%s3 + $0x1c] sm:$0xf]
  %v312 = vld [vmem:[%s3 + $0x20] sm:$0xf]
  %v313 = vld [vmem:[%s3 + $0x24] sm:$0xf]
  %v314 = vld [vmem:[%s3 + $0x28] sm:$0xf]
  %v315 = vld [vmem:[%s3 + $0x2c] sm:$0xf]
  %v316 = vld [vmem:[%s3 + $0x30] sm:$0xf]
  %v317 = vld [vmem:[%s3 + $0x34] sm:$0xf]
  %v318 = vld [vmem:[%s3 + $0x38] sm:$0xf]
  %v319 = vld [vmem:[%s3 + $0x3c] sm:$0xf]
  %v320 = vld [vmem:[%s4] sm:$0x1]
  %v322 = vperm.slane %v320, 0
  %v340 = vunpack.c.l.b16 %v304
  %v341 = vunpack.c.l.b16 %v305
  %v342 = vunpack.c.l.b16 %v306
  %v343 = vunpack.c.l.b16 %v307
  %v344 = vunpack.c.l.b16 %v308
  %v345 = vunpack.c.l.b16 %v309
  %v346 = vunpack.c.l.b16 %v310
  %v347 = vunpack.c.l.b16 %v311
  %v348 = vunpack.c.l.b16 %v312
  %v349 = vunpack.c.l.b16 %v313
  %v350 = vunpack.c.l.b16 %v314
  %v351 = vunpack.c.l.b16 %v315
  %v352 = vunpack.c.l.b16 %v316
  %v353 = vunpack.c.l.b16 %v317
  %v354 = vunpack.c.l.b16 %v318
  %v355 = vunpack.c.l.b16 %v319
  %v356 = vpack.c.b16 %v341, %v340
  %v357 = vpack.c.b16 %v343, %v342
  %v358 = vpack.c.b16 %v345, %v344
  %v359 = vpack.c.b16 %v347, %v346
  %v360 = vpack.c.b16 %v349, %v348
  %v361 = vpack.c.b16 %v351, %v350
  %v362 = vpack.c.b16 %v353, %v352
  %v363 = vpack.c.b16 %v355, %v354
  %372 = vmatpush.bf16.msra.mxu0 %v363
  %373 = vmatpush.bf16.msra.mxu0 %v362
  %374 = vmatpush.bf16.msra.mxu0 %v361
  %375 = vmatpush.bf16.msra.mxu0 %v360
  %376 = vmatpush.bf16.msra.mxu0 %v359
  %377 = vmatpush.bf16.msra.mxu0 %v358
  %378 = vmatpush.bf16.msra.mxu0 %v357
  %379 = vmatpush.bf16.msra.mxu0 %v356
  %380 = vmatmul.bf16.gmra.mxu0 %v303
  %v381 = vpop.f32.mrf.mxu0
  %v382 = vadd.f32 %v322, %v381
  %v383 = vpop.f32.mrf.mxu0
  %384 = vdwg.mxu0
  %v385 = vmax.f32 %v382, 0.0
  %v386 = vpack.c.bf16 %v385, %v385
  %v387 = vld [vmem:[%s5] sm:$0xf]
  %v388 = vld [vmem:[%s5 + $0x4] sm:$0xf]
  %v389 = vld [vmem:[%s5 + $0x8] sm:$0xf]
  %v390 = vld [vmem:[%s5 + $0xc] sm:$0xf]
  %v391 = vld [vmem:[%s5 + $0x10] sm:$0xf]
  %v392 = vld [vmem:[%s5 + $0x14] sm:$0xf]
  %v393 = vld [vmem:[%s5 + $0x18] sm:$0xf]
  %v394 = vld [vmem:[%s5 + $0x1c] sm:$0xf]
  %v395 = vld [vmem:[%s5 + $0x20] sm:$0xf]
  %v396 = vld [vmem:[%s5 + $0x24] sm:$0xf]
  %v397 = vld [vmem:[%s5 + $0x28] sm:$0xf]
  %v398 = vld [vmem:[%s5 + $0x2c] sm:$0xf]
  %v399 = vld [vmem:[%s5 + $0x30] sm:$0xf]
  %v400 = vld [vmem:[%s5 + $0x34] sm:$0xf]
  %v401 = vld [vmem:[%s5 + $0x38] sm:$0xf]
  %v402 = vld [vmem:[%s5 + $0x3c] sm:$0xf]
  %v403 = vld [vmem:[%s6] sm:$0x1]
  %v405 = vperm.slane %v403, 0
  %v423 = vunpack.c.l.b16 %v387
  %v424 = vunpack.c.l.b16 %v388
  %v425 = vunpack.c.l.b16 %v389
  %v426 = vunpack.c.l.b16 %v390
  %v427 = vunpack.c.l.b16 %v391
  %v428 = vunpack.c.l.b16 %v392
  %v429 = vunpack.c.l.b16 %v393
  %v430 = vunpack.c.l.b16 %v394
  %v431 = vunpack.c.l.b16 %v395
  %v432 = vunpack.c.l.b16 %v396
  %v433 = vunpack.c.l.b16 %v397
  %v434 = vunpack.c.l.b16 %v398
  %v435 = vunpack.c.l.b16 %v399
  %v436 = vunpack.c.l.b16 %v400
  %v437 = vunpack.c.l.b16 %v401
  %v438 = vunpack.c.l.b16 %v402
  %v439 = vpack.c.b16 %v424, %v423
  %v440 = vpack.c.b16 %v426, %v425
  %v441 = vpack.c.b16 %v428, %v427
  %v442 = vpack.c.b16 %v430, %v429
  %v443 = vpack.c.b16 %v432, %v431
  %v444 = vpack.c.b16 %v434, %v433
  %v445 = vpack.c.b16 %v436, %v435
  %v446 = vpack.c.b16 %v438, %v437
  %455 = vmatpush.bf16.msra.mxu0 %v446
  %456 = vmatpush.bf16.msra.mxu0 %v445
  %457 = vmatpush.bf16.msra.mxu0 %v444
  %458 = vmatpush.bf16.msra.mxu0 %v443
  %459 = vmatpush.bf16.msra.mxu0 %v442
  %460 = vmatpush.bf16.msra.mxu0 %v441
  %461 = vmatpush.bf16.msra.mxu0 %v440
  %462 = vmatpush.bf16.msra.mxu0 %v439
  %463 = vmatmul.bf16.gmra.mxu0 %v386
  %v464 = vpop.f32.mrf.mxu0
  %v465 = vadd.f32 %v405, %v464
  %v466 = vpop.f32.mrf.mxu0
  %467 = vdwg.mxu0
  %v468 = vmax.f32 %v465, 0.0
  %v469 = vlaneseq
  %v470 = vand.u32 %v469, 127
  %vm471 = vcmp.lt.s32.totalorder %v470, 10
  %v472 = vmul.f32 %v468, 1.442695
  %v473 = vpow.pop %v472
  %v474 = vsel %vm471, %v473, 0.0
  %475 = vadd.xlane.f32.xlu0 %v474
  %v476 = vpop.xlane.xlu0 %475
  %v477 = vrcp.pop %v476
  %v478 = vmul.f32 %v474, %v477
  %479 = vst [vmem:[%s7] sm:$0xff] %v478
  // Predicated region
  $region30: #{lenet_forward.5} parent=0 // pred_check
    _
  $region31: #{lenet_forward.5} parent=0 // pred_check_branch
    %481 = sbr.rel (0) target = $region33
  $region32: #{lenet_forward.5} parent=0 // pred_region
    _
  $region33: #{lenet_forward.5} parent=0 // pred_fallthru
    _
  // Predicated region
  $region34: #{lenet_forward.5} parent=0 // pred_check
    _
  $region35: #{lenet_forward.5} parent=0 // pred_check_branch
    %483 = sbr.rel (0) target = $region37
  $region36: #{lenet_forward.5} parent=0 // pred_region
    _
  $region37: #{lenet_forward.5} parent=0 // pred_fallthru
    _

</llo_original>
